<compile_context>
chip_gen: v6e
topology: v6e:2x2x1
jax: 0.10.0
libtpu: 0.0.40
codegen_flags: <defaults>
</compile_context>

<pallas_src>
import functools
import math

import jax
import jax.numpy as jnp
from jax import lax
from jax.experimental import pallas as pl
from jax.experimental.pallas import tpu as pltpu


def _round_up(x, m):
    return ((x + m - 1) // m) * m


def _convblock_kernel(x_body_ref, x_halo_ref, w_ref, o_ref, patch_ref, *,
                      relu: bool, kh: int, kw: int, chunk_rows: int):
    """One (batch, row-block) tile of ReLU(conv2d(x, w)).

    x_body_ref: (1, TH, Wp, Cin)              input rows [hb*TH, hb*TH+TH)
    x_halo_ref: (1, KH-1, Wp, Cin)            halo rows just below the tile
    w_ref:      (KH*KW*Cin, Cout_pad)         lane-ordered weight slab (resident)
    o_ref:      (1, TH, Wout_pad, Cout_pad)   output tile (compute dtype)
    patch_ref:  (NBUF, chunk_rows*Wout_pad, KH*KW*Cin)  im2col chunk scratch
    """
    _, th, wout, cout_p = o_ref.shape
    cin = x_body_ref.shape[3]
    n_buf = patch_ref.shape[0]
    n_chunks = th // chunk_rows
    m_chunk = chunk_rows * wout

    # Static (unrolled) chunk loop: building the patch of chunk c+1 (vld/vst
    # slots) can overlap the matmul of chunk c (MXU slot) because the patch
    # scratch is double-buffered.
    for c in range(n_chunks):
        r0 = c * chunk_rows
        pbuf = patch_ref.at[c % n_buf]
        for ky in range(kh):
            lo = r0 + ky                        # first stitched input row for this tap
            hi = lo + chunk_rows
            n_body = max(0, min(hi, th) - lo)   # rows served by the body view
            n_halo = chunk_rows - n_body        # rows served by the halo view
            for kx in range(kw):
                col0 = (ky * kw + kx) * cin
                if n_body > 0:
                    win = x_body_ref[0, lo:lo + n_body, kx:kx + wout, :]
                    pbuf[0:n_body * wout, col0:col0 + cin] = (
                        win.reshape(n_body * wout, cin))
                if n_halo > 0:
                    hs = max(lo - th, 0)
                    win = x_halo_ref[0, hs:hs + n_halo, kx:kx + wout, :]
                    pbuf[n_body * wout:m_chunk, col0:col0 + cin] = (
                        win.reshape(n_halo * wout, cin))

        # Single fat MXU matmul per chunk, f32 accumulation, fused ReLU.
        acc = jnp.dot(pbuf[...], w_ref[...],
                      preferred_element_type=jnp.float32)       # (m_chunk, Cout_pad)
        if relu:
            acc = jnp.maximum(acc, 0.0)
        o_ref[:, r0:r0 + chunk_rows, :, :] = (
            acc.reshape(1, chunk_rows, wout, cout_p).astype(o_ref.dtype))


def _pick_chunk_rows(th, wout_pad, chunk_m, max_chunks=16):
    """Smallest divisor of `th` whose chunk M >= chunk_m and chunk count <= max."""
    for d in range(1, th + 1):
        if th % d == 0 and th // d <= max_chunks and d * wout_pad >= chunk_m:
            return d
    return th


def _vmem_capacity_bytes():
    try:
        cap = int(pltpu.get_tpu_info().vmem_capacity_bytes)
        return max(cap, 32 * 1024 * 1024)
    except Exception:                      # fall back to the smallest part (v7x)
        return 64 * 1024 * 1024


@functools.partial(
    jax.jit,
    static_argnames=("stride", "padding", "dilation", "relu", "tile_rows",
                     "compute_dtype", "chunk_m"),
)
def conv_block_forward(x_nchw, weight_oihw, *, stride=1, padding=1, dilation=1,
                       relu=True, tile_rows=None, compute_dtype=jnp.bfloat16,
                       chunk_m=512):
    """ConvBlock forward (defaults: bias=False, bn=False): ReLU(Conv2d(x)).

    x_nchw:      (N, Cin, H, W)        float32 (PyTorch NCHW layout)
    weight_oihw: (Cout, Cin, KH, KW)   float32 (PyTorch Conv2d layout)
    returns:     (N, Cout, Hout, Wout) float32 NCHW (matches PyTorch)
    """
    # TODO(synk): bn=True (BatchNorm2d) and bias=True paths not implemented
    #             (module defaults are bn=False, bias=False).
    assert stride == 1 and dilation == 1, "ConvBlock defaults: stride=1, dilation=1"
    N, Cin, H, W = x_nchw.shape
    Cout, Cin_w, KH, KW = weight_oihw.shape
    assert Cin == Cin_w, "grouped conv not supported (Conv2d default groups=1)"
    assert KH >= 2, "1xK kernels not supported"   # TODO(synk): 1x1 conv fast path

    halo = KH - 1
    Hout = H + 2 * padding - KH + 1
    Wout = W + 2 * padding - KW + 1
    assert Hout > 0 and Wout > 0

    in_bytes = jnp.dtype(compute_dtype).itemsize
    lane = 128
    sub = 32 // in_bytes                          # sublane multiple for compute dtype

    # --- adaptive channel padding (lane density vs FLOP / HBM inflation) -----
    Cin_k = _round_up(Cin, lane) if Cin >= 96 else Cin
    if Cout >= 96:
        Cout_pad = 128 if Cout <= 128 else (256 if Cout <= 256 else _round_up(Cout, 128))
    else:
        Cout_pad = _round_up(Cout, 8)             # tiny Cout: keep writeback small
    K = KH * KW * Cin_k

    # Output width padded to a sublane multiple so im2col/output reshapes are views.
    Wout_pad = _round_up(Wout, sub)
    Wp = Wout_pad + KW - 1                        # padded input width per tile

    # --- VMEM-aware row-tile size (layout padding + double buffering) --------
    vmem_cap = _vmem_capacity_bytes()
    vmem_limit = min(vmem_cap * 3 // 4, 96 * 1024 * 1024)   # ~48 MiB v7x, 96 MiB v5e/v6e
    tile_budget = vmem_limit * 3 // 4                        # headroom for temporaries

    cin_lanes = _round_up(Cin_k, lane)
    cout_lanes = _round_up(Cout_pad, lane)
    wp_sub = _round_up(Wp, sub)
    patch_m_est = max(chunk_m, Wout_pad)
    fixed = (halo * wp_sub * cin_lanes * in_bytes * 2         # halo view (dbuf)
             + _round_up(K, sub) * cout_lanes * in_bytes * 2  # weight slab
             + 2 * patch_m_est * _round_up(K, lane) * in_bytes  # im2col scratch (2 bufs)
             + 2 * patch_m_est * cout_lanes * 4)              # f32 acc temporaries
    per_row = (wp_sub * cin_lanes * in_bytes * 2              # body view (dbuf)
               + Wout_pad * cout_lanes * in_bytes * 2)        # output block (dbuf)

    row_align = math.lcm(8, halo)
    hout_aligned = _round_up(Hout, row_align)
    if tile_rows is None:
        th = max(row_align, (tile_budget - fixed) // per_row)
    else:
        th = max(1, int(tile_rows))
    th = min(_round_up(th, row_align), hout_aligned)
    if N == 1 and hout_aligned > row_align:
        # v7x has 2 TensorCores: keep >= 2 steps on the 'parallel' grid.
        th = min(th, _round_up((Hout + 1) // 2, row_align))
    TH = _round_up(th, row_align)
    assert TH % halo == 0
    H_out_pad = _round_up(Hout, TH)
    HB = H_out_pad // TH
    halo_blk = TH // halo

    CR = _pick_chunk_rows(TH, Wout_pad, chunk_m)
    NC = TH // CR
    NBUF = 2 if NC > 1 else 1

    # --- HBM-side glue: layout, zero padding, dtype casts ---------------------
    # TODO(synk): the NCHW<->NHWC transposes + pads below are separate HBM
    #             passes; a model kept NHWC end-to-end would drop them.
    x_nhwc = jnp.transpose(x_nchw, (0, 2, 3, 1)).astype(compute_dtype)
    pad_h_hi = padding + (H_out_pad - Hout)
    pad_w_hi = padding + (Wout_pad - Wout)
    x_pad = jnp.pad(x_nhwc, ((0, 0), (padding, pad_h_hi),
                             (padding, pad_w_hi), (0, Cin_k - Cin)))
    # x_pad: (N, H_out_pad + halo, Wp, Cin_k)

    # Weight -> (KH*KW*Cin_k, Cout_pad) matmul slab (tap-major, Cin minor).
    w_slab = jnp.transpose(weight_oihw, (2, 3, 1, 0)).reshape(KH * KW, Cin, Cout)
    w_slab = jnp.pad(w_slab, ((0, 0), (0, Cin_k - Cin), (0, Cout_pad - Cout)))
    w_slab = w_slab.reshape(K, Cout_pad).astype(compute_dtype)

    kernel = functools.partial(_convblock_kernel, relu=relu, kh=KH, kw=KW,
                               chunk_rows=CR)

    out = pl.pallas_call(
        kernel,
        out_shape=jax.ShapeDtypeStruct((N, H_out_pad, Wout_pad, Cout_pad),
                                       compute_dtype),
        grid_spec=pltpu.PrefetchScalarGridSpec(
            num_scalar_prefetch=0,
            grid=(N, HB),
            in_specs=[
                # body rows of the tile
                pl.BlockSpec((1, TH, Wp, Cin_k), lambda n, hb: (n, hb, 0, 0)),
                # KH-1 halo rows just below the tile (second view of same array)
                pl.BlockSpec((1, halo, Wp, Cin_k),
                             lambda n, hb: (n, (hb + 1) * halo_blk, 0, 0)),
                # resident weight slab
                pl.BlockSpec((K, Cout_pad), lambda n, hb: (0, 0)),
            ],
            out_specs=pl.BlockSpec((1, TH, Wout_pad, Cout_pad),
                                   lambda n, hb: (n, hb, 0, 0)),
            scratch_shapes=[
                pltpu.VMEM((NBUF, CR * Wout_pad, K), compute_dtype),  # im2col chunks
            ],
        ),
        compiler_params=pltpu.CompilerParams(
            dimension_semantics=("parallel", "parallel"),
            vmem_limit_bytes=int(vmem_limit),
        ),
    )(x_pad, x_pad, w_slab)

    out = out[:, :Hout, :Wout, :Cout]                              # drop row/col/lane padding
    return jnp.transpose(out, (0, 3, 1, 2)).astype(x_nchw.dtype)   # back to NCHW


def _reference_forward(x_nchw, weight_oihw, *, relu=True, cast_dtype=None):
    x, w = x_nchw, weight_oihw
    if cast_dtype is not None:
        x = x.astype(cast_dtype)
        w = w.astype(cast_dtype)
    out = lax.conv_general_dilated(
        x, w, window_strides=(1, 1), padding=((1, 1), (1, 1)),
        dimension_numbers=("NCHW", "OIHW", "NCHW"),
        preferred_element_type=jnp.float32)
    return jnp.maximum(out, 0.0) if relu else out


if __name__ == "__main__":
    key = jax.random.PRNGKey(0)
    k_x, k_w = jax.random.split(key)

    N, Cin, H, W = 2, 4, 16, 16
    Cout, KH, KW = 8, 3, 3

    x = jax.random.normal(k_x, (N, Cin, H, W), dtype=jnp.float32)
    # Deterministic Conv2d weight init (Kaiming-uniform-like scale).
    fan_in = Cin * KH * KW
    bound = 1.0 / (fan_in ** 0.5)
    weight = jax.random.uniform(k_w, (Cout, Cin, KH, KW), dtype=jnp.float32,
                                minval=-bound, maxval=bound)

    out = jax.block_until_ready(conv_block_forward(x, weight))
    assert out.shape == (N, Cout, H, W)

    # bf16-matched reference (same operand quantization, f32 accumulation).
    ref_bf16 = jax.block_until_ready(
        _reference_forward(x, weight, cast_dtype=jnp.bfloat16))
    assert jnp.allclose(out, ref_bf16, atol=2e-2, rtol=2e-2), "mismatch vs bf16 conv reference"

    # Loose sanity vs full-f32 reference (kernel uses bf16 MXU operands + bf16 store).
    ref_f32 = jax.block_until_ready(_reference_forward(x, weight))
    assert jnp.allclose(out, ref_f32, atol=8e-2, rtol=8e-2), "mismatch vs f32 conv reference"

    # Exercise the row-tiled halo path AND the multi-chunk im2col/matmul interleave.
    out_tiled = jax.block_until_ready(
        conv_block_forward(x, weight, tile_rows=8, chunk_m=64))
    assert jnp.allclose(out_tiled, ref_bf16, atol=2e-2, rtol=2e-2), "mismatch (tiled/chunked path)"

    print("KERNEL_OK")
</pallas_src>

<mosaic_0001>
module attributes {stable_mosaic.version = 11 : i64} {
  func.func @_convblock_kernel(%arg0: i32, %arg1: i32, %arg2: memref<1x16x18x4xbf16, #tpu.memory_space<vmem>>, %arg3: memref<1x2x18x4xbf16, #tpu.memory_space<vmem>>, %arg4: memref<36x8xbf16, #tpu.memory_space<vmem>>, %arg5: memref<1x16x16x8xbf16, #tpu.memory_space<vmem>>, %arg6: memref<1x256x36xbf16, #tpu.memory_space<vmem>>) attributes {dimension_semantics = [#tpu.dimension_semantics<parallel>, #tpu.dimension_semantics<parallel>], iteration_bounds = array<i64: 2, 1>, scalar_prefetch = 0 : i64, scratch_operands = 1 : i64, tpu.core_type = #tpu.core_type<tc>, window_params = [{transform_indices = @transform_0, window_bounds = array<i64: 1, 16, 18, 4>}, {transform_indices = @transform_1, window_bounds = array<i64: 1, 2, 18, 4>}, {pipeline_mode = #tpu.pipeline_mode<synchronous>, transform_indices = @transform_2, window_bounds = array<i64: 36, 8>}, {transform_indices = @transform_3, window_bounds = array<i64: 1, 16, 16, 8>}]} {
    %c0 = arith.constant 0 : index
    %c0_0 = arith.constant 0 : index
    %c0_1 = arith.constant 0 : index
    %c0_2 = arith.constant 0 : index
    %0 = vector.load %arg2[%c0, %c0_0, %c0_1, %c0_2] : memref<1x16x18x4xbf16, #tpu.memory_space<vmem>>, vector<1x16x16x4xbf16>
    %1 = vector.shape_cast %0 : vector<1x16x16x4xbf16> to vector<16x16x4xbf16>
    %2 = vector.shape_cast %1 : vector<16x16x4xbf16> to vector<256x4xbf16>
    %c0_i32 = arith.constant 0 : i32
    %c0_i32_3 = arith.constant 0 : i32
    %c0_i32_4 = arith.constant 0 : i32
    %3 = tpu.memref_slice %arg6[%c0_i32, %c0_i32_3, %c0_i32_4] : memref<1x256x36xbf16, #tpu.memory_space<vmem>> -> memref<1x256x36xbf16, #tpu.memory_space<vmem>>
    %4 = tpu.memref_squeeze %3 : memref<1x256x36xbf16, #tpu.memory_space<vmem>> -> memref<256x36xbf16, #tpu.memory_space<vmem>>
    %c0_5 = arith.constant 0 : index
    %c0_6 = arith.constant 0 : index
    %5 = vector.load %4[%c0_5, %c0_6] : memref<256x36xbf16, #tpu.memory_space<vmem>>, vector<256x4xbf16>
    tpu.vector_store %4[%c0_5, %c0_6], %2 {strides = array<i32>} : memref<256x36xbf16, #tpu.memory_space<vmem>>, vector<256x4xbf16>,
    %c0_7 = arith.constant 0 : index
    %c0_8 = arith.constant 0 : index
    %c1 = arith.constant 1 : index
    %c0_9 = arith.constant 0 : index
    %6 = vector.load %arg2[%c0_7, %c0_8, %c1, %c0_9] : memref<1x16x18x4xbf16, #tpu.memory_space<vmem>>, vector<1x16x16x4xbf16>
    %7 = vector.shape_cast %6 : vector<1x16x16x4xbf16> to vector<16x16x4xbf16>
    %8 = vector.shape_cast %7 : vector<16x16x4xbf16> to vector<256x4xbf16>
    %c0_i32_10 = arith.constant 0 : i32
    %c0_i32_11 = arith.constant 0 : i32
    %c0_i32_12 = arith.constant 0 : i32
    %9 = tpu.memref_slice %arg6[%c0_i32_10, %c0_i32_11, %c0_i32_12] : memref<1x256x36xbf16, #tpu.memory_space<vmem>> -> memref<1x256x36xbf16, #tpu.memory_space<vmem>>
    %10 = tpu.memref_squeeze %9 : memref<1x256x36xbf16, #tpu.memory_space<vmem>> -> memref<256x36xbf16, #tpu.memory_space<vmem>>
    %c0_13 = arith.constant 0 : index
    %c4 = arith.constant 4 : index
    %11 = vector.load %10[%c0_13, %c4] : memref<256x36xbf16, #tpu.memory_space<vmem>>, vector<256x4xbf16>
    tpu.vector_store %10[%c0_13, %c4], %8 {strides = array<i32>} : memref<256x36xbf16, #tpu.memory_space<vmem>>, vector<256x4xbf16>,
    %c0_14 = arith.constant 0 : index
    %c0_15 = arith.constant 0 : index
    %c2 = arith.constant 2 : index
    %c0_16 = arith.constant 0 : index
    %12 = vector.load %arg2[%c0_14, %c0_15, %c2, %c0_16] : memref<1x16x18x4xbf16, #tpu.memory_space<vmem>>, vector<1x16x16x4xbf16>
    %13 = vector.shape_cast %12 : vector<1x16x16x4xbf16> to vector<16x16x4xbf16>
    %14 = vector.shape_cast %13 : vector<16x16x4xbf16> to vector<256x4xbf16>
    %c0_i32_17 = arith.constant 0 : i32
    %c0_i32_18 = arith.constant 0 : i32
    %c0_i32_19 = arith.constant 0 : i32
    %15 = tpu.memref_slice %arg6[%c0_i32_17, %c0_i32_18, %c0_i32_19] : memref<1x256x36xbf16, #tpu.memory_space<vmem>> -> memref<1x256x36xbf16, #tpu.memory_space<vmem>>
    %16 = tpu.memref_squeeze %15 : memref<1x256x36xbf16, #tpu.memory_space<vmem>> -> memref<256x36xbf16, #tpu.memory_space<vmem>>
    %c0_20 = arith.constant 0 : index
    %c8 = arith.constant 8 : index
    %17 = vector.load %16[%c0_20, %c8] : memref<256x36xbf16, #tpu.memory_space<vmem>>, vector<256x4xbf16>
    tpu.vector_store %16[%c0_20, %c8], %14 {strides = array<i32>} : memref<256x36xbf16, #tpu.memory_space<vmem>>, vector<256x4xbf16>,
    %c0_21 = arith.constant 0 : index
    %c1_22 = arith.constant 1 : index
    %c0_23 = arith.constant 0 : index
    %c0_24 = arith.constant 0 : index
    %18 = vector.load %arg2[%c0_21, %c1_22, %c0_23, %c0_24] : memref<1x16x18x4xbf16, #tpu.memory_space<vmem>>, vector<1x15x16x4xbf16>
    %19 = vector.shape_cast %18 : vector<1x15x16x4xbf16> to vector<15x16x4xbf16>
    %20 = vector.shape_cast %19 : vector<15x16x4xbf16> to vector<240x4xbf16>
    %c0_i32_25 = arith.constant 0 : i32
    %c0_i32_26 = arith.constant 0 : i32
    %c0_i32_27 = arith.constant 0 : i32
    %21 = tpu.memref_slice %arg6[%c0_i32_25, %c0_i32_26, %c0_i32_27] : memref<1x256x36xbf16, #tpu.memory_space<vmem>> -> memref<1x256x36xbf16, #tpu.memory_space<vmem>>
    %22 = tpu.memref_squeeze %21 : memref<1x256x36xbf16, #tpu.memory_space<vmem>> -> memref<256x36xbf16, #tpu.memory_space<vmem>>
    %c0_28 = arith.constant 0 : index
    %c12 = arith.constant 12 : index
    %23 = vector.load %22[%c0_28, %c12] : memref<256x36xbf16, #tpu.memory_space<vmem>>, vector<240x4xbf16>
    tpu.vector_store %22[%c0_28, %c12], %20 {strides = array<i32>} : memref<256x36xbf16, #tpu.memory_space<vmem>>, vector<240x4xbf16>,
    %c0_29 = arith.constant 0 : index
    %c0_30 = arith.constant 0 : index
    %c0_31 = arith.constant 0 : index
    %c0_32 = arith.constant 0 : index
    %24 = vector.load %arg3[%c0_29, %c0_30, %c0_31, %c0_32] : memref<1x2x18x4xbf16, #tpu.memory_space<vmem>>, vector<1x1x16x4xbf16>
    %25 = vector.shape_cast %24 : vector<1x1x16x4xbf16> to vector<1x16x4xbf16>
    %26 = vector.shape_cast %25 : vector<1x16x4xbf16> to vector<16x4xbf16>
    %c0_i32_33 = arith.constant 0 : i32
    %c0_i32_34 = arith.constant 0 : i32
    %c0_i32_35 = arith.constant 0 : i32
    %27 = tpu.memref_slice %arg6[%c0_i32_33, %c0_i32_34, %c0_i32_35] : memref<1x256x36xbf16, #tpu.memory_space<vmem>> -> memref<1x256x36xbf16, #tpu.memory_space<vmem>>
    %28 = tpu.memref_squeeze %27 : memref<1x256x36xbf16, #tpu.memory_space<vmem>> -> memref<256x36xbf16, #tpu.memory_space<vmem>>
    %c240 = arith.constant 240 : index
    %c12_36 = arith.constant 12 : index
    %29 = vector.load %28[%c240, %c12_36] : memref<256x36xbf16, #tpu.memory_space<vmem>>, vector<16x4xbf16>
    tpu.vector_store %28[%c240, %c12_36], %26 {strides = array<i32>} : memref<256x36xbf16, #tpu.memory_space<vmem>>, vector<16x4xbf16>,
    %c0_37 = arith.constant 0 : index
    %c1_38 = arith.constant 1 : index
    %c1_39 = arith.constant 1 : index
    %c0_40 = arith.constant 0 : index
    %30 = vector.load %arg2[%c0_37, %c1_38, %c1_39, %c0_40] : memref<1x16x18x4xbf16, #tpu.memory_space<vmem>>, vector<1x15x16x4xbf16>
    %31 = vector.shape_cast %30 : vector<1x15x16x4xbf16> to vector<15x16x4xbf16>
    %32 = vector.shape_cast %31 : vector<15x16x4xbf16> to vector<240x4xbf16>
    %c0_i32_41 = arith.constant 0 : i32
    %c0_i32_42 = arith.constant 0 : i32
    %c0_i32_43 = arith.constant 0 : i32
    %33 = tpu.memref_slice %arg6[%c0_i32_41, %c0_i32_42, %c0_i32_43] : memref<1x256x36xbf16, #tpu.memory_space<vmem>> -> memref<1x256x36xbf16, #tpu.memory_space<vmem>>
    %34 = tpu.memref_squeeze %33 : memref<1x256x36xbf16, #tpu.memory_space<vmem>> -> memref<256x36xbf16, #tpu.memory_space<vmem>>
    %c0_44 = arith.constant 0 : index
    %c16 = arith.constant 16 : index
    %35 = vector.load %34[%c0_44, %c16] : memref<256x36xbf16, #tpu.memory_space<vmem>>, vector<240x4xbf16>
    tpu.vector_store %34[%c0_44, %c16], %32 {strides = array<i32>} : memref<256x36xbf16, #tpu.memory_space<vmem>>, vector<240x4xbf16>,
    %c0_45 = arith.constant 0 : index
    %c0_46 = arith.constant 0 : index
    %c1_47 = arith.constant 1 : index
    %c0_48 = arith.constant 0 : index
    %36 = vector.load %arg3[%c0_45, %c0_46, %c1_47, %c0_48] : memref<1x2x18x4xbf16, #tpu.memory_space<vmem>>, vector<1x1x16x4xbf16>
    %37 = vector.shape_cast %36 : vector<1x1x16x4xbf16> to vector<1x16x4xbf16>
    %38 = vector.shape_cast %37 : vector<1x16x4xbf16> to vector<16x4xbf16>
    %c0_i32_49 = arith.constant 0 : i32
    %c0_i32_50 = arith.constant 0 : i32
    %c0_i32_51 = arith.constant 0 : i32
    %39 = tpu.memref_slice %arg6[%c0_i32_49, %c0_i32_50, %c0_i32_51] : memref<1x256x36xbf16, #tpu.memory_space<vmem>> -> memref<1x256x36xbf16, #tpu.memory_space<vmem>>
    %40 = tpu.memref_squeeze %39 : memref<1x256x36xbf16, #tpu.memory_space<vmem>> -> memref<256x36xbf16, #tpu.memory_space<vmem>>
    %c240_52 = arith.constant 240 : index
    %c16_53 = arith.constant 16 : index
    %41 = vector.load %40[%c240_52, %c16_53] : memref<256x36xbf16, #tpu.memory_space<vmem>>, vector<16x4xbf16>
    tpu.vector_store %40[%c240_52, %c16_53], %38 {strides = array<i32>} : memref<256x36xbf16, #tpu.memory_space<vmem>>, vector<16x4xbf16>,
    %c0_54 = arith.constant 0 : index
    %c1_55 = arith.constant 1 : index
    %c2_56 = arith.constant 2 : index
    %c0_57 = arith.constant 0 : index
    %42 = vector.load %arg2[%c0_54, %c1_55, %c2_56, %c0_57] : memref<1x16x18x4xbf16, #tpu.memory_space<vmem>>, vector<1x15x16x4xbf16>
    %43 = vector.shape_cast %42 : vector<1x15x16x4xbf16> to vector<15x16x4xbf16>
    %44 = vector.shape_cast %43 : vector<15x16x4xbf16> to vector<240x4xbf16>
    %c0_i32_58 = arith.constant 0 : i32
    %c0_i32_59 = arith.constant 0 : i32
    %c0_i32_60 = arith.constant 0 : i32
    %45 = tpu.memref_slice %arg6[%c0_i32_58, %c0_i32_59, %c0_i32_60] : memref<1x256x36xbf16, #tpu.memory_space<vmem>> -> memref<1x256x36xbf16, #tpu.memory_space<vmem>>
    %46 = tpu.memref_squeeze %45 : memref<1x256x36xbf16, #tpu.memory_space<vmem>> -> memref<256x36xbf16, #tpu.memory_space<vmem>>
    %c0_61 = arith.constant 0 : index
    %c20 = arith.constant 20 : index
    %47 = vector.load %46[%c0_61, %c20] : memref<256x36xbf16, #tpu.memory_space<vmem>>, vector<240x4xbf16>
    tpu.vector_store %46[%c0_61, %c20], %44 {strides = array<i32>} : memref<256x36xbf16, #tpu.memory_space<vmem>>, vector<240x4xbf16>,
    %c0_62 = arith.constant 0 : index
    %c0_63 = arith.constant 0 : index
    %c2_64 = arith.constant 2 : index
    %c0_65 = arith.constant 0 : index
    %48 = vector.load %arg3[%c0_62, %c0_63, %c2_64, %c0_65] : memref<1x2x18x4xbf16, #tpu.memory_space<vmem>>, vector<1x1x16x4xbf16>
    %49 = vector.shape_cast %48 : vector<1x1x16x4xbf16> to vector<1x16x4xbf16>
    %50 = vector.shape_cast %49 : vector<1x16x4xbf16> to vector<16x4xbf16>
    %c0_i32_66 = arith.constant 0 : i32
    %c0_i32_67 = arith.constant 0 : i32
    %c0_i32_68 = arith.constant 0 : i32
    %51 = tpu.memref_slice %arg6[%c0_i32_66, %c0_i32_67, %c0_i32_68] : memref<1x256x36xbf16, #tpu.memory_space<vmem>> -> memref<1x256x36xbf16, #tpu.memory_space<vmem>>
    %52 = tpu.memref_squeeze %51 : memref<1x256x36xbf16, #tpu.memory_space<vmem>> -> memref<256x36xbf16, #tpu.memory_space<vmem>>
    %c240_69 = arith.constant 240 : index
    %c20_70 = arith.constant 20 : index
    %53 = vector.load %52[%c240_69, %c20_70] : memref<256x36xbf16, #tpu.memory_space<vmem>>, vector<16x4xbf16>
    tpu.vector_store %52[%c240_69, %c20_70], %50 {strides = array<i32>} : memref<256x36xbf16, #tpu.memory_space<vmem>>, vector<16x4xbf16>,
    %c0_71 = arith.constant 0 : index
    %c2_72 = arith.constant 2 : index
    %c0_73 = arith.constant 0 : index
    %c0_74 = arith.constant 0 : index
    %54 = vector.load %arg2[%c0_71, %c2_72, %c0_73, %c0_74] : memref<1x16x18x4xbf16, #tpu.memory_space<vmem>>, vector<1x14x16x4xbf16>
    %55 = vector.shape_cast %54 : vector<1x14x16x4xbf16> to vector<14x16x4xbf16>
    %56 = vector.shape_cast %55 : vector<14x16x4xbf16> to vector<224x4xbf16>
    %c0_i32_75 = arith.constant 0 : i32
    %c0_i32_76 = arith.constant 0 : i32
    %c0_i32_77 = arith.constant 0 : i32
    %57 = tpu.memref_slice %arg6[%c0_i32_75, %c0_i32_76, %c0_i32_77] : memref<1x256x36xbf16, #tpu.memory_space<vmem>> -> memref<1x256x36xbf16, #tpu.memory_space<vmem>>
    %58 = tpu.memref_squeeze %57 : memref<1x256x36xbf16, #tpu.memory_space<vmem>> -> memref<256x36xbf16, #tpu.memory_space<vmem>>
    %c0_78 = arith.constant 0 : index
    %c24 = arith.constant 24 : index
    %59 = vector.load %58[%c0_78, %c24] : memref<256x36xbf16, #tpu.memory_space<vmem>>, vector<224x4xbf16>
    tpu.vector_store %58[%c0_78, %c24], %56 {strides = array<i32>} : memref<256x36xbf16, #tpu.memory_space<vmem>>, vector<224x4xbf16>,
    %c0_79 = arith.constant 0 : index
    %c0_80 = arith.constant 0 : index
    %c0_81 = arith.constant 0 : index
    %c0_82 = arith.constant 0 : index
    %60 = vector.load %arg3[%c0_79, %c0_80, %c0_81, %c0_82] : memref<1x2x18x4xbf16, #tpu.memory_space<vmem>>, vector<1x2x16x4xbf16>
    %61 = vector.shape_cast %60 : vector<1x2x16x4xbf16> to vector<2x16x4xbf16>
    %62 = vector.shape_cast %61 : vector<2x16x4xbf16> to vector<32x4xbf16>
    %c0_i32_83 = arith.constant 0 : i32
    %c0_i32_84 = arith.constant 0 : i32
    %c0_i32_85 = arith.constant 0 : i32
    %63 = tpu.memref_slice %arg6[%c0_i32_83, %c0_i32_84, %c0_i32_85] : memref<1x256x36xbf16, #tpu.memory_space<vmem>> -> memref<1x256x36xbf16, #tpu.memory_space<vmem>>
    %64 = tpu.memref_squeeze %63 : memref<1x256x36xbf16, #tpu.memory_space<vmem>> -> memref<256x36xbf16, #tpu.memory_space<vmem>>
    %c224 = arith.constant 224 : index
    %c24_86 = arith.constant 24 : index
    %65 = vector.load %64[%c224, %c24_86] : memref<256x36xbf16, #tpu.memory_space<vmem>>, vector<32x4xbf16>
    tpu.vector_store %64[%c224, %c24_86], %62 {strides = array<i32>} : memref<256x36xbf16, #tpu.memory_space<vmem>>, vector<32x4xbf16>,
    %c0_87 = arith.constant 0 : index
    %c2_88 = arith.constant 2 : index
    %c1_89 = arith.constant 1 : index
    %c0_90 = arith.constant 0 : index
    %66 = vector.load %arg2[%c0_87, %c2_88, %c1_89, %c0_90] : memref<1x16x18x4xbf16, #tpu.memory_space<vmem>>, vector<1x14x16x4xbf16>
    %67 = vector.shape_cast %66 : vector<1x14x16x4xbf16> to vector<14x16x4xbf16>
    %68 = vector.shape_cast %67 : vector<14x16x4xbf16> to vector<224x4xbf16>
    %c0_i32_91 = arith.constant 0 : i32
    %c0_i32_92 = arith.constant 0 : i32
    %c0_i32_93 = arith.constant 0 : i32
    %69 = tpu.memref_slice %arg6[%c0_i32_91, %c0_i32_92, %c0_i32_93] : memref<1x256x36xbf16, #tpu.memory_space<vmem>> -> memref<1x256x36xbf16, #tpu.memory_space<vmem>>
    %70 = tpu.memref_squeeze %69 : memref<1x256x36xbf16, #tpu.memory_space<vmem>> -> memref<256x36xbf16, #tpu.memory_space<vmem>>
    %c0_94 = arith.constant 0 : index
    %c28 = arith.constant 28 : index
    %71 = vector.load %70[%c0_94, %c28] : memref<256x36xbf16, #tpu.memory_space<vmem>>, vector<224x4xbf16>
    tpu.vector_store %70[%c0_94, %c28], %68 {strides = array<i32>} : memref<256x36xbf16, #tpu.memory_space<vmem>>, vector<224x4xbf16>,
    %c0_95 = arith.constant 0 : index
    %c0_96 = arith.constant 0 : index
    %c1_97 = arith.constant 1 : index
    %c0_98 = arith.constant 0 : index
    %72 = vector.load %arg3[%c0_95, %c0_96, %c1_97, %c0_98] : memref<1x2x18x4xbf16, #tpu.memory_space<vmem>>, vector<1x2x16x4xbf16>
    %73 = vector.shape_cast %72 : vector<1x2x16x4xbf16> to vector<2x16x4xbf16>
    %74 = vector.shape_cast %73 : vector<2x16x4xbf16> to vector<32x4xbf16>
    %c0_i32_99 = arith.constant 0 : i32
    %c0_i32_100 = arith.constant 0 : i32
    %c0_i32_101 = arith.constant 0 : i32
    %75 = tpu.memref_slice %arg6[%c0_i32_99, %c0_i32_100, %c0_i32_101] : memref<1x256x36xbf16, #tpu.memory_space<vmem>> -> memref<1x256x36xbf16, #tpu.memory_space<vmem>>
    %76 = tpu.memref_squeeze %75 : memref<1x256x36xbf16, #tpu.memory_space<vmem>> -> memref<256x36xbf16, #tpu.memory_space<vmem>>
    %c224_102 = arith.constant 224 : index
    %c28_103 = arith.constant 28 : index
    %77 = vector.load %76[%c224_102, %c28_103] : memref<256x36xbf16, #tpu.memory_space<vmem>>, vector<32x4xbf16>
    tpu.vector_store %76[%c224_102, %c28_103], %74 {strides = array<i32>} : memref<256x36xbf16, #tpu.memory_space<vmem>>, vector<32x4xbf16>,
    %c0_104 = arith.constant 0 : index
    %c2_105 = arith.constant 2 : index
    %c2_106 = arith.constant 2 : index
    %c0_107 = arith.constant 0 : index
    %78 = vector.load %arg2[%c0_104, %c2_105, %c2_106, %c0_107] : memref<1x16x18x4xbf16, #tpu.memory_space<vmem>>, vector<1x14x16x4xbf16>
    %79 = vector.shape_cast %78 : vector<1x14x16x4xbf16> to vector<14x16x4xbf16>
    %80 = vector.shape_cast %79 : vector<14x16x4xbf16> to vector<224x4xbf16>
    %c0_i32_108 = arith.constant 0 : i32
    %c0_i32_109 = arith.constant 0 : i32
    %c0_i32_110 = arith.constant 0 : i32
    %81 = tpu.memref_slice %arg6[%c0_i32_108, %c0_i32_109, %c0_i32_110] : memref<1x256x36xbf16, #tpu.memory_space<vmem>> -> memref<1x256x36xbf16, #tpu.memory_space<vmem>>
    %82 = tpu.memref_squeeze %81 : memref<1x256x36xbf16, #tpu.memory_space<vmem>> -> memref<256x36xbf16, #tpu.memory_space<vmem>>
    %c0_111 = arith.constant 0 : index
    %c32 = arith.constant 32 : index
    %83 = vector.load %82[%c0_111, %c32] : memref<256x36xbf16, #tpu.memory_space<vmem>>, vector<224x4xbf16>
    tpu.vector_store %82[%c0_111, %c32], %80 {strides = array<i32>} : memref<256x36xbf16, #tpu.memory_space<vmem>>, vector<224x4xbf16>,
    %c0_112 = arith.constant 0 : index
    %c0_113 = arith.constant 0 : index
    %c2_114 = arith.constant 2 : index
    %c0_115 = arith.constant 0 : index
    %84 = vector.load %arg3[%c0_112, %c0_113, %c2_114, %c0_115] : memref<1x2x18x4xbf16, #tpu.memory_space<vmem>>, vector<1x2x16x4xbf16>
    %85 = vector.shape_cast %84 : vector<1x2x16x4xbf16> to vector<2x16x4xbf16>
    %86 = vector.shape_cast %85 : vector<2x16x4xbf16> to vector<32x4xbf16>
    %c0_i32_116 = arith.constant 0 : i32
    %c0_i32_117 = arith.constant 0 : i32
    %c0_i32_118 = arith.constant 0 : i32
    %87 = tpu.memref_slice %arg6[%c0_i32_116, %c0_i32_117, %c0_i32_118] : memref<1x256x36xbf16, #tpu.memory_space<vmem>> -> memref<1x256x36xbf16, #tpu.memory_space<vmem>>
    %88 = tpu.memref_squeeze %87 : memref<1x256x36xbf16, #tpu.memory_space<vmem>> -> memref<256x36xbf16, #tpu.memory_space<vmem>>
    %c224_119 = arith.constant 224 : index
    %c32_120 = arith.constant 32 : index
    %89 = vector.load %88[%c224_119, %c32_120] : memref<256x36xbf16, #tpu.memory_space<vmem>>, vector<32x4xbf16>
    tpu.vector_store %88[%c224_119, %c32_120], %86 {strides = array<i32>} : memref<256x36xbf16, #tpu.memory_space<vmem>>, vector<32x4xbf16>,
    %c0_121 = arith.constant 0 : index
    %c0_122 = arith.constant 0 : index
    %c0_123 = arith.constant 0 : index
    %90 = vector.load %arg6[%c0_121, %c0_122, %c0_123] : memref<1x256x36xbf16, #tpu.memory_space<vmem>>, vector<1x256x36xbf16>
    %91 = vector.shape_cast %90 : vector<1x256x36xbf16> to vector<256x36xbf16>
    %c0_124 = arith.constant 0 : index
    %c0_125 = arith.constant 0 : index
    %92 = vector.load %arg4[%c0_124, %c0_125] : memref<36x8xbf16, #tpu.memory_space<vmem>>, vector<36x8xbf16>
    %cst = arith.constant dense<0.000000e+00> : vector<256x8xf32>
    %93 = tpu.matmul %91, %92, %cst {dimension_numbers = #tpu.dot_dimension_numbers<[1], [0], [0], [1], [0, 0, 1, 1], [], []>} : vector<256x36xbf16>, vector<36x8xbf16>, vector<256x8xf32> -> vector<256x8xf32>
    %cst_126 = arith.constant 0.000000e+00 : f32
    %94 = vector.broadcast %cst_126 : f32 to vector<256x8xf32>
    %95 = arith.maximumf %93, %94 : vector<256x8xf32>
    %96 = vector.shape_cast %95 : vector<256x8xf32> to vector<1x16x16x8xf32>
    %97 = arith.truncf %96 : vector<1x16x16x8xf32> to vector<1x16x16x8xbf16>
    %c0_127 = arith.constant 0 : index
    %c0_128 = arith.constant 0 : index
    %c0_129 = arith.constant 0 : index
    %c0_130 = arith.constant 0 : index
    %98 = vector.load %arg5[%c0_127, %c0_128, %c0_129, %c0_130] : memref<1x16x16x8xbf16, #tpu.memory_space<vmem>>, vector<1x16x16x8xbf16>
    tpu.vector_store %arg5[%c0_127, %c0_128, %c0_129, %c0_130], %97 {strides = array<i32>} : memref<1x16x16x8xbf16, #tpu.memory_space<vmem>>, vector<1x16x16x8xbf16>,
    return
  }
  func.func @transform_0(%arg0: i32, %arg1: i32) -> (i32, i32, i32, i32) {
    %c0_i32 = arith.constant 0 : i32
    %c0_i32_0 = arith.constant 0 : i32
    %c0_i32_1 = arith.constant 0 : i32
    return %arg0, %arg1, %c0_i32, %c0_i32_0 : i32, i32, i32, i32
  }
  func.func @transform_1(%arg0: i32, %arg1: i32) -> (i32, i32, i32, i32) {
    %c1_i32 = arith.constant 1 : i32
    %0 = arith.addi %arg1, %c1_i32 : i32
    %c8_i32 = arith.constant 8 : i32
    %1 = arith.muli %0, %c8_i32 : i32
    %c0_i32 = arith.constant 0 : i32
    %c0_i32_0 = arith.constant 0 : i32
    %c0_i32_1 = arith.constant 0 : i32
    return %arg0, %1, %c0_i32, %c0_i32_0 : i32, i32, i32, i32
  }
  func.func @transform_2(%arg0: i32, %arg1: i32) -> (i32, i32) {
    %c0_i32 = arith.constant 0 : i32
    %c0_i32_0 = arith.constant 0 : i32
    %c0_i32_1 = arith.constant 0 : i32
    return %c0_i32, %c0_i32_0 : i32, i32
  }
  func.func @transform_3(%arg0: i32, %arg1: i32) -> (i32, i32, i32, i32) {
    %c0_i32 = arith.constant 0 : i32
    %c0_i32_0 = arith.constant 0 : i32
    %c0_i32_1 = arith.constant 0 : i32
    return %arg0, %arg1, %c0_i32, %c0_i32_0 : i32, i32, i32, i32
  }
}

</mosaic_0001>

<llo_original>
// kernel: conv_block_forward.1
$region0: #{conv_block_forward.1}
  #allocation0 [shape = 'u32[]', space=smem, size = 0x4, offset = 0x4, fixed_abs, tag = 'smem constant byte address 0x4 - core index']
  #allocation1 [shape = 'u32[144,128]{1,0:T(1,128)}', space=vmem, size = 0x12000, scoped, tag = 'internal scratch']
  #allocation2 [shape = 'bf16[1,256,36]{2,1,0:T(8,128)(2,1)}', space=vmem, size = 0x10000, scoped, tag = 'scratch operand']
  %s0 = inlined_call_operand.vmem [shape: bf16[2,18,18,4], index: 0, kind: input, shape index: {}, may-alias: {0,1}]
  %s1 = inlined_call_operand.vmem [shape: bf16[2,18,18,4], index: 1, kind: input, shape index: {}, may-alias: {0,1}]
  %s2 = inlined_call_operand.vmem [shape: bf16[36,8], index: 2, kind: input, shape index: {}]
  %s3 = inlined_call_operand.vmem [shape: bf16[2,16,16,8], index: 3, kind: output, shape index: {}]
  %s4 = sld [smem:[#allocation0]]
  $region45: #{conv_block_forward.1} parent=0
    _
  %s6 = ssub.s32 1, %s4
  %s7 = scalar_select 0, %s6, %s4
  loop: start=0, step=1, limit=4
  $region2: #{conv_block_forward.1} parent=0 // loop_pre_header
    _
  $region3: #{conv_block_forward.1} parent=0 // loop_header
    %s9 = sphi 0, %s13
    %p10 = scmp.ge.s32.totalorder %s9, 4
    %s16 = sphi 0, %s28
    %s17 = sphi 0, %s24
    %s18 = sphi 0, %s16
    %s19 = sphi 0, %s17
    %s20 = sphi 0, %s18
    %s21 = sphi 0, %s19
    %s33 = sphi 0, %s35
    %s36 = sphi 0, %s33
    %s37 = sphi 0, %s36
    %s53 = sphi 0, %s37
    %s65 = sphi 0, %s67
    %s68 = sphi 0, %s65
    %s69 = sphi 0, %s68
    %s85 = sphi 0, %s69
    %s89 = sphi 0, %s89
    %s91 = sphi 0, %s89
    %s92 = sphi 0, %s91
    %s106 = sphi 0, %s92
    %s114 = sphi 0, %s116
    %s117 = sphi 0, %s114
    %s118 = sphi 0, %s117
    %s134 = sphi 0, %s118
  $region4: #{conv_block_forward.1} parent=0 // loop_header_branch
    %12 = sbr.rel (%p10) target = $region8
  $region5: #{conv_block_forward.1} parent=0 // loop_body
    %s14 = ssub.s32 %s9, 1
    %s15 = ssub.s32 %s9, 2
    %s22 = sadd.s32 1, %s17
    %p23 = scmp.ge.s32.totalorder %s22, 1
    %s24 = scalar_select %p23, 0, %s22
    %s25 = sadd.s32 1, %s16
    %s26 = scalar_select %p23, %s25, %s16
    %p27 = scmp.ge.s32.totalorder %s26, 2
    %s28 = scalar_select %p27, 0, %s26
    %s29 = ssub.s32 %s16, %s28
    %s30 = ssub.s32 %s17, %s24
    %s31 = sor.u32 %s29, %s30
    %p32 = scmp.eq.s32.totalorder %s31, 0
    %s34 = sadd.s32 %s33, 1
    %s35 = scalar_select %p32, %s33, %s34
    %p38 = pneg %p32
    %p39 = scmp.eq.s32.totalorder %s9, 1
    %p40 = por %p38, %p39
    %p41 = scmp.ne.s32.totalorder %s33, %s36
    %p42 = scmp.eq.s32.totalorder %s9, 0
    %p43 = por %p41, %p42
    %p44 = scmp.ne.s32.totalorder %s33, %s36
    %p45 = scmp.eq.s32.totalorder %s14, 1
    %p46 = por %p44, %p45
    %p47 = scmp.ne.s32.totalorder %s36, %s37
    %p48 = scmp.eq.s32.totalorder %s14, 0
    %p49 = por %p47, %p48
    %p50 = scmp.ne.s32.totalorder %s36, %s37
    %p51 = scmp.eq.s32.totalorder %s15, 1
    %p52 = por %p50, %p51
    %p54 = scmp.ne.s32.totalorder %s37, %s53
    %p55 = scmp.eq.s32.totalorder %s15, 0
    %p56 = por %p54, %p55
    %s57 = sadd.s32 %s17, 1
    %s58 = smul.u32 %s57, 8
    %s59 = sadd.s32 %s24, 1
    %s60 = smul.u32 %s59, 8
    %s61 = ssub.s32 %s16, %s28
    %s62 = ssub.s32 %s58, %s60
    %s63 = sor.u32 %s61, %s62
    %p64 = scmp.eq.s32.totalorder %s63, 0
    %s66 = sadd.s32 %s65, 1
    %s67 = scalar_select %p64, %s65, %s66
    %p70 = pneg %p64
    %p71 = scmp.eq.s32.totalorder %s9, 1
    %p72 = por %p70, %p71
    %p73 = scmp.ne.s32.totalorder %s65, %s68
    %p74 = scmp.eq.s32.totalorder %s9, 0
    %p75 = por %p73, %p74
    %p76 = scmp.ne.s32.totalorder %s65, %s68
    %p77 = scmp.eq.s32.totalorder %s14, 1
    %p78 = por %p76, %p77
    %p79 = scmp.ne.s32.totalorder %s68, %s69
    %p80 = scmp.eq.s32.totalorder %s14, 0
    %p81 = por %p79, %p80
    %p82 = scmp.ne.s32.totalorder %s68, %s69
    %p83 = scmp.eq.s32.totalorder %s15, 1
    %p84 = por %p82, %p83
    %p86 = scmp.ne.s32.totalorder %s69, %s85
    %p87 = scmp.eq.s32.totalorder %s15, 0
    %p88 = por %p86, %p87
    %s90 = sadd.s32 %s89, 1
    %p93 = scmp.eq.s32.totalorder %s9, 1
    %p94 = scmp.ne.s32.totalorder %s89, %s91
    %p95 = scmp.eq.s32.totalorder %s9, 0
    %p96 = por %p94, %p95
    %p97 = scmp.ne.s32.totalorder %s89, %s91
    %p98 = scmp.eq.s32.totalorder %s14, 1
    %p99 = por %p97, %p98
    %p100 = scmp.ne.s32.totalorder %s91, %s92
    %p101 = scmp.eq.s32.totalorder %s14, 0
    %p102 = por %p100, %p101
    %p103 = scmp.ne.s32.totalorder %s91, %s92
    %p104 = scmp.eq.s32.totalorder %s15, 1
    %p105 = por %p103, %p104
    %p107 = scmp.ne.s32.totalorder %s92, %s106
    %p108 = scmp.eq.s32.totalorder %s15, 0
    %p109 = por %p107, %p108
    %s110 = ssub.s32 %s16, %s28
    %s111 = ssub.s32 %s17, %s24
    %s112 = sor.u32 %s110, %s111
    %p113 = scmp.eq.s32.totalorder %s112, 0
    %s115 = sadd.s32 %s114, 1
    %s116 = scalar_select %p113, %s114, %s115
    %p119 = pneg %p113
    %p120 = scmp.eq.s32.totalorder %s9, 1
    %p121 = por %p119, %p120
    %p122 = scmp.ne.s32.totalorder %s114, %s117
    %p123 = scmp.eq.s32.totalorder %s9, 0
    %p124 = por %p122, %p123
    %p125 = scmp.ne.s32.totalorder %s114, %s117
    %p126 = scmp.eq.s32.totalorder %s14, 1
    %p127 = por %p125, %p126
    %p128 = scmp.ne.s32.totalorder %s117, %s118
    %p129 = scmp.eq.s32.totalorder %s14, 0
    %p130 = por %p128, %p129
    %p131 = scmp.ne.s32.totalorder %s117, %s118
    %p132 = scmp.eq.s32.totalorder %s15, 1
    %p133 = por %p131, %p132
    %p135 = scmp.ne.s32.totalorder %s118, %s134
    %p136 = scmp.eq.s32.totalorder %s15, 0
    %p137 = por %p135, %p136
    %p138 = scmp.le.s32.totalorder 1, %s9
    %p139 = scmp.lt.s32.totalorder %s9, 3
    %p140 = pnand %p138, %p139
    %p141 = pneg %p140
    // Predicated region
    $region9: #{conv_block_forward.1} parent=5 // pred_check
      _
    $region10: #{conv_block_forward.1} parent=5 // pred_check_branch
      %143 = sbr.rel (%p140) target = $region12
    $region11: #{conv_block_forward.1} parent=5 // pred_region
      %s144 = ssub.s32 %s9, 1
      // Predicated region
      $region13: #{conv_block_forward.1} parent=11 // pred_check
        %p145 = pneg %p102
      $region14: #{conv_block_forward.1} parent=11 // pred_check_branch
        %147 = sbr.rel (%p145) target = $region16
      $region15: #{conv_block_forward.1} parent=11 // pred_region
        _
      $region16: #{conv_block_forward.1} parent=11 // pred_fallthru
        _
    $region12: #{conv_block_forward.1} parent=5 // pred_fallthru
      _
    %p148 = scmp.lt.s32.totalorder %s9, 2
    // Predicated region
    $region17: #{conv_block_forward.1} parent=5 // pred_check
      %p149 = pneg %p148
    $region18: #{conv_block_forward.1} parent=5 // pred_check_branch
      %151 = sbr.rel (%p149) target = $region20
    $region19: #{conv_block_forward.1} parent=5 // pred_region
      // Predicated region
      $region21: #{conv_block_forward.1} parent=19 // pred_check
        %p152 = pneg %p43
      $region22: #{conv_block_forward.1} parent=19 // pred_check_branch
        %154 = sbr.rel (%p152) target = $region24
      $region23: #{conv_block_forward.1} parent=19 // pred_region
        %s155 = smul.u32 16, %s17
        %s156 = ssub.s32 18, %s155
        %p157 = scmp.lt.s32.totalorder %s156, 16
        %s158 = scalar_select %p157, %s156, 16
        %s159 = smul.u32 64, %s158
        %s160 = smul.u32 %s159, 3
        %p161 = scmp.lt.s32.totalorder %s16, 1
        %s162 = scalar_select %p161, %s16, 1
        %p163 = scmp.lt.s32.totalorder %s155, 17
        %s164 = scalar_select %p163, %s155, 17
        %s165 = smul.addr %s164, 3
        %s166 = smul.addr %s162, 54
        %s167 = sadd.s32 %s165, %s166
        %s168 = smul.addr %s167, 4
        %s169 = scalar_lea.vmem %s0, %s168
        %s170 = smul.u32 16, %s17
        %s171 = ssub.s32 18, %s170
        %p172 = scmp.lt.s32.totalorder %s171, 16
        %s173 = scalar_select %p172, %s171, 16
        %s174 = smul.u32 64, %s173
        %s175 = smul.u32 %s174, 3
      $region24: #{conv_block_forward.1} parent=19 // pred_fallthru
        _
      // Predicated region
      $region25: #{conv_block_forward.1} parent=19 // pred_check
        %p176 = pneg %p75
      $region26: #{conv_block_forward.1} parent=19 // pred_check_branch
        %178 = sbr.rel (%p176) target = $region28
      $region27: #{conv_block_forward.1} parent=19 // pred_region
        %s179 = sadd.s32 %s17, 1
        %s180 = smul.u32 %s179, 8
        %s181 = smul.u32 2, %s180
        %p182 = scmp.lt.s32.totalorder %s16, 1
        %s183 = scalar_select %p182, %s16, 1
        %p184 = scmp.lt.s32.totalorder %s181, 17
        %s185 = scalar_select %p184, %s181, 17
        %s186 = smul.addr %s185, 3
        %s187 = smul.addr %s183, 54
        %s188 = sadd.s32 %s186, %s187
        %s189 = smul.addr %s188, 4
        %s190 = scalar_lea.vmem %s1, %s189
        %s191 = sadd.s32 %s17, 1
        %s192 = smul.u32 %s191, 8
        %s193 = smul.u32 2, %s192
      $region28: #{conv_block_forward.1} parent=19 // pred_fallthru
        _
    $region20: #{conv_block_forward.1} parent=5 // pred_fallthru
      _
    %p194 = scmp.le.s32.totalorder 1, %s9
    %p195 = scmp.lt.s32.totalorder %s9, 3
    %p196 = pnand %p194, %p195
    %p197 = pneg %p196
    // Predicated region
    $region29: #{conv_block_forward.1} parent=5 // pred_check
      _
    $region30: #{conv_block_forward.1} parent=5 // pred_check_branch
      %199 = sbr.rel (%p196) target = $region32
    $region31: #{conv_block_forward.1} parent=5 // pred_region
      %s200 = ssub.s32 %s9, 1
      %s201 = smul.u32 16, %s19
      %s202 = ssub.s32 18, %s201
      %p203 = scmp.lt.s32.totalorder %s202, 16
      %s204 = scalar_select %p203, %s202, 16
      %s205 = smul.u32 64, %s204
      %s206 = smul.u32 %s205, 3
      %p207 = scmp.lt.s32.totalorder %s18, 1
      %s208 = scalar_select %p207, %s18, 1
      %p209 = scmp.lt.s32.totalorder %s201, 17
      %s210 = scalar_select %p209, %s201, 17
      %s211 = smul.addr %s210, 3
      %s212 = smul.addr %s208, 54
      %s213 = sadd.s32 %s211, %s212
      %s214 = smul.addr %s213, 4
      %s215 = scalar_lea.vmem %s0, %s214
      %p216 = pneg %p49
      %p217 = pneg %p46
      %s218 = sadd.s32 %s19, 1
      %s219 = smul.u32 %s218, 8
      %s220 = smul.u32 2, %s219
      %p221 = scmp.lt.s32.totalorder %s18, 1
      %s222 = scalar_select %p221, %s18, 1
      %p223 = scmp.lt.s32.totalorder %s220, 17
      %s224 = scalar_select %p223, %s220, 17
      %s225 = smul.addr %s224, 3
      %s226 = smul.addr %s222, 54
      %s227 = sadd.s32 %s225, %s226
      %s228 = smul.addr %s227, 4
      %s229 = scalar_lea.vmem %s1, %s228
      %p230 = pneg %p81
      %p231 = pneg %p78
      %p232 = pneg %p102
      %p233 = pneg %p99
      %p234 = pneg %p130
      %p235 = pneg %p127
      %s236 = smul.u32 16, %s19
      %p237 = scmp.lt.s32.totalorder %s18, 1
      %s238 = scalar_select %p237, %s18, 1
      %p239 = scmp.lt.s32.totalorder %s236, 15
      %s240 = scalar_select %p239, %s236, 15
      %s241 = smul.addr %s240, 2
      %s242 = smul.addr %s238, 32
      %s243 = sadd.s32 %s241, %s242
      %s244 = smul.addr %s243, 4
      %s245 = scalar_lea.vmem %s3, %s244
      %s246 = smul.u32 16, %s19
      %s247 = ssub.s32 18, %s246
      %p248 = scmp.lt.s32.totalorder %s247, 16
      %s249 = scalar_select %p248, %s247, 16
      %s250 = smul.u32 64, %s249
      %s251 = smul.u32 %s250, 3
      %p252 = scmp.lt.s32.totalorder %s18, 1
      %s253 = scalar_select %p252, %s18, 1
      %p254 = scmp.lt.s32.totalorder %s246, 17
      %s255 = scalar_select %p254, %s246, 17
      %s256 = smul.addr %s255, 3
      %s257 = smul.addr %s253, 54
      %s258 = sadd.s32 %s256, %s257
      %s259 = smul.addr %s258, 4
      %s260 = scalar_lea.vmem %s0, %s259
      %s261 = smul.u32 16, %s19
      %s262 = ssub.s32 18, %s261
      %p263 = scmp.lt.s32.totalorder %s262, 16
      %s264 = scalar_select %p263, %s262, 16
      %s265 = smul.u32 64, %s264
      %s266 = smul.u32 %s265, 3
      %s267 = sadd.s32 %s19, 1
      %s268 = smul.u32 %s267, 8
      %s269 = smul.u32 2, %s268
      %p270 = scmp.lt.s32.totalorder %s18, 1
      %s271 = scalar_select %p270, %s18, 1
      %p272 = scmp.lt.s32.totalorder %s269, 17
      %s273 = scalar_select %p272, %s269, 17
      %s274 = smul.addr %s273, 3
      %s275 = smul.addr %s271, 54
      %s276 = sadd.s32 %s274, %s275
      %s277 = smul.addr %s276, 4
      %s278 = scalar_lea.vmem %s1, %s277
      %s279 = sadd.s32 %s19, 1
      %s280 = smul.u32 %s279, 8
      %s281 = smul.u32 2, %s280
      %s282 = smul.u32 16, %s19
      %p283 = scmp.lt.s32.totalorder %s18, 1
      %s284 = scalar_select %p283, %s18, 1
      %p285 = scmp.lt.s32.totalorder %s282, 15
      %s286 = scalar_select %p285, %s282, 15
      %s287 = smul.addr %s286, 2
      %s288 = smul.addr %s284, 32
      %s289 = sadd.s32 %s287, %s288
      %s290 = smul.addr %s289, 4
      %s291 = scalar_lea.vmem %s3, %s290
      %s292 = smul.u32 16, %s19
      %v294 = vld [vmem:[%s260] sm:$0xf]
      %v295 = vld [vmem:[%s260 + $0x4] sm:$0xf]
      %v296 = vld [vmem:[%s260 + $0xc] sm:$0xf]
      %v297 = vld [vmem:[%s260 + $0x10] sm:$0xf]
      %v298 = vld [vmem:[%s260 + $0x18] sm:$0xf]
      %v299 = vld [vmem:[%s260 + $0x1c] sm:$0xf]
      %v300 = vld [vmem:[%s260 + $0x24] sm:$0xf]
      %v301 = vld [vmem:[%s260 + $0x28] sm:$0xf]
      %v302 = vld [vmem:[%s260 + $0x30] sm:$0xf]
      %v303 = vld [vmem:[%s260 + $0x34] sm:$0xf]
      %v304 = vld [vmem:[%s260 + $0x3c] sm:$0xf]
      %v305 = vld [vmem:[%s260 + $0x40] sm:$0xf]
      %v306 = vld [vmem:[%s260 + $0x48] sm:$0xf]
      %v307 = vld [vmem:[%s260 + $0x4c] sm:$0xf]
      %v308 = vld [vmem:[%s260 + $0x54] sm:$0xf]
      %v309 = vld [vmem:[%s260 + $0x58] sm:$0xf]
      %v310 = vld [vmem:[%s260 + $0x60] sm:$0xf]
      %v311 = vld [vmem:[%s260 + $0x64] sm:$0xf]
      %v312 = vld [vmem:[%s260 + $0x6c] sm:$0xf]
      %v313 = vld [vmem:[%s260 + $0x70] sm:$0xf]
      %v314 = vld [vmem:[%s260 + $0x78] sm:$0xf]
      %v315 = vld [vmem:[%s260 + $0x7c] sm:$0xf]
      %v316 = vld [vmem:[%s260 + $0x84] sm:$0xf]
      %v317 = vld [vmem:[%s260 + $0x88] sm:$0xf]
      %v318 = vld [vmem:[%s260 + $0x90] sm:$0xf]
      %v319 = vld [vmem:[%s260 + $0x94] sm:$0xf]
      %v320 = vld [vmem:[%s260 + $0x9c] sm:$0xf]
      %v321 = vld [vmem:[%s260 + $0xa0] sm:$0xf]
      %v322 = vld [vmem:[%s260 + $0xa8] sm:$0xf]
      %v323 = vld [vmem:[%s260 + $0xac] sm:$0xf]
      %v324 = vld [vmem:[%s260 + $0xb4] sm:$0xf]
      %v325 = vld [vmem:[%s260 + $0xb8] sm:$0xf]
      %vm326 = vcmask 27648
      %327 = vst.msk [vmem:[#allocation2] sm:$0xf] %vm326, %v294
      %328 = vst.msk [vmem:[#allocation2 + $0x4] sm:$0xf] %vm326, %v295
      %329 = vst.msk [vmem:[#allocation2 + $0x8] sm:$0xf] %vm326, %v296
      %330 = vst.msk [vmem:[#allocation2 + $0xc] sm:$0xf] %vm326, %v297
      %331 = vst.msk [vmem:[#allocation2 + $0x10] sm:$0xf] %vm326, %v298
      %332 = vst.msk [vmem:[#allocation2 + $0x14] sm:$0xf] %vm326, %v299
      %333 = vst.msk [vmem:[#allocation2 + $0x18] sm:$0xf] %vm326, %v300
      %334 = vst.msk [vmem:[#allocation2 + $0x1c] sm:$0xf] %vm326, %v301
      %335 = vst.msk [vmem:[#allocation2 + $0x20] sm:$0xf] %vm326, %v302
      %336 = vst.msk [vmem:[#allocation2 + $0x24] sm:$0xf] %vm326, %v303
      %337 = vst.msk [vmem:[#allocation2 + $0x28] sm:$0xf] %vm326, %v304
      %338 = vst.msk [vmem:[#allocation2 + $0x2c] sm:$0xf] %vm326, %v305
      %339 = vst.msk [vmem:[#allocation2 + $0x30] sm:$0xf] %vm326, %v306
      %340 = vst.msk [vmem:[#allocation2 + $0x34] sm:$0xf] %vm326, %v307
      %341 = vst.msk [vmem:[#allocation2 + $0x38] sm:$0xf] %vm326, %v308
      %342 = vst.msk [vmem:[#allocation2 + $0x3c] sm:$0xf] %vm326, %v309
      %343 = vst.msk [vmem:[#allocation2 + $0x40] sm:$0xf] %vm326, %v310
      %344 = vst.msk [vmem:[#allocation2 + $0x44] sm:$0xf] %vm326, %v311
      %345 = vst.msk [vmem:[#allocation2 + $0x48] sm:$0xf] %vm326, %v312
      %346 = vst.msk [vmem:[#allocation2 + $0x4c] sm:$0xf] %vm326, %v313
      %347 = vst.msk [vmem:[#allocation2 + $0x50] sm:$0xf] %vm326, %v314
      %348 = vst.msk [vmem:[#allocation2 + $0x54] sm:$0xf] %vm326, %v315
      %349 = vst.msk [vmem:[#allocation2 + $0x58] sm:$0xf] %vm326, %v316
      %350 = vst.msk [vmem:[#allocation2 + $0x5c] sm:$0xf] %vm326, %v317
      %351 = vst.msk [vmem:[#allocation2 + $0x60] sm:$0xf] %vm326, %v318
      %352 = vst.msk [vmem:[#allocation2 + $0x64] sm:$0xf] %vm326, %v319
      %353 = vst.msk [vmem:[#allocation2 + $0x68] sm:$0xf] %vm326, %v320
      %354 = vst.msk [vmem:[#allocation2 + $0x6c] sm:$0xf] %vm326, %v321
      %355 = vst.msk [vmem:[#allocation2 + $0x70] sm:$0xf] %vm326, %v322
      %356 = vst.msk [vmem:[#allocation2 + $0x74] sm:$0xf] %vm326, %v323
      %357 = vst.msk [vmem:[#allocation2 + $0x78] sm:$0xf] %vm326, %v324
      %358 = vst.msk [vmem:[#allocation2 + $0x7c] sm:$0xf] %vm326, %v325
      %v359 = vld [vmem:[%s260] sm:$0xf]
      %v360 = vld [vmem:[%s260 + $0x4] sm:$0xf]
      %v361 = vld [vmem:[%s260 + $0x8] sm:$0x1]
      %v362 = vld [vmem:[%s260 + $0xc] sm:$0xf]
      %v363 = vld [vmem:[%s260 + $0x10] sm:$0xf]
      %v364 = vld [vmem:[%s260 + $0x14] sm:$0x1]
      %v365 = vld [vmem:[%s260 + $0x18] sm:$0xf]
      %v366 = vld [vmem:[%s260 + $0x1c] sm:$0xf]
      %v367 = vld [vmem:[%s260 + $0x20] sm:$0x1]
      %v368 = vld [vmem:[%s260 + $0x24] sm:$0xf]
      %v369 = vld [vmem:[%s260 + $0x28] sm:$0xf]
      %v370 = vld [vmem:[%s260 + $0x2c] sm:$0x1]
      %v371 = vld [vmem:[%s260 + $0x30] sm:$0xf]
      %v372 = vld [vmem:[%s260 + $0x34] sm:$0xf]
      %v373 = vld [vmem:[%s260 + $0x38] sm:$0x1]
      %v374 = vld [vmem:[%s260 + $0x3c] sm:$0xf]
      %v375 = vld [vmem:[%s260 + $0x40] sm:$0xf]
      %v376 = vld [vmem:[%s260 + $0x44] sm:$0x1]
      %v377 = vld [vmem:[%s260 + $0x48] sm:$0xf]
      %v378 = vld [vmem:[%s260 + $0x4c] sm:$0xf]
      %v379 = vld [vmem:[%s260 + $0x50] sm:$0x1]
      %v380 = vld [vmem:[%s260 + $0x54] sm:$0xf]
      %v381 = vld [vmem:[%s260 + $0x58] sm:$0xf]
      %v382 = vld [vmem:[%s260 + $0x5c] sm:$0x1]
      %v383 = vld [vmem:[%s260 + $0x60] sm:$0xf]
      %v384 = vld [vmem:[%s260 + $0x64] sm:$0xf]
      %v385 = vld [vmem:[%s260 + $0x68] sm:$0x1]
      %v386 = vld [vmem:[%s260 + $0x6c] sm:$0xf]
      %v387 = vld [vmem:[%s260 + $0x70] sm:$0xf]
      %v388 = vld [vmem:[%s260 + $0x74] sm:$0x1]
      %v389 = vld [vmem:[%s260 + $0x78] sm:$0xf]
      %v390 = vld [vmem:[%s260 + $0x7c] sm:$0xf]
      %v391 = vld [vmem:[%s260 + $0x80] sm:$0x1]
      %v392 = vld [vmem:[%s260 + $0x84] sm:$0xf]
      %v393 = vld [vmem:[%s260 + $0x88] sm:$0xf]
      %v394 = vld [vmem:[%s260 + $0x8c] sm:$0x1]
      %v395 = vld [vmem:[%s260 + $0x90] sm:$0xf]
      %v396 = vld [vmem:[%s260 + $0x94] sm:$0xf]
      %v397 = vld [vmem:[%s260 + $0x98] sm:$0x1]
      %v398 = vld [vmem:[%s260 + $0x9c] sm:$0xf]
      %v399 = vld [vmem:[%s260 + $0xa0] sm:$0xf]
      %v400 = vld [vmem:[%s260 + $0xa4] sm:$0x1]
      %v401 = vld [vmem:[%s260 + $0xa8] sm:$0xf]
      %v402 = vld [vmem:[%s260 + $0xac] sm:$0xf]
      %v403 = vld [vmem:[%s260 + $0xb0] sm:$0x1]
      %v404 = vld [vmem:[%s260 + $0xb4] sm:$0xf]
      %v405 = vld [vmem:[%s260 + $0xb8] sm:$0xf]
      %v406 = vld [vmem:[%s260 + $0xbc] sm:$0x1]
      %vm407 = vsmask.f32 3328
      %vm408 = vsmask.f32 7440
      %vm409 = vmor %vm407, %vm408
      %v411 = vshrl.u32 %v359, 16
      %v413 = vrot.slane %v411, 4
      %v414 = vshll.u32 %v359, 16
      %v416 = vrot.slane %v414, 5
      %v417 = vor.u32 %v413, %v416
      %v418 = vrot.slane %v417, 4
      %v420 = vshll.u32 %v360, 16
      %v422 = vrot.slane %v420, 5
      %v423 = vsel %vm409, %v418, %v422
      %v424 = vshrl.u32 %v360, 16
      %v426 = vrot.slane %v424, 4
      %v427 = vor.u32 %v426, %v422
      %v428 = vrot.slane %v427, 4
      %v430 = vshll.u32 %v361, 16
      %v432 = vrot.slane %v430, 5
      %v433 = vsel %vm409, %v428, %v432
      %v435 = vshrl.u32 %v362, 16
      %v437 = vrot.slane %v435, 4
      %v438 = vshll.u32 %v362, 16
      %v440 = vrot.slane %v438, 5
      %v441 = vor.u32 %v437, %v440
      %v442 = vrot.slane %v441, 4
      %v444 = vshll.u32 %v363, 16
      %v446 = vrot.slane %v444, 5
      %v447 = vsel %vm409, %v442, %v446
      %v448 = vshrl.u32 %v363, 16
      %v450 = vrot.slane %v448, 4
      %v451 = vor.u32 %v450, %v446
      %v452 = vrot.slane %v451, 4
      %v454 = vshll.u32 %v364, 16
      %v456 = vrot.slane %v454, 5
      %v457 = vsel %vm409, %v452, %v456
      %v459 = vshrl.u32 %v365, 16
      %v461 = vrot.slane %v459, 4
      %v462 = vshll.u32 %v365, 16
      %v464 = vrot.slane %v462, 5
      %v465 = vor.u32 %v461, %v464
      %v466 = vrot.slane %v465, 4
      %v468 = vshll.u32 %v366, 16
      %v470 = vrot.slane %v468, 5
      %v471 = vsel %vm409, %v466, %v470
      %v472 = vshrl.u32 %v366, 16
      %v474 = vrot.slane %v472, 4
      %v475 = vor.u32 %v474, %v470
      %v476 = vrot.slane %v475, 4
      %v478 = vshll.u32 %v367, 16
      %v480 = vrot.slane %v478, 5
      %v481 = vsel %vm409, %v476, %v480
      %v483 = vshrl.u32 %v368, 16
      %v485 = vrot.slane %v483, 4
      %v486 = vshll.u32 %v368, 16
      %v488 = vrot.slane %v486, 5
      %v489 = vor.u32 %v485, %v488
      %v490 = vrot.slane %v489, 4
      %v492 = vshll.u32 %v369, 16
      %v494 = vrot.slane %v492, 5
      %v495 = vsel %vm409, %v490, %v494
      %v496 = vshrl.u32 %v369, 16
      %v498 = vrot.slane %v496, 4
      %v499 = vor.u32 %v498, %v494
      %v500 = vrot.slane %v499, 4
      %v502 = vshll.u32 %v370, 16
      %v504 = vrot.slane %v502, 5
      %v505 = vsel %vm409, %v500, %v504
      %v507 = vshrl.u32 %v371, 16
      %v509 = vrot.slane %v507, 4
      %v510 = vshll.u32 %v371, 16
      %v512 = vrot.slane %v510, 5
      %v513 = vor.u32 %v509, %v512
      %v514 = vrot.slane %v513, 4
      %v516 = vshll.u32 %v372, 16
      %v518 = vrot.slane %v516, 5
      %v519 = vsel %vm409, %v514, %v518
      %v520 = vshrl.u32 %v372, 16
      %v522 = vrot.slane %v520, 4
      %v523 = vor.u32 %v522, %v518
      %v524 = vrot.slane %v523, 4
      %v526 = vshll.u32 %v373, 16
      %v528 = vrot.slane %v526, 5
      %v529 = vsel %vm409, %v524, %v528
      %v531 = vshrl.u32 %v374, 16
      %v533 = vrot.slane %v531, 4
      %v534 = vshll.u32 %v374, 16
      %v536 = vrot.slane %v534, 5
      %v537 = vor.u32 %v533, %v536
      %v538 = vrot.slane %v537, 4
      %v540 = vshll.u32 %v375, 16
      %v542 = vrot.slane %v540, 5
      %v543 = vsel %vm409, %v538, %v542
      %v544 = vshrl.u32 %v375, 16
      %v546 = vrot.slane %v544, 4
      %v547 = vor.u32 %v546, %v542
      %v548 = vrot.slane %v547, 4
      %v550 = vshll.u32 %v376, 16
      %v552 = vrot.slane %v550, 5
      %v553 = vsel %vm409, %v548, %v552
      %v555 = vshrl.u32 %v377, 16
      %v557 = vrot.slane %v555, 4
      %v558 = vshll.u32 %v377, 16
      %v560 = vrot.slane %v558, 5
      %v561 = vor.u32 %v557, %v560
      %v562 = vrot.slane %v561, 4
      %v564 = vshll.u32 %v378, 16
      %v566 = vrot.slane %v564, 5
      %v567 = vsel %vm409, %v562, %v566
      %v568 = vshrl.u32 %v378, 16
      %v570 = vrot.slane %v568, 4
      %v571 = vor.u32 %v570, %v566
      %v572 = vrot.slane %v571, 4
      %v574 = vshll.u32 %v379, 16
      %v576 = vrot.slane %v574, 5
      %v577 = vsel %vm409, %v572, %v576
      %v579 = vshrl.u32 %v380, 16
      %v581 = vrot.slane %v579, 4
      %v582 = vshll.u32 %v380, 16
      %v584 = vrot.slane %v582, 5
      %v585 = vor.u32 %v581, %v584
      %v586 = vrot.slane %v585, 4
      %v588 = vshll.u32 %v381, 16
      %v590 = vrot.slane %v588, 5
      %v591 = vsel %vm409, %v586, %v590
      %v592 = vshrl.u32 %v381, 16
      %v594 = vrot.slane %v592, 4
      %v595 = vor.u32 %v594, %v590
      %v596 = vrot.slane %v595, 4
      %v598 = vshll.u32 %v382, 16
      %v600 = vrot.slane %v598, 5
      %v601 = vsel %vm409, %v596, %v600
      %v603 = vshrl.u32 %v383, 16
      %v605 = vrot.slane %v603, 4
      %v606 = vshll.u32 %v383, 16
      %v608 = vrot.slane %v606, 5
      %v609 = vor.u32 %v605, %v608
      %v610 = vrot.slane %v609, 4
      %v612 = vshll.u32 %v384, 16
      %v614 = vrot.slane %v612, 5
      %v615 = vsel %vm409, %v610, %v614
      %v616 = vshrl.u32 %v384, 16
      %v618 = vrot.slane %v616, 4
      %v619 = vor.u32 %v618, %v614
      %v620 = vrot.slane %v619, 4
      %v622 = vshll.u32 %v385, 16
      %v624 = vrot.slane %v622, 5
      %v625 = vsel %vm409, %v620, %v624
      %v627 = vshrl.u32 %v386, 16
      %v629 = vrot.slane %v627, 4
      %v630 = vshll.u32 %v386, 16
      %v632 = vrot.slane %v630, 5
      %v633 = vor.u32 %v629, %v632
      %v634 = vrot.slane %v633, 4
      %v636 = vshll.u32 %v387, 16
      %v638 = vrot.slane %v636, 5
      %v639 = vsel %vm409, %v634, %v638
      %v640 = vshrl.u32 %v387, 16
      %v642 = vrot.slane %v640, 4
      %v643 = vor.u32 %v642, %v638
      %v644 = vrot.slane %v643, 4
      %v646 = vshll.u32 %v388, 16
      %v648 = vrot.slane %v646, 5
      %v649 = vsel %vm409, %v644, %v648
      %v651 = vshrl.u32 %v389, 16
      %v653 = vrot.slane %v651, 4
      %v654 = vshll.u32 %v389, 16
      %v656 = vrot.slane %v654, 5
      %v657 = vor.u32 %v653, %v656
      %v658 = vrot.slane %v657, 4
      %v660 = vshll.u32 %v390, 16
      %v662 = vrot.slane %v660, 5
      %v663 = vsel %vm409, %v658, %v662
      %v664 = vshrl.u32 %v390, 16
      %v666 = vrot.slane %v664, 4
      %v667 = vor.u32 %v666, %v662
      %v668 = vrot.slane %v667, 4
      %v670 = vshll.u32 %v391, 16
      %v672 = vrot.slane %v670, 5
      %v673 = vsel %vm409, %v668, %v672
      %v675 = vshrl.u32 %v392, 16
      %v677 = vrot.slane %v675, 4
      %v678 = vshll.u32 %v392, 16
      %v680 = vrot.slane %v678, 5
      %v681 = vor.u32 %v677, %v680
      %v682 = vrot.slane %v681, 4
      %v684 = vshll.u32 %v393, 16
      %v686 = vrot.slane %v684, 5
      %v687 = vsel %vm409, %v682, %v686
      %v688 = vshrl.u32 %v393, 16
      %v690 = vrot.slane %v688, 4
      %v691 = vor.u32 %v690, %v686
      %v692 = vrot.slane %v691, 4
      %v694 = vshll.u32 %v394, 16
      %v696 = vrot.slane %v694, 5
      %v697 = vsel %vm409, %v692, %v696
      %v699 = vshrl.u32 %v395, 16
      %v701 = vrot.slane %v699, 4
      %v702 = vshll.u32 %v395, 16
      %v704 = vrot.slane %v702, 5
      %v705 = vor.u32 %v701, %v704
      %v706 = vrot.slane %v705, 4
      %v708 = vshll.u32 %v396, 16
      %v710 = vrot.slane %v708, 5
      %v711 = vsel %vm409, %v706, %v710
      %v712 = vshrl.u32 %v396, 16
      %v714 = vrot.slane %v712, 4
      %v715 = vor.u32 %v714, %v710
      %v716 = vrot.slane %v715, 4
      %v718 = vshll.u32 %v397, 16
      %v720 = vrot.slane %v718, 5
      %v721 = vsel %vm409, %v716, %v720
      %v723 = vshrl.u32 %v398, 16
      %v725 = vrot.slane %v723, 4
      %v726 = vshll.u32 %v398, 16
      %v728 = vrot.slane %v726, 5
      %v729 = vor.u32 %v725, %v728
      %v730 = vrot.slane %v729, 4
      %v732 = vshll.u32 %v399, 16
      %v734 = vrot.slane %v732, 5
      %v735 = vsel %vm409, %v730, %v734
      %v736 = vshrl.u32 %v399, 16
      %v738 = vrot.slane %v736, 4
      %v739 = vor.u32 %v738, %v734
      %v740 = vrot.slane %v739, 4
      %v742 = vshll.u32 %v400, 16
      %v744 = vrot.slane %v742, 5
      %v745 = vsel %vm409, %v740, %v744
      %v747 = vshrl.u32 %v401, 16
      %v749 = vrot.slane %v747, 4
      %v750 = vshll.u32 %v401, 16
      %v752 = vrot.slane %v750, 5
      %v753 = vor.u32 %v749, %v752
      %v754 = vrot.slane %v753, 4
      %v756 = vshll.u32 %v402, 16
      %v758 = vrot.slane %v756, 5
      %v759 = vsel %vm409, %v754, %v758
      %v760 = vshrl.u32 %v402, 16
      %v762 = vrot.slane %v760, 4
      %v763 = vor.u32 %v762, %v758
      %v764 = vrot.slane %v763, 4
      %v766 = vshll.u32 %v403, 16
      %v768 = vrot.slane %v766, 5
      %v769 = vsel %vm409, %v764, %v768
      %v771 = vshrl.u32 %v404, 16
      %v773 = vrot.slane %v771, 4
      %v774 = vshll.u32 %v404, 16
      %v776 = vrot.slane %v774, 5
      %v777 = vor.u32 %v773, %v776
      %v778 = vrot.slane %v777, 4
      %v780 = vshll.u32 %v405, 16
      %v782 = vrot.slane %v780, 5
      %v783 = vsel %vm409, %v778, %v782
      %v784 = vshrl.u32 %v405, 16
      %v786 = vrot.slane %v784, 4
      %v787 = vor.u32 %v786, %v782
      %v788 = vrot.slane %v787, 4
      %v790 = vshll.u32 %v406, 16
      %v792 = vrot.slane %v790, 5
      %v793 = vsel %vm409, %v788, %v792
      %794 = vrot.lane.b32.xlu0 %v423, 4
      %v795 = vpop.permute.xlu0 %794
      %796 = vrot.lane.b32.xlu0 %v433, 4
      %v797 = vpop.permute.xlu0 %796
      %798 = vrot.lane.b32.xlu0 %v447, 4
      %v799 = vpop.permute.xlu0 %798
      %800 = vrot.lane.b32.xlu0 %v457, 4
      %v801 = vpop.permute.xlu0 %800
      %802 = vrot.lane.b32.xlu0 %v471, 4
      %v803 = vpop.permute.xlu0 %802
      %804 = vrot.lane.b32.xlu0 %v481, 4
      %v805 = vpop.permute.xlu0 %804
      %806 = vrot.lane.b32.xlu0 %v495, 4
      %v807 = vpop.permute.xlu0 %806
      %808 = vrot.lane.b32.xlu0 %v505, 4
      %v809 = vpop.permute.xlu0 %808
      %810 = vrot.lane.b32.xlu0 %v519, 4
      %v811 = vpop.permute.xlu0 %810
      %812 = vrot.lane.b32.xlu0 %v529, 4
      %v813 = vpop.permute.xlu0 %812
      %814 = vrot.lane.b32.xlu0 %v543, 4
      %v815 = vpop.permute.xlu0 %814
      %816 = vrot.lane.b32.xlu0 %v553, 4
      %v817 = vpop.permute.xlu0 %816
      %818 = vrot.lane.b32.xlu0 %v567, 4
      %v819 = vpop.permute.xlu0 %818
      %820 = vrot.lane.b32.xlu0 %v577, 4
      %v821 = vpop.permute.xlu0 %820
      %822 = vrot.lane.b32.xlu0 %v591, 4
      %v823 = vpop.permute.xlu0 %822
      %824 = vrot.lane.b32.xlu0 %v601, 4
      %v825 = vpop.permute.xlu0 %824
      %826 = vrot.lane.b32.xlu0 %v615, 4
      %v827 = vpop.permute.xlu0 %826
      %828 = vrot.lane.b32.xlu0 %v625, 4
      %v829 = vpop.permute.xlu0 %828
      %830 = vrot.lane.b32.xlu0 %v639, 4
      %v831 = vpop.permute.xlu0 %830
      %832 = vrot.lane.b32.xlu0 %v649, 4
      %v833 = vpop.permute.xlu0 %832
      %834 = vrot.lane.b32.xlu0 %v663, 4
      %v835 = vpop.permute.xlu0 %834
      %836 = vrot.lane.b32.xlu0 %v673, 4
      %v837 = vpop.permute.xlu0 %836
      %838 = vrot.lane.b32.xlu0 %v687, 4
      %v839 = vpop.permute.xlu0 %838
      %840 = vrot.lane.b32.xlu0 %v697, 4
      %v841 = vpop.permute.xlu0 %840
      %842 = vrot.lane.b32.xlu0 %v711, 4
      %v843 = vpop.permute.xlu0 %842
      %844 = vrot.lane.b32.xlu0 %v721, 4
      %v845 = vpop.permute.xlu0 %844
      %846 = vrot.lane.b32.xlu0 %v735, 4
      %v847 = vpop.permute.xlu0 %846
      %848 = vrot.lane.b32.xlu0 %v745, 4
      %v849 = vpop.permute.xlu0 %848
      %850 = vrot.lane.b32.xlu0 %v759, 4
      %v851 = vpop.permute.xlu0 %850
      %852 = vrot.lane.b32.xlu0 %v769, 4
      %v853 = vpop.permute.xlu0 %852
      %854 = vrot.lane.b32.xlu0 %v783, 4
      %v855 = vpop.permute.xlu0 %854
      %856 = vrot.lane.b32.xlu0 %v793, 4
      %v857 = vpop.permute.xlu0 %856
      %vm890 = vcmask 60448
      %891 = vst.msk [vmem:[#allocation2] sm:$0xf] %vm890, %v795
      %892 = vst.msk [vmem:[#allocation2 + $0x4] sm:$0xf] %vm890, %v797
      %893 = vst.msk [vmem:[#allocation2 + $0x8] sm:$0xf] %vm890, %v799
      %894 = vst.msk [vmem:[#allocation2 + $0xc] sm:$0xf] %vm890, %v801
      %895 = vst.msk [vmem:[#allocation2 + $0x10] sm:$0xf] %vm890, %v803
      %896 = vst.msk [vmem:[#allocation2 + $0x14] sm:$0xf] %vm890, %v805
      %897 = vst.msk [vmem:[#allocation2 + $0x18] sm:$0xf] %vm890, %v807
      %898 = vst.msk [vmem:[#allocation2 + $0x1c] sm:$0xf] %vm890, %v809
      %899 = vst.msk [vmem:[#allocation2 + $0x20] sm:$0xf] %vm890, %v811
      %900 = vst.msk [vmem:[#allocation2 + $0x24] sm:$0xf] %vm890, %v813
      %901 = vst.msk [vmem:[#allocation2 + $0x28] sm:$0xf] %vm890, %v815
      %902 = vst.msk [vmem:[#allocation2 + $0x2c] sm:$0xf] %vm890, %v817
      %903 = vst.msk [vmem:[#allocation2 + $0x30] sm:$0xf] %vm890, %v819
      %904 = vst.msk [vmem:[#allocation2 + $0x34] sm:$0xf] %vm890, %v821
      %905 = vst.msk [vmem:[#allocation2 + $0x38] sm:$0xf] %vm890, %v823
      %906 = vst.msk [vmem:[#allocation2 + $0x3c] sm:$0xf] %vm890, %v825
      %907 = vst.msk [vmem:[#allocation2 + $0x40] sm:$0xf] %vm890, %v827
      %908 = vst.msk [vmem:[#allocation2 + $0x44] sm:$0xf] %vm890, %v829
      %909 = vst.msk [vmem:[#allocation2 + $0x48] sm:$0xf] %vm890, %v831
      %910 = vst.msk [vmem:[#allocation2 + $0x4c] sm:$0xf] %vm890, %v833
      %911 = vst.msk [vmem:[#allocation2 + $0x50] sm:$0xf] %vm890, %v835
      %912 = vst.msk [vmem:[#allocation2 + $0x54] sm:$0xf] %vm890, %v837
      %913 = vst.msk [vmem:[#allocation2 + $0x58] sm:$0xf] %vm890, %v839
      %914 = vst.msk [vmem:[#allocation2 + $0x5c] sm:$0xf] %vm890, %v841
      %915 = vst.msk [vmem:[#allocation2 + $0x60] sm:$0xf] %vm890, %v843
      %916 = vst.msk [vmem:[#allocation2 + $0x64] sm:$0xf] %vm890, %v845
      %917 = vst.msk [vmem:[#allocation2 + $0x68] sm:$0xf] %vm890, %v847
      %918 = vst.msk [vmem:[#allocation2 + $0x6c] sm:$0xf] %vm890, %v849
      %919 = vst.msk [vmem:[#allocation2 + $0x70] sm:$0xf] %vm890, %v851
      %920 = vst.msk [vmem:[#allocation2 + $0x74] sm:$0xf] %vm890, %v853
      %921 = vst.msk [vmem:[#allocation2 + $0x78] sm:$0xf] %vm890, %v855
      %922 = vst.msk [vmem:[#allocation2 + $0x7c] sm:$0xf] %vm890, %v857
      %v923 = vld [vmem:[%s260] sm:$0xe]
      %v924 = vld [vmem:[%s260 + $0x4] sm:$0xf]
      %v925 = vld [vmem:[%s260 + $0x8] sm:$0x1]
      %v926 = vld [vmem:[%s260 + $0xc] sm:$0xe]
      %v927 = vld [vmem:[%s260 + $0x10] sm:$0xf]
      %v928 = vld [vmem:[%s260 + $0x14] sm:$0x1]
      %v929 = vld [vmem:[%s260 + $0x18] sm:$0xe]
      %v930 = vld [vmem:[%s260 + $0x1c] sm:$0xf]
      %v931 = vld [vmem:[%s260 + $0x20] sm:$0x1]
      %v932 = vld [vmem:[%s260 + $0x24] sm:$0xe]
      %v933 = vld [vmem:[%s260 + $0x28] sm:$0xf]
      %v934 = vld [vmem:[%s260 + $0x2c] sm:$0x1]
      %v935 = vld [vmem:[%s260 + $0x30] sm:$0xe]
      %v936 = vld [vmem:[%s260 + $0x34] sm:$0xf]
      %v937 = vld [vmem:[%s260 + $0x38] sm:$0x1]
      %v938 = vld [vmem:[%s260 + $0x3c] sm:$0xe]
      %v939 = vld [vmem:[%s260 + $0x40] sm:$0xf]
      %v940 = vld [vmem:[%s260 + $0x44] sm:$0x1]
      %v941 = vld [vmem:[%s260 + $0x48] sm:$0xe]
      %v942 = vld [vmem:[%s260 + $0x4c] sm:$0xf]
      %v943 = vld [vmem:[%s260 + $0x50] sm:$0x1]
      %v944 = vld [vmem:[%s260 + $0x54] sm:$0xe]
      %v945 = vld [vmem:[%s260 + $0x58] sm:$0xf]
      %v946 = vld [vmem:[%s260 + $0x5c] sm:$0x1]
      %v947 = vld [vmem:[%s260 + $0x60] sm:$0xe]
      %v948 = vld [vmem:[%s260 + $0x64] sm:$0xf]
      %v949 = vld [vmem:[%s260 + $0x68] sm:$0x1]
      %v950 = vld [vmem:[%s260 + $0x6c] sm:$0xe]
      %v951 = vld [vmem:[%s260 + $0x70] sm:$0xf]
      %v952 = vld [vmem:[%s260 + $0x74] sm:$0x1]
      %v953 = vld [vmem:[%s260 + $0x78] sm:$0xe]
      %v954 = vld [vmem:[%s260 + $0x7c] sm:$0xf]
      %v955 = vld [vmem:[%s260 + $0x80] sm:$0x1]
      %v956 = vld [vmem:[%s260 + $0x84] sm:$0xe]
      %v957 = vld [vmem:[%s260 + $0x88] sm:$0xf]
      %v958 = vld [vmem:[%s260 + $0x8c] sm:$0x1]
      %v959 = vld [vmem:[%s260 + $0x90] sm:$0xe]
      %v960 = vld [vmem:[%s260 + $0x94] sm:$0xf]
      %v961 = vld [vmem:[%s260 + $0x98] sm:$0x1]
      %v962 = vld [vmem:[%s260 + $0x9c] sm:$0xe]
      %v963 = vld [vmem:[%s260 + $0xa0] sm:$0xf]
      %v964 = vld [vmem:[%s260 + $0xa4] sm:$0x1]
      %v965 = vld [vmem:[%s260 + $0xa8] sm:$0xe]
      %v966 = vld [vmem:[%s260 + $0xac] sm:$0xf]
      %v967 = vld [vmem:[%s260 + $0xb0] sm:$0x1]
      %v968 = vld [vmem:[%s260 + $0xb4] sm:$0xe]
      %v969 = vld [vmem:[%s260 + $0xb8] sm:$0xf]
      %v970 = vld [vmem:[%s260 + $0xbc] sm:$0x1]
      %vm1019 = vcmask 1042432
      %vm1020 = vcmask 1046532
      %vm1021 = vmor %vm1019, %vm1020
      %v1022 = vrot.slane %v923, 5
      %v1023 = vrot.slane %v1022, 4
      %v1024 = vrot.slane %v924, 5
      %v1025 = vsel %vm1021, %v1023, %v1024
      %v1026 = vrot.slane %v1024, 4
      %v1027 = vrot.slane %v925, 5
      %v1028 = vsel %vm1021, %v1026, %v1027
      %v1029 = vrot.slane %v926, 5
      %v1030 = vrot.slane %v1029, 4
      %v1031 = vrot.slane %v927, 5
      %v1032 = vsel %vm1021, %v1030, %v1031
      %v1033 = vrot.slane %v1031, 4
      %v1034 = vrot.slane %v928, 5
      %v1035 = vsel %vm1021, %v1033, %v1034
      %v1036 = vrot.slane %v929, 5
      %v1037 = vrot.slane %v1036, 4
      %v1038 = vrot.slane %v930, 5
      %v1039 = vsel %vm1021, %v1037, %v1038
      %v1040 = vrot.slane %v1038, 4
      %v1041 = vrot.slane %v931, 5
      %v1042 = vsel %vm1021, %v1040, %v1041
      %v1043 = vrot.slane %v932, 5
      %v1044 = vrot.slane %v1043, 4
      %v1045 = vrot.slane %v933, 5
      %v1046 = vsel %vm1021, %v1044, %v1045
      %v1047 = vrot.slane %v1045, 4
      %v1048 = vrot.slane %v934, 5
      %v1049 = vsel %vm1021, %v1047, %v1048
      %v1050 = vrot.slane %v935, 5
      %v1051 = vrot.slane %v1050, 4
      %v1052 = vrot.slane %v936, 5
      %v1053 = vsel %vm1021, %v1051, %v1052
      %v1054 = vrot.slane %v1052, 4
      %v1055 = vrot.slane %v937, 5
      %v1056 = vsel %vm1021, %v1054, %v1055
      %v1057 = vrot.slane %v938, 5
      %v1058 = vrot.slane %v1057, 4
      %v1059 = vrot.slane %v939, 5
      %v1060 = vsel %vm1021, %v1058, %v1059
      %v1061 = vrot.slane %v1059, 4
      %v1062 = vrot.slane %v940, 5
      %v1063 = vsel %vm1021, %v1061, %v1062
      %v1064 = vrot.slane %v941, 5
      %v1065 = vrot.slane %v1064, 4
      %v1066 = vrot.slane %v942, 5
      %v1067 = vsel %vm1021, %v1065, %v1066
      %v1068 = vrot.slane %v1066, 4
      %v1069 = vrot.slane %v943, 5
      %v1070 = vsel %vm1021, %v1068, %v1069
      %v1071 = vrot.slane %v944, 5
      %v1072 = vrot.slane %v1071, 4
      %v1073 = vrot.slane %v945, 5
      %v1074 = vsel %vm1021, %v1072, %v1073
      %v1075 = vrot.slane %v1073, 4
      %v1076 = vrot.slane %v946, 5
      %v1077 = vsel %vm1021, %v1075, %v1076
      %v1078 = vrot.slane %v947, 5
      %v1079 = vrot.slane %v1078, 4
      %v1080 = vrot.slane %v948, 5
      %v1081 = vsel %vm1021, %v1079, %v1080
      %v1082 = vrot.slane %v1080, 4
      %v1083 = vrot.slane %v949, 5
      %v1084 = vsel %vm1021, %v1082, %v1083
      %v1085 = vrot.slane %v950, 5
      %v1086 = vrot.slane %v1085, 4
      %v1087 = vrot.slane %v951, 5
      %v1088 = vsel %vm1021, %v1086, %v1087
      %v1089 = vrot.slane %v1087, 4
      %v1090 = vrot.slane %v952, 5
      %v1091 = vsel %vm1021, %v1089, %v1090
      %v1092 = vrot.slane %v953, 5
      %v1093 = vrot.slane %v1092, 4
      %v1094 = vrot.slane %v954, 5
      %v1095 = vsel %vm1021, %v1093, %v1094
      %v1096 = vrot.slane %v1094, 4
      %v1097 = vrot.slane %v955, 5
      %v1098 = vsel %vm1021, %v1096, %v1097
      %v1099 = vrot.slane %v956, 5
      %v1100 = vrot.slane %v1099, 4
      %v1101 = vrot.slane %v957, 5
      %v1102 = vsel %vm1021, %v1100, %v1101
      %v1103 = vrot.slane %v1101, 4
      %v1104 = vrot.slane %v958, 5
      %v1105 = vsel %vm1021, %v1103, %v1104
      %v1106 = vrot.slane %v959, 5
      %v1107 = vrot.slane %v1106, 4
      %v1108 = vrot.slane %v960, 5
      %v1109 = vsel %vm1021, %v1107, %v1108
      %v1110 = vrot.slane %v1108, 4
      %v1111 = vrot.slane %v961, 5
      %v1112 = vsel %vm1021, %v1110, %v1111
      %v1113 = vrot.slane %v962, 5
      %v1114 = vrot.slane %v1113, 4
      %v1115 = vrot.slane %v963, 5
      %v1116 = vsel %vm1021, %v1114, %v1115
      %v1117 = vrot.slane %v1115, 4
      %v1118 = vrot.slane %v964, 5
      %v1119 = vsel %vm1021, %v1117, %v1118
      %v1120 = vrot.slane %v965, 5
      %v1121 = vrot.slane %v1120, 4
      %v1122 = vrot.slane %v966, 5
      %v1123 = vsel %vm1021, %v1121, %v1122
      %v1124 = vrot.slane %v1122, 4
      %v1125 = vrot.slane %v967, 5
      %v1126 = vsel %vm1021, %v1124, %v1125
      %v1127 = vrot.slane %v968, 5
      %v1128 = vrot.slane %v1127, 4
      %v1129 = vrot.slane %v969, 5
      %v1130 = vsel %vm1021, %v1128, %v1129
      %v1131 = vrot.slane %v1129, 4
      %v1132 = vrot.slane %v970, 5
      %v1133 = vsel %vm1021, %v1131, %v1132
      %1134 = vrot.lane.b32.xlu0 %v1025, 8
      %v1135 = vpop.permute.xlu0 %1134
      %1136 = vrot.lane.b32.xlu0 %v1028, 8
      %v1137 = vpop.permute.xlu0 %1136
      %1138 = vrot.lane.b32.xlu0 %v1032, 8
      %v1139 = vpop.permute.xlu0 %1138
      %1140 = vrot.lane.b32.xlu0 %v1035, 8
      %v1141 = vpop.permute.xlu0 %1140
      %1142 = vrot.lane.b32.xlu0 %v1039, 8
      %v1143 = vpop.permute.xlu0 %1142
      %1144 = vrot.lane.b32.xlu0 %v1042, 8
      %v1145 = vpop.permute.xlu0 %1144
      %1146 = vrot.lane.b32.xlu0 %v1046, 8
      %v1147 = vpop.permute.xlu0 %1146
      %1148 = vrot.lane.b32.xlu0 %v1049, 8
      %v1149 = vpop.permute.xlu0 %1148
      %1150 = vrot.lane.b32.xlu0 %v1053, 8
      %v1151 = vpop.permute.xlu0 %1150
      %1152 = vrot.lane.b32.xlu0 %v1056, 8
      %v1153 = vpop.permute.xlu0 %1152
      %1154 = vrot.lane.b32.xlu0 %v1060, 8
      %v1155 = vpop.permute.xlu0 %1154
      %1156 = vrot.lane.b32.xlu0 %v1063, 8
      %v1157 = vpop.permute.xlu0 %1156
      %1158 = vrot.lane.b32.xlu0 %v1067, 8
      %v1159 = vpop.permute.xlu0 %1158
      %1160 = vrot.lane.b32.xlu0 %v1070, 8
      %v1161 = vpop.permute.xlu0 %1160
      %1162 = vrot.lane.b32.xlu0 %v1074, 8
      %v1163 = vpop.permute.xlu0 %1162
      %1164 = vrot.lane.b32.xlu0 %v1077, 8
      %v1165 = vpop.permute.xlu0 %1164
      %1166 = vrot.lane.b32.xlu0 %v1081, 8
      %v1167 = vpop.permute.xlu0 %1166
      %1168 = vrot.lane.b32.xlu0 %v1084, 8
      %v1169 = vpop.permute.xlu0 %1168
      %1170 = vrot.lane.b32.xlu0 %v1088, 8
      %v1171 = vpop.permute.xlu0 %1170
      %1172 = vrot.lane.b32.xlu0 %v1091, 8
      %v1173 = vpop.permute.xlu0 %1172
      %1174 = vrot.lane.b32.xlu0 %v1095, 8
      %v1175 = vpop.permute.xlu0 %1174
      %1176 = vrot.lane.b32.xlu0 %v1098, 8
      %v1177 = vpop.permute.xlu0 %1176
      %1178 = vrot.lane.b32.xlu0 %v1102, 8
      %v1179 = vpop.permute.xlu0 %1178
      %1180 = vrot.lane.b32.xlu0 %v1105, 8
      %v1181 = vpop.permute.xlu0 %1180
      %1182 = vrot.lane.b32.xlu0 %v1109, 8
      %v1183 = vpop.permute.xlu0 %1182
      %1184 = vrot.lane.b32.xlu0 %v1112, 8
      %v1185 = vpop.permute.xlu0 %1184
      %1186 = vrot.lane.b32.xlu0 %v1116, 8
      %v1187 = vpop.permute.xlu0 %1186
      %1188 = vrot.lane.b32.xlu0 %v1119, 8
      %v1189 = vpop.permute.xlu0 %1188
      %1190 = vrot.lane.b32.xlu0 %v1123, 8
      %v1191 = vpop.permute.xlu0 %1190
      %1192 = vrot.lane.b32.xlu0 %v1126, 8
      %v1193 = vpop.permute.xlu0 %1192
      %1194 = vrot.lane.b32.xlu0 %v1130, 8
      %v1195 = vpop.permute.xlu0 %1194
      %1196 = vrot.lane.b32.xlu0 %v1133, 8
      %v1197 = vpop.permute.xlu0 %1196
      %vm1230 = vcmask 93248
      %1231 = vst.msk [vmem:[#allocation2] sm:$0xf] %vm1230, %v1135
      %1232 = vst.msk [vmem:[#allocation2 + $0x4] sm:$0xf] %vm1230, %v1137
      %1233 = vst.msk [vmem:[#allocation2 + $0x8] sm:$0xf] %vm1230, %v1139
      %1234 = vst.msk [vmem:[#allocation2 + $0xc] sm:$0xf] %vm1230, %v1141
      %1235 = vst.msk [vmem:[#allocation2 + $0x10] sm:$0xf] %vm1230, %v1143
      %1236 = vst.msk [vmem:[#allocation2 + $0x14] sm:$0xf] %vm1230, %v1145
      %1237 = vst.msk [vmem:[#allocation2 + $0x18] sm:$0xf] %vm1230, %v1147
      %1238 = vst.msk [vmem:[#allocation2 + $0x1c] sm:$0xf] %vm1230, %v1149
      %1239 = vst.msk [vmem:[#allocation2 + $0x20] sm:$0xf] %vm1230, %v1151
      %1240 = vst.msk [vmem:[#allocation2 + $0x24] sm:$0xf] %vm1230, %v1153
      %1241 = vst.msk [vmem:[#allocation2 + $0x28] sm:$0xf] %vm1230, %v1155
      %1242 = vst.msk [vmem:[#allocation2 + $0x2c] sm:$0xf] %vm1230, %v1157
      %1243 = vst.msk [vmem:[#allocation2 + $0x30] sm:$0xf] %vm1230, %v1159
      %1244 = vst.msk [vmem:[#allocation2 + $0x34] sm:$0xf] %vm1230, %v1161
      %1245 = vst.msk [vmem:[#allocation2 + $0x38] sm:$0xf] %vm1230, %v1163
      %1246 = vst.msk [vmem:[#allocation2 + $0x3c] sm:$0xf] %vm1230, %v1165
      %1247 = vst.msk [vmem:[#allocation2 + $0x40] sm:$0xf] %vm1230, %v1167
      %1248 = vst.msk [vmem:[#allocation2 + $0x44] sm:$0xf] %vm1230, %v1169
      %1249 = vst.msk [vmem:[#allocation2 + $0x48] sm:$0xf] %vm1230, %v1171
      %1250 = vst.msk [vmem:[#allocation2 + $0x4c] sm:$0xf] %vm1230, %v1173
      %1251 = vst.msk [vmem:[#allocation2 + $0x50] sm:$0xf] %vm1230, %v1175
      %1252 = vst.msk [vmem:[#allocation2 + $0x54] sm:$0xf] %vm1230, %v1177
      %1253 = vst.msk [vmem:[#allocation2 + $0x58] sm:$0xf] %vm1230, %v1179
      %1254 = vst.msk [vmem:[#allocation2 + $0x5c] sm:$0xf] %vm1230, %v1181
      %1255 = vst.msk [vmem:[#allocation2 + $0x60] sm:$0xf] %vm1230, %v1183
      %1256 = vst.msk [vmem:[#allocation2 + $0x64] sm:$0xf] %vm1230, %v1185
      %1257 = vst.msk [vmem:[#allocation2 + $0x68] sm:$0xf] %vm1230, %v1187
      %1258 = vst.msk [vmem:[#allocation2 + $0x6c] sm:$0xf] %vm1230, %v1189
      %1259 = vst.msk [vmem:[#allocation2 + $0x70] sm:$0xf] %vm1230, %v1191
      %1260 = vst.msk [vmem:[#allocation2 + $0x74] sm:$0xf] %vm1230, %v1193
      %1261 = vst.msk [vmem:[#allocation2 + $0x78] sm:$0xf] %vm1230, %v1195
      %1262 = vst.msk [vmem:[#allocation2 + $0x7c] sm:$0xf] %vm1230, %v1197
      %s1263 = scalar_lea.vmem %s260, 12
      %v1264 = vld [vmem:[%s1263] sm:$0xf]
      %v1265 = vld [vmem:[%s1263 + $0x4] sm:$0xf]
      %v1266 = vld [vmem:[%s1263 + $0xc] sm:$0xf]
      %v1267 = vld [vmem:[%s1263 + $0x10] sm:$0xf]
      %v1268 = vld [vmem:[%s1263 + $0x18] sm:$0xf]
      %v1269 = vld [vmem:[%s1263 + $0x1c] sm:$0xf]
      %v1270 = vld [vmem:[%s1263 + $0x24] sm:$0xf]
      %v1271 = vld [vmem:[%s1263 + $0x28] sm:$0xf]
      %v1272 = vld [vmem:[%s1263 + $0x30] sm:$0xf]
      %v1273 = vld [vmem:[%s1263 + $0x34] sm:$0xf]
      %v1274 = vld [vmem:[%s1263 + $0x3c] sm:$0xf]
      %v1275 = vld [vmem:[%s1263 + $0x40] sm:$0xf]
      %v1276 = vld [vmem:[%s1263 + $0x48] sm:$0xf]
      %v1277 = vld [vmem:[%s1263 + $0x4c] sm:$0xf]
      %v1278 = vld [vmem:[%s1263 + $0x54] sm:$0xf]
      %v1279 = vld [vmem:[%s1263 + $0x58] sm:$0xf]
      %v1280 = vld [vmem:[%s1263 + $0x60] sm:$0xf]
      %v1281 = vld [vmem:[%s1263 + $0x64] sm:$0xf]
      %v1282 = vld [vmem:[%s1263 + $0x6c] sm:$0xf]
      %v1283 = vld [vmem:[%s1263 + $0x70] sm:$0xf]
      %v1284 = vld [vmem:[%s1263 + $0x78] sm:$0xf]
      %v1285 = vld [vmem:[%s1263 + $0x7c] sm:$0xf]
      %v1286 = vld [vmem:[%s1263 + $0x84] sm:$0xf]
      %v1287 = vld [vmem:[%s1263 + $0x88] sm:$0xf]
      %v1288 = vld [vmem:[%s1263 + $0x90] sm:$0xf]
      %v1289 = vld [vmem:[%s1263 + $0x94] sm:$0xf]
      %v1290 = vld [vmem:[%s1263 + $0x9c] sm:$0xf]
      %v1291 = vld [vmem:[%s1263 + $0xa0] sm:$0xf]
      %v1292 = vld [vmem:[%s1263 + $0xa8] sm:$0xf]
      %v1293 = vld [vmem:[%s1263 + $0xac] sm:$0xf]
      %1324 = vrot.lane.b32.xlu0 %v1264, 12
      %v1325 = vpop.permute.xlu0 %1324
      %1326 = vrot.lane.b32.xlu0 %v1265, 12
      %v1327 = vpop.permute.xlu0 %1326
      %1328 = vrot.lane.b32.xlu0 %v1266, 12
      %v1329 = vpop.permute.xlu0 %1328
      %1330 = vrot.lane.b32.xlu0 %v1267, 12
      %v1331 = vpop.permute.xlu0 %1330
      %1332 = vrot.lane.b32.xlu0 %v1268, 12
      %v1333 = vpop.permute.xlu0 %1332
      %1334 = vrot.lane.b32.xlu0 %v1269, 12
      %v1335 = vpop.permute.xlu0 %1334
      %1336 = vrot.lane.b32.xlu0 %v1270, 12
      %v1337 = vpop.permute.xlu0 %1336
      %1338 = vrot.lane.b32.xlu0 %v1271, 12
      %v1339 = vpop.permute.xlu0 %1338
      %1340 = vrot.lane.b32.xlu0 %v1272, 12
      %v1341 = vpop.permute.xlu0 %1340
      %1342 = vrot.lane.b32.xlu0 %v1273, 12
      %v1343 = vpop.permute.xlu0 %1342
      %1344 = vrot.lane.b32.xlu0 %v1274, 12
      %v1345 = vpop.permute.xlu0 %1344
      %1346 = vrot.lane.b32.xlu0 %v1275, 12
      %v1347 = vpop.permute.xlu0 %1346
      %1348 = vrot.lane.b32.xlu0 %v1276, 12
      %v1349 = vpop.permute.xlu0 %1348
      %1350 = vrot.lane.b32.xlu0 %v1277, 12
      %v1351 = vpop.permute.xlu0 %1350
      %1352 = vrot.lane.b32.xlu0 %v1278, 12
      %v1353 = vpop.permute.xlu0 %1352
      %1354 = vrot.lane.b32.xlu0 %v1279, 12
      %v1355 = vpop.permute.xlu0 %1354
      %1356 = vrot.lane.b32.xlu0 %v1280, 12
      %v1357 = vpop.permute.xlu0 %1356
      %1358 = vrot.lane.b32.xlu0 %v1281, 12
      %v1359 = vpop.permute.xlu0 %1358
      %1360 = vrot.lane.b32.xlu0 %v1282, 12
      %v1361 = vpop.permute.xlu0 %1360
      %1362 = vrot.lane.b32.xlu0 %v1283, 12
      %v1363 = vpop.permute.xlu0 %1362
      %1364 = vrot.lane.b32.xlu0 %v1284, 12
      %v1365 = vpop.permute.xlu0 %1364
      %1366 = vrot.lane.b32.xlu0 %v1285, 12
      %v1367 = vpop.permute.xlu0 %1366
      %1368 = vrot.lane.b32.xlu0 %v1286, 12
      %v1369 = vpop.permute.xlu0 %1368
      %1370 = vrot.lane.b32.xlu0 %v1287, 12
      %v1371 = vpop.permute.xlu0 %1370
      %1372 = vrot.lane.b32.xlu0 %v1288, 12
      %v1373 = vpop.permute.xlu0 %1372
      %1374 = vrot.lane.b32.xlu0 %v1289, 12
      %v1375 = vpop.permute.xlu0 %1374
      %1376 = vrot.lane.b32.xlu0 %v1290, 12
      %v1377 = vpop.permute.xlu0 %1376
      %1378 = vrot.lane.b32.xlu0 %v1291, 12
      %v1379 = vpop.permute.xlu0 %1378
      %1380 = vrot.lane.b32.xlu0 %v1292, 12
      %v1381 = vpop.permute.xlu0 %1380
      %1382 = vrot.lane.b32.xlu0 %v1293, 12
      %v1383 = vpop.permute.xlu0 %1382
      %vm1414 = vcmask 126048
      %1415 = vst.msk [vmem:[#allocation2] sm:$0xf] %vm1414, %v1325
      %1416 = vst.msk [vmem:[#allocation2 + $0x4] sm:$0xf] %vm1414, %v1327
      %1417 = vst.msk [vmem:[#allocation2 + $0x8] sm:$0xf] %vm1414, %v1329
      %1418 = vst.msk [vmem:[#allocation2 + $0xc] sm:$0xf] %vm1414, %v1331
      %1419 = vst.msk [vmem:[#allocation2 + $0x10] sm:$0xf] %vm1414, %v1333
      %1420 = vst.msk [vmem:[#allocation2 + $0x14] sm:$0xf] %vm1414, %v1335
      %1421 = vst.msk [vmem:[#allocation2 + $0x18] sm:$0xf] %vm1414, %v1337
      %1422 = vst.msk [vmem:[#allocation2 + $0x1c] sm:$0xf] %vm1414, %v1339
      %1423 = vst.msk [vmem:[#allocation2 + $0x20] sm:$0xf] %vm1414, %v1341
      %1424 = vst.msk [vmem:[#allocation2 + $0x24] sm:$0xf] %vm1414, %v1343
      %1425 = vst.msk [vmem:[#allocation2 + $0x28] sm:$0xf] %vm1414, %v1345
      %1426 = vst.msk [vmem:[#allocation2 + $0x2c] sm:$0xf] %vm1414, %v1347
      %1427 = vst.msk [vmem:[#allocation2 + $0x30] sm:$0xf] %vm1414, %v1349
      %1428 = vst.msk [vmem:[#allocation2 + $0x34] sm:$0xf] %vm1414, %v1351
      %1429 = vst.msk [vmem:[#allocation2 + $0x38] sm:$0xf] %vm1414, %v1353
      %1430 = vst.msk [vmem:[#allocation2 + $0x3c] sm:$0xf] %vm1414, %v1355
      %1431 = vst.msk [vmem:[#allocation2 + $0x40] sm:$0xf] %vm1414, %v1357
      %1432 = vst.msk [vmem:[#allocation2 + $0x44] sm:$0xf] %vm1414, %v1359
      %1433 = vst.msk [vmem:[#allocation2 + $0x48] sm:$0xf] %vm1414, %v1361
      %1434 = vst.msk [vmem:[#allocation2 + $0x4c] sm:$0xf] %vm1414, %v1363
      %1435 = vst.msk [vmem:[#allocation2 + $0x50] sm:$0xf] %vm1414, %v1365
      %1436 = vst.msk [vmem:[#allocation2 + $0x54] sm:$0xf] %vm1414, %v1367
      %1437 = vst.msk [vmem:[#allocation2 + $0x58] sm:$0xf] %vm1414, %v1369
      %1438 = vst.msk [vmem:[#allocation2 + $0x5c] sm:$0xf] %vm1414, %v1371
      %1439 = vst.msk [vmem:[#allocation2 + $0x60] sm:$0xf] %vm1414, %v1373
      %1440 = vst.msk [vmem:[#allocation2 + $0x64] sm:$0xf] %vm1414, %v1375
      %1441 = vst.msk [vmem:[#allocation2 + $0x68] sm:$0xf] %vm1414, %v1377
      %1442 = vst.msk [vmem:[#allocation2 + $0x6c] sm:$0xf] %vm1414, %v1379
      %1443 = vst.msk [vmem:[#allocation2 + $0x70] sm:$0xf] %vm1414, %v1381
      %1444 = vst.msk [vmem:[#allocation2 + $0x74] sm:$0xf] %vm1414, %v1383
      %v1445 = vld [vmem:[%s278] sm:$0xf]
      %v1446 = vld [vmem:[%s278 + $0x4] sm:$0xf]
      %1449 = vrot.lane.b32.xlu0 %v1445, 12
      %v1450 = vpop.permute.xlu0 %1449
      %1451 = vrot.lane.b32.xlu0 %v1446, 12
      %v1452 = vpop.permute.xlu0 %1451
      %1455 = vst.msk [vmem:[#allocation2 + $0x78] sm:$0xf] %vm1414, %v1450
      %1456 = vst.msk [vmem:[#allocation2 + $0x7c] sm:$0xf] %vm1414, %v1452
      %v1457 = vld [vmem:[%s1263] sm:$0xf]
      %v1458 = vld [vmem:[%s1263 + $0x4] sm:$0xf]
      %v1459 = vld [vmem:[%s1263 + $0x8] sm:$0x1]
      %v1460 = vld [vmem:[%s1263 + $0xc] sm:$0xf]
      %v1461 = vld [vmem:[%s1263 + $0x10] sm:$0xf]
      %v1462 = vld [vmem:[%s1263 + $0x14] sm:$0x1]
      %v1463 = vld [vmem:[%s1263 + $0x18] sm:$0xf]
      %v1464 = vld [vmem:[%s1263 + $0x1c] sm:$0xf]
      %v1465 = vld [vmem:[%s1263 + $0x20] sm:$0x1]
      %v1466 = vld [vmem:[%s1263 + $0x24] sm:$0xf]
      %v1467 = vld [vmem:[%s1263 + $0x28] sm:$0xf]
      %v1468 = vld [vmem:[%s1263 + $0x2c] sm:$0x1]
      %v1469 = vld [vmem:[%s1263 + $0x30] sm:$0xf]
      %v1470 = vld [vmem:[%s1263 + $0x34] sm:$0xf]
      %v1471 = vld [vmem:[%s1263 + $0x38] sm:$0x1]
      %v1472 = vld [vmem:[%s1263 + $0x3c] sm:$0xf]
      %v1473 = vld [vmem:[%s1263 + $0x40] sm:$0xf]
      %v1474 = vld [vmem:[%s1263 + $0x44] sm:$0x1]
      %v1475 = vld [vmem:[%s1263 + $0x48] sm:$0xf]
      %v1476 = vld [vmem:[%s1263 + $0x4c] sm:$0xf]
      %v1477 = vld [vmem:[%s1263 + $0x50] sm:$0x1]
      %v1478 = vld [vmem:[%s1263 + $0x54] sm:$0xf]
      %v1479 = vld [vmem:[%s1263 + $0x58] sm:$0xf]
      %v1480 = vld [vmem:[%s1263 + $0x5c] sm:$0x1]
      %v1481 = vld [vmem:[%s1263 + $0x60] sm:$0xf]
      %v1482 = vld [vmem:[%s1263 + $0x64] sm:$0xf]
      %v1483 = vld [vmem:[%s1263 + $0x68] sm:$0x1]
      %v1484 = vld [vmem:[%s1263 + $0x6c] sm:$0xf]
      %v1485 = vld [vmem:[%s1263 + $0x70] sm:$0xf]
      %v1486 = vld [vmem:[%s1263 + $0x74] sm:$0x1]
      %v1487 = vld [vmem:[%s1263 + $0x78] sm:$0xf]
      %v1488 = vld [vmem:[%s1263 + $0x7c] sm:$0xf]
      %v1489 = vld [vmem:[%s1263 + $0x80] sm:$0x1]
      %v1490 = vld [vmem:[%s1263 + $0x84] sm:$0xf]
      %v1491 = vld [vmem:[%s1263 + $0x88] sm:$0xf]
      %v1492 = vld [vmem:[%s1263 + $0x8c] sm:$0x1]
      %v1493 = vld [vmem:[%s1263 + $0x90] sm:$0xf]
      %v1494 = vld [vmem:[%s1263 + $0x94] sm:$0xf]
      %v1495 = vld [vmem:[%s1263 + $0x98] sm:$0x1]
      %v1496 = vld [vmem:[%s1263 + $0x9c] sm:$0xf]
      %v1497 = vld [vmem:[%s1263 + $0xa0] sm:$0xf]
      %v1498 = vld [vmem:[%s1263 + $0xa4] sm:$0x1]
      %v1499 = vld [vmem:[%s1263 + $0xa8] sm:$0xf]
      %v1500 = vld [vmem:[%s1263 + $0xac] sm:$0xf]
      %v1501 = vld [vmem:[%s1263 + $0xb0] sm:$0x1]
      %v1503 = vshrl.u32 %v1457, 16
      %v1505 = vrot.slane %v1503, 4
      %v1506 = vshll.u32 %v1457, 16
      %v1508 = vrot.slane %v1506, 5
      %v1509 = vor.u32 %v1505, %v1508
      %v1510 = vrot.slane %v1509, 4
      %v1512 = vshll.u32 %v1458, 16
      %v1514 = vrot.slane %v1512, 5
      %v1515 = vsel %vm409, %v1510, %v1514
      %v1516 = vshrl.u32 %v1458, 16
      %v1518 = vrot.slane %v1516, 4
      %v1519 = vor.u32 %v1518, %v1514
      %v1520 = vrot.slane %v1519, 4
      %v1522 = vshll.u32 %v1459, 16
      %v1524 = vrot.slane %v1522, 5
      %v1525 = vsel %vm409, %v1520, %v1524
      %v1527 = vshrl.u32 %v1460, 16
      %v1529 = vrot.slane %v1527, 4
      %v1530 = vshll.u32 %v1460, 16
      %v1532 = vrot.slane %v1530, 5
      %v1533 = vor.u32 %v1529, %v1532
      %v1534 = vrot.slane %v1533, 4
      %v1536 = vshll.u32 %v1461, 16
      %v1538 = vrot.slane %v1536, 5
      %v1539 = vsel %vm409, %v1534, %v1538
      %v1540 = vshrl.u32 %v1461, 16
      %v1542 = vrot.slane %v1540, 4
      %v1543 = vor.u32 %v1542, %v1538
      %v1544 = vrot.slane %v1543, 4
      %v1546 = vshll.u32 %v1462, 16
      %v1548 = vrot.slane %v1546, 5
      %v1549 = vsel %vm409, %v1544, %v1548
      %v1551 = vshrl.u32 %v1463, 16
      %v1553 = vrot.slane %v1551, 4
      %v1554 = vshll.u32 %v1463, 16
      %v1556 = vrot.slane %v1554, 5
      %v1557 = vor.u32 %v1553, %v1556
      %v1558 = vrot.slane %v1557, 4
      %v1560 = vshll.u32 %v1464, 16
      %v1562 = vrot.slane %v1560, 5
      %v1563 = vsel %vm409, %v1558, %v1562
      %v1564 = vshrl.u32 %v1464, 16
      %v1566 = vrot.slane %v1564, 4
      %v1567 = vor.u32 %v1566, %v1562
      %v1568 = vrot.slane %v1567, 4
      %v1570 = vshll.u32 %v1465, 16
      %v1572 = vrot.slane %v1570, 5
      %v1573 = vsel %vm409, %v1568, %v1572
      %v1575 = vshrl.u32 %v1466, 16
      %v1577 = vrot.slane %v1575, 4
      %v1578 = vshll.u32 %v1466, 16
      %v1580 = vrot.slane %v1578, 5
      %v1581 = vor.u32 %v1577, %v1580
      %v1582 = vrot.slane %v1581, 4
      %v1584 = vshll.u32 %v1467, 16
      %v1586 = vrot.slane %v1584, 5
      %v1587 = vsel %vm409, %v1582, %v1586
      %v1588 = vshrl.u32 %v1467, 16
      %v1590 = vrot.slane %v1588, 4
      %v1591 = vor.u32 %v1590, %v1586
      %v1592 = vrot.slane %v1591, 4
      %v1594 = vshll.u32 %v1468, 16
      %v1596 = vrot.slane %v1594, 5
      %v1597 = vsel %vm409, %v1592, %v1596
      %v1599 = vshrl.u32 %v1469, 16
      %v1601 = vrot.slane %v1599, 4
      %v1602 = vshll.u32 %v1469, 16
      %v1604 = vrot.slane %v1602, 5
      %v1605 = vor.u32 %v1601, %v1604
      %v1606 = vrot.slane %v1605, 4
      %v1608 = vshll.u32 %v1470, 16
      %v1610 = vrot.slane %v1608, 5
      %v1611 = vsel %vm409, %v1606, %v1610
      %v1612 = vshrl.u32 %v1470, 16
      %v1614 = vrot.slane %v1612, 4
      %v1615 = vor.u32 %v1614, %v1610
      %v1616 = vrot.slane %v1615, 4
      %v1618 = vshll.u32 %v1471, 16
      %v1620 = vrot.slane %v1618, 5
      %v1621 = vsel %vm409, %v1616, %v1620
      %v1623 = vshrl.u32 %v1472, 16
      %v1625 = vrot.slane %v1623, 4
      %v1626 = vshll.u32 %v1472, 16
      %v1628 = vrot.slane %v1626, 5
      %v1629 = vor.u32 %v1625, %v1628
      %v1630 = vrot.slane %v1629, 4
      %v1632 = vshll.u32 %v1473, 16
      %v1634 = vrot.slane %v1632, 5
      %v1635 = vsel %vm409, %v1630, %v1634
      %v1636 = vshrl.u32 %v1473, 16
      %v1638 = vrot.slane %v1636, 4
      %v1639 = vor.u32 %v1638, %v1634
      %v1640 = vrot.slane %v1639, 4
      %v1642 = vshll.u32 %v1474, 16
      %v1644 = vrot.slane %v1642, 5
      %v1645 = vsel %vm409, %v1640, %v1644
      %v1647 = vshrl.u32 %v1475, 16
      %v1649 = vrot.slane %v1647, 4
      %v1650 = vshll.u32 %v1475, 16
      %v1652 = vrot.slane %v1650, 5
      %v1653 = vor.u32 %v1649, %v1652
      %v1654 = vrot.slane %v1653, 4
      %v1656 = vshll.u32 %v1476, 16
      %v1658 = vrot.slane %v1656, 5
      %v1659 = vsel %vm409, %v1654, %v1658
      %v1660 = vshrl.u32 %v1476, 16
      %v1662 = vrot.slane %v1660, 4
      %v1663 = vor.u32 %v1662, %v1658
      %v1664 = vrot.slane %v1663, 4
      %v1666 = vshll.u32 %v1477, 16
      %v1668 = vrot.slane %v1666, 5
      %v1669 = vsel %vm409, %v1664, %v1668
      %v1671 = vshrl.u32 %v1478, 16
      %v1673 = vrot.slane %v1671, 4
      %v1674 = vshll.u32 %v1478, 16
      %v1676 = vrot.slane %v1674, 5
      %v1677 = vor.u32 %v1673, %v1676
      %v1678 = vrot.slane %v1677, 4
      %v1680 = vshll.u32 %v1479, 16
      %v1682 = vrot.slane %v1680, 5
      %v1683 = vsel %vm409, %v1678, %v1682
      %v1684 = vshrl.u32 %v1479, 16
      %v1686 = vrot.slane %v1684, 4
      %v1687 = vor.u32 %v1686, %v1682
      %v1688 = vrot.slane %v1687, 4
      %v1690 = vshll.u32 %v1480, 16
      %v1692 = vrot.slane %v1690, 5
      %v1693 = vsel %vm409, %v1688, %v1692
      %v1695 = vshrl.u32 %v1481, 16
      %v1697 = vrot.slane %v1695, 4
      %v1698 = vshll.u32 %v1481, 16
      %v1700 = vrot.slane %v1698, 5
      %v1701 = vor.u32 %v1697, %v1700
      %v1702 = vrot.slane %v1701, 4
      %v1704 = vshll.u32 %v1482, 16
      %v1706 = vrot.slane %v1704, 5
      %v1707 = vsel %vm409, %v1702, %v1706
      %v1708 = vshrl.u32 %v1482, 16
      %v1710 = vrot.slane %v1708, 4
      %v1711 = vor.u32 %v1710, %v1706
      %v1712 = vrot.slane %v1711, 4
      %v1714 = vshll.u32 %v1483, 16
      %v1716 = vrot.slane %v1714, 5
      %v1717 = vsel %vm409, %v1712, %v1716
      %v1719 = vshrl.u32 %v1484, 16
      %v1721 = vrot.slane %v1719, 4
      %v1722 = vshll.u32 %v1484, 16
      %v1724 = vrot.slane %v1722, 5
      %v1725 = vor.u32 %v1721, %v1724
      %v1726 = vrot.slane %v1725, 4
      %v1728 = vshll.u32 %v1485, 16
      %v1730 = vrot.slane %v1728, 5
      %v1731 = vsel %vm409, %v1726, %v1730
      %v1732 = vshrl.u32 %v1485, 16
      %v1734 = vrot.slane %v1732, 4
      %v1735 = vor.u32 %v1734, %v1730
      %v1736 = vrot.slane %v1735, 4
      %v1738 = vshll.u32 %v1486, 16
      %v1740 = vrot.slane %v1738, 5
      %v1741 = vsel %vm409, %v1736, %v1740
      %v1743 = vshrl.u32 %v1487, 16
      %v1745 = vrot.slane %v1743, 4
      %v1746 = vshll.u32 %v1487, 16
      %v1748 = vrot.slane %v1746, 5
      %v1749 = vor.u32 %v1745, %v1748
      %v1750 = vrot.slane %v1749, 4
      %v1752 = vshll.u32 %v1488, 16
      %v1754 = vrot.slane %v1752, 5
      %v1755 = vsel %vm409, %v1750, %v1754
      %v1756 = vshrl.u32 %v1488, 16
      %v1758 = vrot.slane %v1756, 4
      %v1759 = vor.u32 %v1758, %v1754
      %v1760 = vrot.slane %v1759, 4
      %v1762 = vshll.u32 %v1489, 16
      %v1764 = vrot.slane %v1762, 5
      %v1765 = vsel %vm409, %v1760, %v1764
      %v1767 = vshrl.u32 %v1490, 16
      %v1769 = vrot.slane %v1767, 4
      %v1770 = vshll.u32 %v1490, 16
      %v1772 = vrot.slane %v1770, 5
      %v1773 = vor.u32 %v1769, %v1772
      %v1774 = vrot.slane %v1773, 4
      %v1776 = vshll.u32 %v1491, 16
      %v1778 = vrot.slane %v1776, 5
      %v1779 = vsel %vm409, %v1774, %v1778
      %v1780 = vshrl.u32 %v1491, 16
      %v1782 = vrot.slane %v1780, 4
      %v1783 = vor.u32 %v1782, %v1778
      %v1784 = vrot.slane %v1783, 4
      %v1786 = vshll.u32 %v1492, 16
      %v1788 = vrot.slane %v1786, 5
      %v1789 = vsel %vm409, %v1784, %v1788
      %v1791 = vshrl.u32 %v1493, 16
      %v1793 = vrot.slane %v1791, 4
      %v1794 = vshll.u32 %v1493, 16
      %v1796 = vrot.slane %v1794, 5
      %v1797 = vor.u32 %v1793, %v1796
      %v1798 = vrot.slane %v1797, 4
      %v1800 = vshll.u32 %v1494, 16
      %v1802 = vrot.slane %v1800, 5
      %v1803 = vsel %vm409, %v1798, %v1802
      %v1804 = vshrl.u32 %v1494, 16
      %v1806 = vrot.slane %v1804, 4
      %v1807 = vor.u32 %v1806, %v1802
      %v1808 = vrot.slane %v1807, 4
      %v1810 = vshll.u32 %v1495, 16
      %v1812 = vrot.slane %v1810, 5
      %v1813 = vsel %vm409, %v1808, %v1812
      %v1815 = vshrl.u32 %v1496, 16
      %v1817 = vrot.slane %v1815, 4
      %v1818 = vshll.u32 %v1496, 16
      %v1820 = vrot.slane %v1818, 5
      %v1821 = vor.u32 %v1817, %v1820
      %v1822 = vrot.slane %v1821, 4
      %v1824 = vshll.u32 %v1497, 16
      %v1826 = vrot.slane %v1824, 5
      %v1827 = vsel %vm409, %v1822, %v1826
      %v1828 = vshrl.u32 %v1497, 16
      %v1830 = vrot.slane %v1828, 4
      %v1831 = vor.u32 %v1830, %v1826
      %v1832 = vrot.slane %v1831, 4
      %v1834 = vshll.u32 %v1498, 16
      %v1836 = vrot.slane %v1834, 5
      %v1837 = vsel %vm409, %v1832, %v1836
      %v1839 = vshrl.u32 %v1499, 16
      %v1841 = vrot.slane %v1839, 4
      %v1842 = vshll.u32 %v1499, 16
      %v1844 = vrot.slane %v1842, 5
      %v1845 = vor.u32 %v1841, %v1844
      %v1846 = vrot.slane %v1845, 4
      %v1848 = vshll.u32 %v1500, 16
      %v1850 = vrot.slane %v1848, 5
      %v1851 = vsel %vm409, %v1846, %v1850
      %v1852 = vshrl.u32 %v1500, 16
      %v1854 = vrot.slane %v1852, 4
      %v1855 = vor.u32 %v1854, %v1850
      %v1856 = vrot.slane %v1855, 4
      %v1858 = vshll.u32 %v1501, 16
      %v1860 = vrot.slane %v1858, 5
      %v1861 = vsel %vm409, %v1856, %v1860
      %1862 = vrot.lane.b32.xlu0 %v1515, 16
      %v1863 = vpop.permute.xlu0 %1862
      %1864 = vrot.lane.b32.xlu0 %v1525, 16
      %v1865 = vpop.permute.xlu0 %1864
      %1866 = vrot.lane.b32.xlu0 %v1539, 16
      %v1867 = vpop.permute.xlu0 %1866
      %1868 = vrot.lane.b32.xlu0 %v1549, 16
      %v1869 = vpop.permute.xlu0 %1868
      %1870 = vrot.lane.b32.xlu0 %v1563, 16
      %v1871 = vpop.permute.xlu0 %1870
      %1872 = vrot.lane.b32.xlu0 %v1573, 16
      %v1873 = vpop.permute.xlu0 %1872
      %1874 = vrot.lane.b32.xlu0 %v1587, 16
      %v1875 = vpop.permute.xlu0 %1874
      %1876 = vrot.lane.b32.xlu0 %v1597, 16
      %v1877 = vpop.permute.xlu0 %1876
      %1878 = vrot.lane.b32.xlu0 %v1611, 16
      %v1879 = vpop.permute.xlu0 %1878
      %1880 = vrot.lane.b32.xlu0 %v1621, 16
      %v1881 = vpop.permute.xlu0 %1880
      %1882 = vrot.lane.b32.xlu0 %v1635, 16
      %v1883 = vpop.permute.xlu0 %1882
      %1884 = vrot.lane.b32.xlu0 %v1645, 16
      %v1885 = vpop.permute.xlu0 %1884
      %1886 = vrot.lane.b32.xlu0 %v1659, 16
      %v1887 = vpop.permute.xlu0 %1886
      %1888 = vrot.lane.b32.xlu0 %v1669, 16
      %v1889 = vpop.permute.xlu0 %1888
      %1890 = vrot.lane.b32.xlu0 %v1683, 16
      %v1891 = vpop.permute.xlu0 %1890
      %1892 = vrot.lane.b32.xlu0 %v1693, 16
      %v1893 = vpop.permute.xlu0 %1892
      %1894 = vrot.lane.b32.xlu0 %v1707, 16
      %v1895 = vpop.permute.xlu0 %1894
      %1896 = vrot.lane.b32.xlu0 %v1717, 16
      %v1897 = vpop.permute.xlu0 %1896
      %1898 = vrot.lane.b32.xlu0 %v1731, 16
      %v1899 = vpop.permute.xlu0 %1898
      %1900 = vrot.lane.b32.xlu0 %v1741, 16
      %v1901 = vpop.permute.xlu0 %1900
      %1902 = vrot.lane.b32.xlu0 %v1755, 16
      %v1903 = vpop.permute.xlu0 %1902
      %1904 = vrot.lane.b32.xlu0 %v1765, 16
      %v1905 = vpop.permute.xlu0 %1904
      %1906 = vrot.lane.b32.xlu0 %v1779, 16
      %v1907 = vpop.permute.xlu0 %1906
      %1908 = vrot.lane.b32.xlu0 %v1789, 16
      %v1909 = vpop.permute.xlu0 %1908
      %1910 = vrot.lane.b32.xlu0 %v1803, 16
      %v1911 = vpop.permute.xlu0 %1910
      %1912 = vrot.lane.b32.xlu0 %v1813, 16
      %v1913 = vpop.permute.xlu0 %1912
      %1914 = vrot.lane.b32.xlu0 %v1827, 16
      %v1915 = vpop.permute.xlu0 %1914
      %1916 = vrot.lane.b32.xlu0 %v1837, 16
      %v1917 = vpop.permute.xlu0 %1916
      %1918 = vrot.lane.b32.xlu0 %v1851, 16
      %v1919 = vpop.permute.xlu0 %1918
      %1920 = vrot.lane.b32.xlu0 %v1861, 16
      %v1921 = vpop.permute.xlu0 %1920
      %vm1952 = vcmask 158848
      %1953 = vst.msk [vmem:[#allocation2] sm:$0xf] %vm1952, %v1863
      %1954 = vst.msk [vmem:[#allocation2 + $0x4] sm:$0xf] %vm1952, %v1865
      %1955 = vst.msk [vmem:[#allocation2 + $0x8] sm:$0xf] %vm1952, %v1867
      %1956 = vst.msk [vmem:[#allocation2 + $0xc] sm:$0xf] %vm1952, %v1869
      %1957 = vst.msk [vmem:[#allocation2 + $0x10] sm:$0xf] %vm1952, %v1871
      %1958 = vst.msk [vmem:[#allocation2 + $0x14] sm:$0xf] %vm1952, %v1873
      %1959 = vst.msk [vmem:[#allocation2 + $0x18] sm:$0xf] %vm1952, %v1875
      %1960 = vst.msk [vmem:[#allocation2 + $0x1c] sm:$0xf] %vm1952, %v1877
      %1961 = vst.msk [vmem:[#allocation2 + $0x20] sm:$0xf] %vm1952, %v1879
      %1962 = vst.msk [vmem:[#allocation2 + $0x24] sm:$0xf] %vm1952, %v1881
      %1963 = vst.msk [vmem:[#allocation2 + $0x28] sm:$0xf] %vm1952, %v1883
      %1964 = vst.msk [vmem:[#allocation2 + $0x2c] sm:$0xf] %vm1952, %v1885
      %1965 = vst.msk [vmem:[#allocation2 + $0x30] sm:$0xf] %vm1952, %v1887
      %1966 = vst.msk [vmem:[#allocation2 + $0x34] sm:$0xf] %vm1952, %v1889
      %1967 = vst.msk [vmem:[#allocation2 + $0x38] sm:$0xf] %vm1952, %v1891
      %1968 = vst.msk [vmem:[#allocation2 + $0x3c] sm:$0xf] %vm1952, %v1893
      %1969 = vst.msk [vmem:[#allocation2 + $0x40] sm:$0xf] %vm1952, %v1895
      %1970 = vst.msk [vmem:[#allocation2 + $0x44] sm:$0xf] %vm1952, %v1897
      %1971 = vst.msk [vmem:[#allocation2 + $0x48] sm:$0xf] %vm1952, %v1899
      %1972 = vst.msk [vmem:[#allocation2 + $0x4c] sm:$0xf] %vm1952, %v1901
      %1973 = vst.msk [vmem:[#allocation2 + $0x50] sm:$0xf] %vm1952, %v1903
      %1974 = vst.msk [vmem:[#allocation2 + $0x54] sm:$0xf] %vm1952, %v1905
      %1975 = vst.msk [vmem:[#allocation2 + $0x58] sm:$0xf] %vm1952, %v1907
      %1976 = vst.msk [vmem:[#allocation2 + $0x5c] sm:$0xf] %vm1952, %v1909
      %1977 = vst.msk [vmem:[#allocation2 + $0x60] sm:$0xf] %vm1952, %v1911
      %1978 = vst.msk [vmem:[#allocation2 + $0x64] sm:$0xf] %vm1952, %v1913
      %1979 = vst.msk [vmem:[#allocation2 + $0x68] sm:$0xf] %vm1952, %v1915
      %1980 = vst.msk [vmem:[#allocation2 + $0x6c] sm:$0xf] %vm1952, %v1917
      %1981 = vst.msk [vmem:[#allocation2 + $0x70] sm:$0xf] %vm1952, %v1919
      %1982 = vst.msk [vmem:[#allocation2 + $0x74] sm:$0xf] %vm1952, %v1921
      %v1983 = vld [vmem:[%s278] sm:$0xf]
      %v1984 = vld [vmem:[%s278 + $0x4] sm:$0xf]
      %v1985 = vld [vmem:[%s278 + $0x8] sm:$0x1]
      %v1987 = vshrl.u32 %v1983, 16
      %v1989 = vrot.slane %v1987, 4
      %v1990 = vshll.u32 %v1983, 16
      %v1992 = vrot.slane %v1990, 5
      %v1993 = vor.u32 %v1989, %v1992
      %v1994 = vrot.slane %v1993, 4
      %v1996 = vshll.u32 %v1984, 16
      %v1998 = vrot.slane %v1996, 5
      %v1999 = vsel %vm409, %v1994, %v1998
      %v2000 = vshrl.u32 %v1984, 16
      %v2002 = vrot.slane %v2000, 4
      %v2003 = vor.u32 %v2002, %v1998
      %v2004 = vrot.slane %v2003, 4
      %v2006 = vshll.u32 %v1985, 16
      %v2008 = vrot.slane %v2006, 5
      %v2009 = vsel %vm409, %v2004, %v2008
      %2010 = vrot.lane.b32.xlu0 %v1999, 16
      %v2011 = vpop.permute.xlu0 %2010
      %2012 = vrot.lane.b32.xlu0 %v2009, 16
      %v2013 = vpop.permute.xlu0 %2012
      %2016 = vst.msk [vmem:[#allocation2 + $0x78] sm:$0xf] %vm1952, %v2011
      %2017 = vst.msk [vmem:[#allocation2 + $0x7c] sm:$0xf] %vm1952, %v2013
      %v2018 = vld [vmem:[%s1263] sm:$0xe]
      %v2019 = vld [vmem:[%s1263 + $0x4] sm:$0xf]
      %v2020 = vld [vmem:[%s1263 + $0x8] sm:$0x1]
      %v2021 = vld [vmem:[%s1263 + $0xc] sm:$0xe]
      %v2022 = vld [vmem:[%s1263 + $0x10] sm:$0xf]
      %v2023 = vld [vmem:[%s1263 + $0x14] sm:$0x1]
      %v2024 = vld [vmem:[%s1263 + $0x18] sm:$0xe]
      %v2025 = vld [vmem:[%s1263 + $0x1c] sm:$0xf]
      %v2026 = vld [vmem:[%s1263 + $0x20] sm:$0x1]
      %v2027 = vld [vmem:[%s1263 + $0x24] sm:$0xe]
      %v2028 = vld [vmem:[%s1263 + $0x28] sm:$0xf]
      %v2029 = vld [vmem:[%s1263 + $0x2c] sm:$0x1]
      %v2030 = vld [vmem:[%s1263 + $0x30] sm:$0xe]
      %v2031 = vld [vmem:[%s1263 + $0x34] sm:$0xf]
      %v2032 = vld [vmem:[%s1263 + $0x38] sm:$0x1]
      %v2033 = vld [vmem:[%s1263 + $0x3c] sm:$0xe]
      %v2034 = vld [vmem:[%s1263 + $0x40] sm:$0xf]
      %v2035 = vld [vmem:[%s1263 + $0x44] sm:$0x1]
      %v2036 = vld [vmem:[%s1263 + $0x48] sm:$0xe]
      %v2037 = vld [vmem:[%s1263 + $0x4c] sm:$0xf]
      %v2038 = vld [vmem:[%s1263 + $0x50] sm:$0x1]
      %v2039 = vld [vmem:[%s1263 + $0x54] sm:$0xe]
      %v2040 = vld [vmem:[%s1263 + $0x58] sm:$0xf]
      %v2041 = vld [vmem:[%s1263 + $0x5c] sm:$0x1]
      %v2042 = vld [vmem:[%s1263 + $0x60] sm:$0xe]
      %v2043 = vld [vmem:[%s1263 + $0x64] sm:$0xf]
      %v2044 = vld [vmem:[%s1263 + $0x68] sm:$0x1]
      %v2045 = vld [vmem:[%s1263 + $0x6c] sm:$0xe]
      %v2046 = vld [vmem:[%s1263 + $0x70] sm:$0xf]
      %v2047 = vld [vmem:[%s1263 + $0x74] sm:$0x1]
      %v2048 = vld [vmem:[%s1263 + $0x78] sm:$0xe]
      %v2049 = vld [vmem:[%s1263 + $0x7c] sm:$0xf]
      %v2050 = vld [vmem:[%s1263 + $0x80] sm:$0x1]
      %v2051 = vld [vmem:[%s1263 + $0x84] sm:$0xe]
      %v2052 = vld [vmem:[%s1263 + $0x88] sm:$0xf]
      %v2053 = vld [vmem:[%s1263 + $0x8c] sm:$0x1]
      %v2054 = vld [vmem:[%s1263 + $0x90] sm:$0xe]
      %v2055 = vld [vmem:[%s1263 + $0x94] sm:$0xf]
      %v2056 = vld [vmem:[%s1263 + $0x98] sm:$0x1]
      %v2057 = vld [vmem:[%s1263 + $0x9c] sm:$0xe]
      %v2058 = vld [vmem:[%s1263 + $0xa0] sm:$0xf]
      %v2059 = vld [vmem:[%s1263 + $0xa4] sm:$0x1]
      %v2060 = vld [vmem:[%s1263 + $0xa8] sm:$0xe]
      %v2061 = vld [vmem:[%s1263 + $0xac] sm:$0xf]
      %v2062 = vld [vmem:[%s1263 + $0xb0] sm:$0x1]
      %v2108 = vrot.slane %v2018, 5
      %v2109 = vrot.slane %v2108, 4
      %v2110 = vrot.slane %v2019, 5
      %v2111 = vsel %vm1021, %v2109, %v2110
      %v2112 = vrot.slane %v2110, 4
      %v2113 = vrot.slane %v2020, 5
      %v2114 = vsel %vm1021, %v2112, %v2113
      %v2115 = vrot.slane %v2021, 5
      %v2116 = vrot.slane %v2115, 4
      %v2117 = vrot.slane %v2022, 5
      %v2118 = vsel %vm1021, %v2116, %v2117
      %v2119 = vrot.slane %v2117, 4
      %v2120 = vrot.slane %v2023, 5
      %v2121 = vsel %vm1021, %v2119, %v2120
      %v2122 = vrot.slane %v2024, 5
      %v2123 = vrot.slane %v2122, 4
      %v2124 = vrot.slane %v2025, 5
      %v2125 = vsel %vm1021, %v2123, %v2124
      %v2126 = vrot.slane %v2124, 4
      %v2127 = vrot.slane %v2026, 5
      %v2128 = vsel %vm1021, %v2126, %v2127
      %v2129 = vrot.slane %v2027, 5
      %v2130 = vrot.slane %v2129, 4
      %v2131 = vrot.slane %v2028, 5
      %v2132 = vsel %vm1021, %v2130, %v2131
      %v2133 = vrot.slane %v2131, 4
      %v2134 = vrot.slane %v2029, 5
      %v2135 = vsel %vm1021, %v2133, %v2134
      %v2136 = vrot.slane %v2030, 5
      %v2137 = vrot.slane %v2136, 4
      %v2138 = vrot.slane %v2031, 5
      %v2139 = vsel %vm1021, %v2137, %v2138
      %v2140 = vrot.slane %v2138, 4
      %v2141 = vrot.slane %v2032, 5
      %v2142 = vsel %vm1021, %v2140, %v2141
      %v2143 = vrot.slane %v2033, 5
      %v2144 = vrot.slane %v2143, 4
      %v2145 = vrot.slane %v2034, 5
      %v2146 = vsel %vm1021, %v2144, %v2145
      %v2147 = vrot.slane %v2145, 4
      %v2148 = vrot.slane %v2035, 5
      %v2149 = vsel %vm1021, %v2147, %v2148
      %v2150 = vrot.slane %v2036, 5
      %v2151 = vrot.slane %v2150, 4
      %v2152 = vrot.slane %v2037, 5
      %v2153 = vsel %vm1021, %v2151, %v2152
      %v2154 = vrot.slane %v2152, 4
      %v2155 = vrot.slane %v2038, 5
      %v2156 = vsel %vm1021, %v2154, %v2155
      %v2157 = vrot.slane %v2039, 5
      %v2158 = vrot.slane %v2157, 4
      %v2159 = vrot.slane %v2040, 5
      %v2160 = vsel %vm1021, %v2158, %v2159
      %v2161 = vrot.slane %v2159, 4
      %v2162 = vrot.slane %v2041, 5
      %v2163 = vsel %vm1021, %v2161, %v2162
      %v2164 = vrot.slane %v2042, 5
      %v2165 = vrot.slane %v2164, 4
      %v2166 = vrot.slane %v2043, 5
      %v2167 = vsel %vm1021, %v2165, %v2166
      %v2168 = vrot.slane %v2166, 4
      %v2169 = vrot.slane %v2044, 5
      %v2170 = vsel %vm1021, %v2168, %v2169
      %v2171 = vrot.slane %v2045, 5
      %v2172 = vrot.slane %v2171, 4
      %v2173 = vrot.slane %v2046, 5
      %v2174 = vsel %vm1021, %v2172, %v2173
      %v2175 = vrot.slane %v2173, 4
      %v2176 = vrot.slane %v2047, 5
      %v2177 = vsel %vm1021, %v2175, %v2176
      %v2178 = vrot.slane %v2048, 5
      %v2179 = vrot.slane %v2178, 4
      %v2180 = vrot.slane %v2049, 5
      %v2181 = vsel %vm1021, %v2179, %v2180
      %v2182 = vrot.slane %v2180, 4
      %v2183 = vrot.slane %v2050, 5
      %v2184 = vsel %vm1021, %v2182, %v2183
      %v2185 = vrot.slane %v2051, 5
      %v2186 = vrot.slane %v2185, 4
      %v2187 = vrot.slane %v2052, 5
      %v2188 = vsel %vm1021, %v2186, %v2187
      %v2189 = vrot.slane %v2187, 4
      %v2190 = vrot.slane %v2053, 5
      %v2191 = vsel %vm1021, %v2189, %v2190
      %v2192 = vrot.slane %v2054, 5
      %v2193 = vrot.slane %v2192, 4
      %v2194 = vrot.slane %v2055, 5
      %v2195 = vsel %vm1021, %v2193, %v2194
      %v2196 = vrot.slane %v2194, 4
      %v2197 = vrot.slane %v2056, 5
      %v2198 = vsel %vm1021, %v2196, %v2197
      %v2199 = vrot.slane %v2057, 5
      %v2200 = vrot.slane %v2199, 4
      %v2201 = vrot.slane %v2058, 5
      %v2202 = vsel %vm1021, %v2200, %v2201
      %v2203 = vrot.slane %v2201, 4
      %v2204 = vrot.slane %v2059, 5
      %v2205 = vsel %vm1021, %v2203, %v2204
      %v2206 = vrot.slane %v2060, 5
      %v2207 = vrot.slane %v2206, 4
      %v2208 = vrot.slane %v2061, 5
      %v2209 = vsel %vm1021, %v2207, %v2208
      %v2210 = vrot.slane %v2208, 4
      %v2211 = vrot.slane %v2062, 5
      %v2212 = vsel %vm1021, %v2210, %v2211
      %2213 = vrot.lane.b32.xlu0 %v2111, 20
      %v2214 = vpop.permute.xlu0 %2213
      %2215 = vrot.lane.b32.xlu0 %v2114, 20
      %v2216 = vpop.permute.xlu0 %2215
      %2217 = vrot.lane.b32.xlu0 %v2118, 20
      %v2218 = vpop.permute.xlu0 %2217
      %2219 = vrot.lane.b32.xlu0 %v2121, 20
      %v2220 = vpop.permute.xlu0 %2219
      %2221 = vrot.lane.b32.xlu0 %v2125, 20
      %v2222 = vpop.permute.xlu0 %2221
      %2223 = vrot.lane.b32.xlu0 %v2128, 20
      %v2224 = vpop.permute.xlu0 %2223
      %2225 = vrot.lane.b32.xlu0 %v2132, 20
      %v2226 = vpop.permute.xlu0 %2225
      %2227 = vrot.lane.b32.xlu0 %v2135, 20
      %v2228 = vpop.permute.xlu0 %2227
      %2229 = vrot.lane.b32.xlu0 %v2139, 20
      %v2230 = vpop.permute.xlu0 %2229
      %2231 = vrot.lane.b32.xlu0 %v2142, 20
      %v2232 = vpop.permute.xlu0 %2231
      %2233 = vrot.lane.b32.xlu0 %v2146, 20
      %v2234 = vpop.permute.xlu0 %2233
      %2235 = vrot.lane.b32.xlu0 %v2149, 20
      %v2236 = vpop.permute.xlu0 %2235
      %2237 = vrot.lane.b32.xlu0 %v2153, 20
      %v2238 = vpop.permute.xlu0 %2237
      %2239 = vrot.lane.b32.xlu0 %v2156, 20
      %v2240 = vpop.permute.xlu0 %2239
      %2241 = vrot.lane.b32.xlu0 %v2160, 20
      %v2242 = vpop.permute.xlu0 %2241
      %2243 = vrot.lane.b32.xlu0 %v2163, 20
      %v2244 = vpop.permute.xlu0 %2243
      %2245 = vrot.lane.b32.xlu0 %v2167, 20
      %v2246 = vpop.permute.xlu0 %2245
      %2247 = vrot.lane.b32.xlu0 %v2170, 20
      %v2248 = vpop.permute.xlu0 %2247
      %2249 = vrot.lane.b32.xlu0 %v2174, 20
      %v2250 = vpop.permute.xlu0 %2249
      %2251 = vrot.lane.b32.xlu0 %v2177, 20
      %v2252 = vpop.permute.xlu0 %2251
      %2253 = vrot.lane.b32.xlu0 %v2181, 20
      %v2254 = vpop.permute.xlu0 %2253
      %2255 = vrot.lane.b32.xlu0 %v2184, 20
      %v2256 = vpop.permute.xlu0 %2255
      %2257 = vrot.lane.b32.xlu0 %v2188, 20
      %v2258 = vpop.permute.xlu0 %2257
      %2259 = vrot.lane.b32.xlu0 %v2191, 20
      %v2260 = vpop.permute.xlu0 %2259
      %2261 = vrot.lane.b32.xlu0 %v2195, 20
      %v2262 = vpop.permute.xlu0 %2261
      %2263 = vrot.lane.b32.xlu0 %v2198, 20
      %v2264 = vpop.permute.xlu0 %2263
      %2265 = vrot.lane.b32.xlu0 %v2202, 20
      %v2266 = vpop.permute.xlu0 %2265
      %2267 = vrot.lane.b32.xlu0 %v2205, 20
      %v2268 = vpop.permute.xlu0 %2267
      %2269 = vrot.lane.b32.xlu0 %v2209, 20
      %v2270 = vpop.permute.xlu0 %2269
      %2271 = vrot.lane.b32.xlu0 %v2212, 20
      %v2272 = vpop.permute.xlu0 %2271
      %vm2303 = vcmask 191648
      %2304 = vst.msk [vmem:[#allocation2] sm:$0xf] %vm2303, %v2214
      %2305 = vst.msk [vmem:[#allocation2 + $0x4] sm:$0xf] %vm2303, %v2216
      %2306 = vst.msk [vmem:[#allocation2 + $0x8] sm:$0xf] %vm2303, %v2218
      %2307 = vst.msk [vmem:[#allocation2 + $0xc] sm:$0xf] %vm2303, %v2220
      %2308 = vst.msk [vmem:[#allocation2 + $0x10] sm:$0xf] %vm2303, %v2222
      %2309 = vst.msk [vmem:[#allocation2 + $0x14] sm:$0xf] %vm2303, %v2224
      %2310 = vst.msk [vmem:[#allocation2 + $0x18] sm:$0xf] %vm2303, %v2226
      %2311 = vst.msk [vmem:[#allocation2 + $0x1c] sm:$0xf] %vm2303, %v2228
      %2312 = vst.msk [vmem:[#allocation2 + $0x20] sm:$0xf] %vm2303, %v2230
      %2313 = vst.msk [vmem:[#allocation2 + $0x24] sm:$0xf] %vm2303, %v2232
      %2314 = vst.msk [vmem:[#allocation2 + $0x28] sm:$0xf] %vm2303, %v2234
      %2315 = vst.msk [vmem:[#allocation2 + $0x2c] sm:$0xf] %vm2303, %v2236
      %2316 = vst.msk [vmem:[#allocation2 + $0x30] sm:$0xf] %vm2303, %v2238
      %2317 = vst.msk [vmem:[#allocation2 + $0x34] sm:$0xf] %vm2303, %v2240
      %2318 = vst.msk [vmem:[#allocation2 + $0x38] sm:$0xf] %vm2303, %v2242
      %2319 = vst.msk [vmem:[#allocation2 + $0x3c] sm:$0xf] %vm2303, %v2244
      %2320 = vst.msk [vmem:[#allocation2 + $0x40] sm:$0xf] %vm2303, %v2246
      %2321 = vst.msk [vmem:[#allocation2 + $0x44] sm:$0xf] %vm2303, %v2248
      %2322 = vst.msk [vmem:[#allocation2 + $0x48] sm:$0xf] %vm2303, %v2250
      %2323 = vst.msk [vmem:[#allocation2 + $0x4c] sm:$0xf] %vm2303, %v2252
      %2324 = vst.msk [vmem:[#allocation2 + $0x50] sm:$0xf] %vm2303, %v2254
      %2325 = vst.msk [vmem:[#allocation2 + $0x54] sm:$0xf] %vm2303, %v2256
      %2326 = vst.msk [vmem:[#allocation2 + $0x58] sm:$0xf] %vm2303, %v2258
      %2327 = vst.msk [vmem:[#allocation2 + $0x5c] sm:$0xf] %vm2303, %v2260
      %2328 = vst.msk [vmem:[#allocation2 + $0x60] sm:$0xf] %vm2303, %v2262
      %2329 = vst.msk [vmem:[#allocation2 + $0x64] sm:$0xf] %vm2303, %v2264
      %2330 = vst.msk [vmem:[#allocation2 + $0x68] sm:$0xf] %vm2303, %v2266
      %2331 = vst.msk [vmem:[#allocation2 + $0x6c] sm:$0xf] %vm2303, %v2268
      %2332 = vst.msk [vmem:[#allocation2 + $0x70] sm:$0xf] %vm2303, %v2270
      %2333 = vst.msk [vmem:[#allocation2 + $0x74] sm:$0xf] %vm2303, %v2272
      %v2334 = vld [vmem:[%s278] sm:$0xe]
      %v2335 = vld [vmem:[%s278 + $0x4] sm:$0xf]
      %v2336 = vld [vmem:[%s278 + $0x8] sm:$0x1]
      %v2340 = vrot.slane %v2334, 5
      %v2341 = vrot.slane %v2340, 4
      %v2342 = vrot.slane %v2335, 5
      %v2343 = vsel %vm1021, %v2341, %v2342
      %v2344 = vrot.slane %v2342, 4
      %v2345 = vrot.slane %v2336, 5
      %v2346 = vsel %vm1021, %v2344, %v2345
      %2347 = vrot.lane.b32.xlu0 %v2343, 20
      %v2348 = vpop.permute.xlu0 %2347
      %2349 = vrot.lane.b32.xlu0 %v2346, 20
      %v2350 = vpop.permute.xlu0 %2349
      %2353 = vst.msk [vmem:[#allocation2 + $0x78] sm:$0xf] %vm2303, %v2348
      %2354 = vst.msk [vmem:[#allocation2 + $0x7c] sm:$0xf] %vm2303, %v2350
      %s2355 = scalar_lea.vmem %s260, 24
      %v2356 = vld [vmem:[%s2355] sm:$0xf]
      %v2357 = vld [vmem:[%s2355 + $0x4] sm:$0xf]
      %v2358 = vld [vmem:[%s2355 + $0xc] sm:$0xf]
      %v2359 = vld [vmem:[%s2355 + $0x10] sm:$0xf]
      %v2360 = vld [vmem:[%s2355 + $0x18] sm:$0xf]
      %v2361 = vld [vmem:[%s2355 + $0x1c] sm:$0xf]
      %v2362 = vld [vmem:[%s2355 + $0x24] sm:$0xf]
      %v2363 = vld [vmem:[%s2355 + $0x28] sm:$0xf]
      %v2364 = vld [vmem:[%s2355 + $0x30] sm:$0xf]
      %v2365 = vld [vmem:[%s2355 + $0x34] sm:$0xf]
      %v2366 = vld [vmem:[%s2355 + $0x3c] sm:$0xf]
      %v2367 = vld [vmem:[%s2355 + $0x40] sm:$0xf]
      %v2368 = vld [vmem:[%s2355 + $0x48] sm:$0xf]
      %v2369 = vld [vmem:[%s2355 + $0x4c] sm:$0xf]
      %v2370 = vld [vmem:[%s2355 + $0x54] sm:$0xf]
      %v2371 = vld [vmem:[%s2355 + $0x58] sm:$0xf]
      %v2372 = vld [vmem:[%s2355 + $0x60] sm:$0xf]
      %v2373 = vld [vmem:[%s2355 + $0x64] sm:$0xf]
      %v2374 = vld [vmem:[%s2355 + $0x6c] sm:$0xf]
      %v2375 = vld [vmem:[%s2355 + $0x70] sm:$0xf]
      %v2376 = vld [vmem:[%s2355 + $0x78] sm:$0xf]
      %v2377 = vld [vmem:[%s2355 + $0x7c] sm:$0xf]
      %v2378 = vld [vmem:[%s2355 + $0x84] sm:$0xf]
      %v2379 = vld [vmem:[%s2355 + $0x88] sm:$0xf]
      %v2380 = vld [vmem:[%s2355 + $0x90] sm:$0xf]
      %v2381 = vld [vmem:[%s2355 + $0x94] sm:$0xf]
      %v2382 = vld [vmem:[%s2355 + $0x9c] sm:$0xf]
      %v2383 = vld [vmem:[%s2355 + $0xa0] sm:$0xf]
      %2412 = vrot.lane.b32.xlu0 %v2356, 24
      %v2413 = vpop.permute.xlu0 %2412
      %2414 = vrot.lane.b32.xlu0 %v2357, 24
      %v2415 = vpop.permute.xlu0 %2414
      %2416 = vrot.lane.b32.xlu0 %v2358, 24
      %v2417 = vpop.permute.xlu0 %2416
      %2418 = vrot.lane.b32.xlu0 %v2359, 24
      %v2419 = vpop.permute.xlu0 %2418
      %2420 = vrot.lane.b32.xlu0 %v2360, 24
      %v2421 = vpop.permute.xlu0 %2420
      %2422 = vrot.lane.b32.xlu0 %v2361, 24
      %v2423 = vpop.permute.xlu0 %2422
      %2424 = vrot.lane.b32.xlu0 %v2362, 24
      %v2425 = vpop.permute.xlu0 %2424
      %2426 = vrot.lane.b32.xlu0 %v2363, 24
      %v2427 = vpop.permute.xlu0 %2426
      %2428 = vrot.lane.b32.xlu0 %v2364, 24
      %v2429 = vpop.permute.xlu0 %2428
      %2430 = vrot.lane.b32.xlu0 %v2365, 24
      %v2431 = vpop.permute.xlu0 %2430
      %2432 = vrot.lane.b32.xlu0 %v2366, 24
      %v2433 = vpop.permute.xlu0 %2432
      %2434 = vrot.lane.b32.xlu0 %v2367, 24
      %v2435 = vpop.permute.xlu0 %2434
      %2436 = vrot.lane.b32.xlu0 %v2368, 24
      %v2437 = vpop.permute.xlu0 %2436
      %2438 = vrot.lane.b32.xlu0 %v2369, 24
      %v2439 = vpop.permute.xlu0 %2438
      %2440 = vrot.lane.b32.xlu0 %v2370, 24
      %v2441 = vpop.permute.xlu0 %2440
      %2442 = vrot.lane.b32.xlu0 %v2371, 24
      %v2443 = vpop.permute.xlu0 %2442
      %2444 = vrot.lane.b32.xlu0 %v2372, 24
      %v2445 = vpop.permute.xlu0 %2444
      %2446 = vrot.lane.b32.xlu0 %v2373, 24
      %v2447 = vpop.permute.xlu0 %2446
      %2448 = vrot.lane.b32.xlu0 %v2374, 24
      %v2449 = vpop.permute.xlu0 %2448
      %2450 = vrot.lane.b32.xlu0 %v2375, 24
      %v2451 = vpop.permute.xlu0 %2450
      %2452 = vrot.lane.b32.xlu0 %v2376, 24
      %v2453 = vpop.permute.xlu0 %2452
      %2454 = vrot.lane.b32.xlu0 %v2377, 24
      %v2455 = vpop.permute.xlu0 %2454
      %2456 = vrot.lane.b32.xlu0 %v2378, 24
      %v2457 = vpop.permute.xlu0 %2456
      %2458 = vrot.lane.b32.xlu0 %v2379, 24
      %v2459 = vpop.permute.xlu0 %2458
      %2460 = vrot.lane.b32.xlu0 %v2380, 24
      %v2461 = vpop.permute.xlu0 %2460
      %2462 = vrot.lane.b32.xlu0 %v2381, 24
      %v2463 = vpop.permute.xlu0 %2462
      %2464 = vrot.lane.b32.xlu0 %v2382, 24
      %v2465 = vpop.permute.xlu0 %2464
      %2466 = vrot.lane.b32.xlu0 %v2383, 24
      %v2467 = vpop.permute.xlu0 %2466
      %vm2496 = vcmask 224448
      %2497 = vst.msk [vmem:[#allocation2] sm:$0xf] %vm2496, %v2413
      %2498 = vst.msk [vmem:[#allocation2 + $0x4] sm:$0xf] %vm2496, %v2415
      %2499 = vst.msk [vmem:[#allocation2 + $0x8] sm:$0xf] %vm2496, %v2417
      %2500 = vst.msk [vmem:[#allocation2 + $0xc] sm:$0xf] %vm2496, %v2419
      %2501 = vst.msk [vmem:[#allocation2 + $0x10] sm:$0xf] %vm2496, %v2421
      %2502 = vst.msk [vmem:[#allocation2 + $0x14] sm:$0xf] %vm2496, %v2423
      %2503 = vst.msk [vmem:[#allocation2 + $0x18] sm:$0xf] %vm2496, %v2425
      %2504 = vst.msk [vmem:[#allocation2 + $0x1c] sm:$0xf] %vm2496, %v2427
      %2505 = vst.msk [vmem:[#allocation2 + $0x20] sm:$0xf] %vm2496, %v2429
      %2506 = vst.msk [vmem:[#allocation2 + $0x24] sm:$0xf] %vm2496, %v2431
      %2507 = vst.msk [vmem:[#allocation2 + $0x28] sm:$0xf] %vm2496, %v2433
      %2508 = vst.msk [vmem:[#allocation2 + $0x2c] sm:$0xf] %vm2496, %v2435
      %2509 = vst.msk [vmem:[#allocation2 + $0x30] sm:$0xf] %vm2496, %v2437
      %2510 = vst.msk [vmem:[#allocation2 + $0x34] sm:$0xf] %vm2496, %v2439
      %2511 = vst.msk [vmem:[#allocation2 + $0x38] sm:$0xf] %vm2496, %v2441
      %2512 = vst.msk [vmem:[#allocation2 + $0x3c] sm:$0xf] %vm2496, %v2443
      %2513 = vst.msk [vmem:[#allocation2 + $0x40] sm:$0xf] %vm2496, %v2445
      %2514 = vst.msk [vmem:[#allocation2 + $0x44] sm:$0xf] %vm2496, %v2447
      %2515 = vst.msk [vmem:[#allocation2 + $0x48] sm:$0xf] %vm2496, %v2449
      %2516 = vst.msk [vmem:[#allocation2 + $0x4c] sm:$0xf] %vm2496, %v2451
      %2517 = vst.msk [vmem:[#allocation2 + $0x50] sm:$0xf] %vm2496, %v2453
      %2518 = vst.msk [vmem:[#allocation2 + $0x54] sm:$0xf] %vm2496, %v2455
      %2519 = vst.msk [vmem:[#allocation2 + $0x58] sm:$0xf] %vm2496, %v2457
      %2520 = vst.msk [vmem:[#allocation2 + $0x5c] sm:$0xf] %vm2496, %v2459
      %2521 = vst.msk [vmem:[#allocation2 + $0x60] sm:$0xf] %vm2496, %v2461
      %2522 = vst.msk [vmem:[#allocation2 + $0x64] sm:$0xf] %vm2496, %v2463
      %2523 = vst.msk [vmem:[#allocation2 + $0x68] sm:$0xf] %vm2496, %v2465
      %2524 = vst.msk [vmem:[#allocation2 + $0x6c] sm:$0xf] %vm2496, %v2467
      %v2525 = vld [vmem:[%s278] sm:$0xf]
      %v2526 = vld [vmem:[%s278 + $0x4] sm:$0xf]
      %v2527 = vld [vmem:[%s278 + $0xc] sm:$0xf]
      %v2528 = vld [vmem:[%s278 + $0x10] sm:$0xf]
      %2533 = vrot.lane.b32.xlu0 %v2525, 24
      %v2534 = vpop.permute.xlu0 %2533
      %2535 = vrot.lane.b32.xlu0 %v2526, 24
      %v2536 = vpop.permute.xlu0 %2535
      %2537 = vrot.lane.b32.xlu0 %v2527, 24
      %v2538 = vpop.permute.xlu0 %2537
      %2539 = vrot.lane.b32.xlu0 %v2528, 24
      %v2540 = vpop.permute.xlu0 %2539
      %2545 = vst.msk [vmem:[#allocation2 + $0x70] sm:$0xf] %vm2496, %v2534
      %2546 = vst.msk [vmem:[#allocation2 + $0x74] sm:$0xf] %vm2496, %v2536
      %2547 = vst.msk [vmem:[#allocation2 + $0x78] sm:$0xf] %vm2496, %v2538
      %2548 = vst.msk [vmem:[#allocation2 + $0x7c] sm:$0xf] %vm2496, %v2540
      %v2549 = vld [vmem:[%s2355] sm:$0xf]
      %v2550 = vld [vmem:[%s2355 + $0x4] sm:$0xf]
      %v2551 = vld [vmem:[%s2355 + $0x8] sm:$0x1]
      %v2552 = vld [vmem:[%s2355 + $0xc] sm:$0xf]
      %v2553 = vld [vmem:[%s2355 + $0x10] sm:$0xf]
      %v2554 = vld [vmem:[%s2355 + $0x14] sm:$0x1]
      %v2555 = vld [vmem:[%s2355 + $0x18] sm:$0xf]
      %v2556 = vld [vmem:[%s2355 + $0x1c] sm:$0xf]
      %v2557 = vld [vmem:[%s2355 + $0x20] sm:$0x1]
      %v2558 = vld [vmem:[%s2355 + $0x24] sm:$0xf]
      %v2559 = vld [vmem:[%s2355 + $0x28] sm:$0xf]
      %v2560 = vld [vmem:[%s2355 + $0x2c] sm:$0x1]
      %v2561 = vld [vmem:[%s2355 + $0x30] sm:$0xf]
      %v2562 = vld [vmem:[%s2355 + $0x34] sm:$0xf]
      %v2563 = vld [vmem:[%s2355 + $0x38] sm:$0x1]
      %v2564 = vld [vmem:[%s2355 + $0x3c] sm:$0xf]
      %v2565 = vld [vmem:[%s2355 + $0x40] sm:$0xf]
      %v2566 = vld [vmem:[%s2355 + $0x44] sm:$0x1]
      %v2567 = vld [vmem:[%s2355 + $0x48] sm:$0xf]
      %v2568 = vld [vmem:[%s2355 + $0x4c] sm:$0xf]
      %v2569 = vld [vmem:[%s2355 + $0x50] sm:$0x1]
      %v2570 = vld [vmem:[%s2355 + $0x54] sm:$0xf]
      %v2571 = vld [vmem:[%s2355 + $0x58] sm:$0xf]
      %v2572 = vld [vmem:[%s2355 + $0x5c] sm:$0x1]
      %v2573 = vld [vmem:[%s2355 + $0x60] sm:$0xf]
      %v2574 = vld [vmem:[%s2355 + $0x64] sm:$0xf]
      %v2575 = vld [vmem:[%s2355 + $0x68] sm:$0x1]
      %v2576 = vld [vmem:[%s2355 + $0x6c] sm:$0xf]
      %v2577 = vld [vmem:[%s2355 + $0x70] sm:$0xf]
      %v2578 = vld [vmem:[%s2355 + $0x74] sm:$0x1]
      %v2579 = vld [vmem:[%s2355 + $0x78] sm:$0xf]
      %v2580 = vld [vmem:[%s2355 + $0x7c] sm:$0xf]
      %v2581 = vld [vmem:[%s2355 + $0x80] sm:$0x1]
      %v2582 = vld [vmem:[%s2355 + $0x84] sm:$0xf]
      %v2583 = vld [vmem:[%s2355 + $0x88] sm:$0xf]
      %v2584 = vld [vmem:[%s2355 + $0x8c] sm:$0x1]
      %v2585 = vld [vmem:[%s2355 + $0x90] sm:$0xf]
      %v2586 = vld [vmem:[%s2355 + $0x94] sm:$0xf]
      %v2587 = vld [vmem:[%s2355 + $0x98] sm:$0x1]
      %v2588 = vld [vmem:[%s2355 + $0x9c] sm:$0xf]
      %v2589 = vld [vmem:[%s2355 + $0xa0] sm:$0xf]
      %v2590 = vld [vmem:[%s2355 + $0xa4] sm:$0x1]
      %v2592 = vshrl.u32 %v2549, 16
      %v2594 = vrot.slane %v2592, 4
      %v2595 = vshll.u32 %v2549, 16
      %v2597 = vrot.slane %v2595, 5
      %v2598 = vor.u32 %v2594, %v2597
      %v2599 = vrot.slane %v2598, 4
      %v2601 = vshll.u32 %v2550, 16
      %v2603 = vrot.slane %v2601, 5
      %v2604 = vsel %vm409, %v2599, %v2603
      %v2605 = vshrl.u32 %v2550, 16
      %v2607 = vrot.slane %v2605, 4
      %v2608 = vor.u32 %v2607, %v2603
      %v2609 = vrot.slane %v2608, 4
      %v2611 = vshll.u32 %v2551, 16
      %v2613 = vrot.slane %v2611, 5
      %v2614 = vsel %vm409, %v2609, %v2613
      %v2616 = vshrl.u32 %v2552, 16
      %v2618 = vrot.slane %v2616, 4
      %v2619 = vshll.u32 %v2552, 16
      %v2621 = vrot.slane %v2619, 5
      %v2622 = vor.u32 %v2618, %v2621
      %v2623 = vrot.slane %v2622, 4
      %v2625 = vshll.u32 %v2553, 16
      %v2627 = vrot.slane %v2625, 5
      %v2628 = vsel %vm409, %v2623, %v2627
      %v2629 = vshrl.u32 %v2553, 16
      %v2631 = vrot.slane %v2629, 4
      %v2632 = vor.u32 %v2631, %v2627
      %v2633 = vrot.slane %v2632, 4
      %v2635 = vshll.u32 %v2554, 16
      %v2637 = vrot.slane %v2635, 5
      %v2638 = vsel %vm409, %v2633, %v2637
      %v2640 = vshrl.u32 %v2555, 16
      %v2642 = vrot.slane %v2640, 4
      %v2643 = vshll.u32 %v2555, 16
      %v2645 = vrot.slane %v2643, 5
      %v2646 = vor.u32 %v2642, %v2645
      %v2647 = vrot.slane %v2646, 4
      %v2649 = vshll.u32 %v2556, 16
      %v2651 = vrot.slane %v2649, 5
      %v2652 = vsel %vm409, %v2647, %v2651
      %v2653 = vshrl.u32 %v2556, 16
      %v2655 = vrot.slane %v2653, 4
      %v2656 = vor.u32 %v2655, %v2651
      %v2657 = vrot.slane %v2656, 4
      %v2659 = vshll.u32 %v2557, 16
      %v2661 = vrot.slane %v2659, 5
      %v2662 = vsel %vm409, %v2657, %v2661
      %v2664 = vshrl.u32 %v2558, 16
      %v2666 = vrot.slane %v2664, 4
      %v2667 = vshll.u32 %v2558, 16
      %v2669 = vrot.slane %v2667, 5
      %v2670 = vor.u32 %v2666, %v2669
      %v2671 = vrot.slane %v2670, 4
      %v2673 = vshll.u32 %v2559, 16
      %v2675 = vrot.slane %v2673, 5
      %v2676 = vsel %vm409, %v2671, %v2675
      %v2677 = vshrl.u32 %v2559, 16
      %v2679 = vrot.slane %v2677, 4
      %v2680 = vor.u32 %v2679, %v2675
      %v2681 = vrot.slane %v2680, 4
      %v2683 = vshll.u32 %v2560, 16
      %v2685 = vrot.slane %v2683, 5
      %v2686 = vsel %vm409, %v2681, %v2685
      %v2688 = vshrl.u32 %v2561, 16
      %v2690 = vrot.slane %v2688, 4
      %v2691 = vshll.u32 %v2561, 16
      %v2693 = vrot.slane %v2691, 5
      %v2694 = vor.u32 %v2690, %v2693
      %v2695 = vrot.slane %v2694, 4
      %v2697 = vshll.u32 %v2562, 16
      %v2699 = vrot.slane %v2697, 5
      %v2700 = vsel %vm409, %v2695, %v2699
      %v2701 = vshrl.u32 %v2562, 16
      %v2703 = vrot.slane %v2701, 4
      %v2704 = vor.u32 %v2703, %v2699
      %v2705 = vrot.slane %v2704, 4
      %v2707 = vshll.u32 %v2563, 16
      %v2709 = vrot.slane %v2707, 5
      %v2710 = vsel %vm409, %v2705, %v2709
      %v2712 = vshrl.u32 %v2564, 16
      %v2714 = vrot.slane %v2712, 4
      %v2715 = vshll.u32 %v2564, 16
      %v2717 = vrot.slane %v2715, 5
      %v2718 = vor.u32 %v2714, %v2717
      %v2719 = vrot.slane %v2718, 4
      %v2721 = vshll.u32 %v2565, 16
      %v2723 = vrot.slane %v2721, 5
      %v2724 = vsel %vm409, %v2719, %v2723
      %v2725 = vshrl.u32 %v2565, 16
      %v2727 = vrot.slane %v2725, 4
      %v2728 = vor.u32 %v2727, %v2723
      %v2729 = vrot.slane %v2728, 4
      %v2731 = vshll.u32 %v2566, 16
      %v2733 = vrot.slane %v2731, 5
      %v2734 = vsel %vm409, %v2729, %v2733
      %v2736 = vshrl.u32 %v2567, 16
      %v2738 = vrot.slane %v2736, 4
      %v2739 = vshll.u32 %v2567, 16
      %v2741 = vrot.slane %v2739, 5
      %v2742 = vor.u32 %v2738, %v2741
      %v2743 = vrot.slane %v2742, 4
      %v2745 = vshll.u32 %v2568, 16
      %v2747 = vrot.slane %v2745, 5
      %v2748 = vsel %vm409, %v2743, %v2747
      %v2749 = vshrl.u32 %v2568, 16
      %v2751 = vrot.slane %v2749, 4
      %v2752 = vor.u32 %v2751, %v2747
      %v2753 = vrot.slane %v2752, 4
      %v2755 = vshll.u32 %v2569, 16
      %v2757 = vrot.slane %v2755, 5
      %v2758 = vsel %vm409, %v2753, %v2757
      %v2760 = vshrl.u32 %v2570, 16
      %v2762 = vrot.slane %v2760, 4
      %v2763 = vshll.u32 %v2570, 16
      %v2765 = vrot.slane %v2763, 5
      %v2766 = vor.u32 %v2762, %v2765
      %v2767 = vrot.slane %v2766, 4
      %v2769 = vshll.u32 %v2571, 16
      %v2771 = vrot.slane %v2769, 5
      %v2772 = vsel %vm409, %v2767, %v2771
      %v2773 = vshrl.u32 %v2571, 16
      %v2775 = vrot.slane %v2773, 4
      %v2776 = vor.u32 %v2775, %v2771
      %v2777 = vrot.slane %v2776, 4
      %v2779 = vshll.u32 %v2572, 16
      %v2781 = vrot.slane %v2779, 5
      %v2782 = vsel %vm409, %v2777, %v2781
      %v2784 = vshrl.u32 %v2573, 16
      %v2786 = vrot.slane %v2784, 4
      %v2787 = vshll.u32 %v2573, 16
      %v2789 = vrot.slane %v2787, 5
      %v2790 = vor.u32 %v2786, %v2789
      %v2791 = vrot.slane %v2790, 4
      %v2793 = vshll.u32 %v2574, 16
      %v2795 = vrot.slane %v2793, 5
      %v2796 = vsel %vm409, %v2791, %v2795
      %v2797 = vshrl.u32 %v2574, 16
      %v2799 = vrot.slane %v2797, 4
      %v2800 = vor.u32 %v2799, %v2795
      %v2801 = vrot.slane %v2800, 4
      %v2803 = vshll.u32 %v2575, 16
      %v2805 = vrot.slane %v2803, 5
      %v2806 = vsel %vm409, %v2801, %v2805
      %v2808 = vshrl.u32 %v2576, 16
      %v2810 = vrot.slane %v2808, 4
      %v2811 = vshll.u32 %v2576, 16
      %v2813 = vrot.slane %v2811, 5
      %v2814 = vor.u32 %v2810, %v2813
      %v2815 = vrot.slane %v2814, 4
      %v2817 = vshll.u32 %v2577, 16
      %v2819 = vrot.slane %v2817, 5
      %v2820 = vsel %vm409, %v2815, %v2819
      %v2821 = vshrl.u32 %v2577, 16
      %v2823 = vrot.slane %v2821, 4
      %v2824 = vor.u32 %v2823, %v2819
      %v2825 = vrot.slane %v2824, 4
      %v2827 = vshll.u32 %v2578, 16
      %v2829 = vrot.slane %v2827, 5
      %v2830 = vsel %vm409, %v2825, %v2829
      %v2832 = vshrl.u32 %v2579, 16
      %v2834 = vrot.slane %v2832, 4
      %v2835 = vshll.u32 %v2579, 16
      %v2837 = vrot.slane %v2835, 5
      %v2838 = vor.u32 %v2834, %v2837
      %v2839 = vrot.slane %v2838, 4
      %v2841 = vshll.u32 %v2580, 16
      %v2843 = vrot.slane %v2841, 5
      %v2844 = vsel %vm409, %v2839, %v2843
      %v2845 = vshrl.u32 %v2580, 16
      %v2847 = vrot.slane %v2845, 4
      %v2848 = vor.u32 %v2847, %v2843
      %v2849 = vrot.slane %v2848, 4
      %v2851 = vshll.u32 %v2581, 16
      %v2853 = vrot.slane %v2851, 5
      %v2854 = vsel %vm409, %v2849, %v2853
      %v2856 = vshrl.u32 %v2582, 16
      %v2858 = vrot.slane %v2856, 4
      %v2859 = vshll.u32 %v2582, 16
      %v2861 = vrot.slane %v2859, 5
      %v2862 = vor.u32 %v2858, %v2861
      %v2863 = vrot.slane %v2862, 4
      %v2865 = vshll.u32 %v2583, 16
      %v2867 = vrot.slane %v2865, 5
      %v2868 = vsel %vm409, %v2863, %v2867
      %v2869 = vshrl.u32 %v2583, 16
      %v2871 = vrot.slane %v2869, 4
      %v2872 = vor.u32 %v2871, %v2867
      %v2873 = vrot.slane %v2872, 4
      %v2875 = vshll.u32 %v2584, 16
      %v2877 = vrot.slane %v2875, 5
      %v2878 = vsel %vm409, %v2873, %v2877
      %v2880 = vshrl.u32 %v2585, 16
      %v2882 = vrot.slane %v2880, 4
      %v2883 = vshll.u32 %v2585, 16
      %v2885 = vrot.slane %v2883, 5
      %v2886 = vor.u32 %v2882, %v2885
      %v2887 = vrot.slane %v2886, 4
      %v2889 = vshll.u32 %v2586, 16
      %v2891 = vrot.slane %v2889, 5
      %v2892 = vsel %vm409, %v2887, %v2891
      %v2893 = vshrl.u32 %v2586, 16
      %v2895 = vrot.slane %v2893, 4
      %v2896 = vor.u32 %v2895, %v2891
      %v2897 = vrot.slane %v2896, 4
      %v2899 = vshll.u32 %v2587, 16
      %v2901 = vrot.slane %v2899, 5
      %v2902 = vsel %vm409, %v2897, %v2901
      %v2904 = vshrl.u32 %v2588, 16
      %v2906 = vrot.slane %v2904, 4
      %v2907 = vshll.u32 %v2588, 16
      %v2909 = vrot.slane %v2907, 5
      %v2910 = vor.u32 %v2906, %v2909
      %v2911 = vrot.slane %v2910, 4
      %v2913 = vshll.u32 %v2589, 16
      %v2915 = vrot.slane %v2913, 5
      %v2916 = vsel %vm409, %v2911, %v2915
      %v2917 = vshrl.u32 %v2589, 16
      %v2919 = vrot.slane %v2917, 4
      %v2920 = vor.u32 %v2919, %v2915
      %v2921 = vrot.slane %v2920, 4
      %v2923 = vshll.u32 %v2590, 16
      %v2925 = vrot.slane %v2923, 5
      %v2926 = vsel %vm409, %v2921, %v2925
      %2927 = vrot.lane.b32.xlu0 %v2604, 28
      %v2928 = vpop.permute.xlu0 %2927
      %2929 = vrot.lane.b32.xlu0 %v2614, 28
      %v2930 = vpop.permute.xlu0 %2929
      %2931 = vrot.lane.b32.xlu0 %v2628, 28
      %v2932 = vpop.permute.xlu0 %2931
      %2933 = vrot.lane.b32.xlu0 %v2638, 28
      %v2934 = vpop.permute.xlu0 %2933
      %2935 = vrot.lane.b32.xlu0 %v2652, 28
      %v2936 = vpop.permute.xlu0 %2935
      %2937 = vrot.lane.b32.xlu0 %v2662, 28
      %v2938 = vpop.permute.xlu0 %2937
      %2939 = vrot.lane.b32.xlu0 %v2676, 28
      %v2940 = vpop.permute.xlu0 %2939
      %2941 = vrot.lane.b32.xlu0 %v2686, 28
      %v2942 = vpop.permute.xlu0 %2941
      %2943 = vrot.lane.b32.xlu0 %v2700, 28
      %v2944 = vpop.permute.xlu0 %2943
      %2945 = vrot.lane.b32.xlu0 %v2710, 28
      %v2946 = vpop.permute.xlu0 %2945
      %2947 = vrot.lane.b32.xlu0 %v2724, 28
      %v2948 = vpop.permute.xlu0 %2947
      %2949 = vrot.lane.b32.xlu0 %v2734, 28
      %v2950 = vpop.permute.xlu0 %2949
      %2951 = vrot.lane.b32.xlu0 %v2748, 28
      %v2952 = vpop.permute.xlu0 %2951
      %2953 = vrot.lane.b32.xlu0 %v2758, 28
      %v2954 = vpop.permute.xlu0 %2953
      %2955 = vrot.lane.b32.xlu0 %v2772, 28
      %v2956 = vpop.permute.xlu0 %2955
      %2957 = vrot.lane.b32.xlu0 %v2782, 28
      %v2958 = vpop.permute.xlu0 %2957
      %2959 = vrot.lane.b32.xlu0 %v2796, 28
      %v2960 = vpop.permute.xlu0 %2959
      %2961 = vrot.lane.b32.xlu0 %v2806, 28
      %v2962 = vpop.permute.xlu0 %2961
      %2963 = vrot.lane.b32.xlu0 %v2820, 28
      %v2964 = vpop.permute.xlu0 %2963
      %2965 = vrot.lane.b32.xlu0 %v2830, 28
      %v2966 = vpop.permute.xlu0 %2965
      %2967 = vrot.lane.b32.xlu0 %v2844, 28
      %v2968 = vpop.permute.xlu0 %2967
      %2969 = vrot.lane.b32.xlu0 %v2854, 28
      %v2970 = vpop.permute.xlu0 %2969
      %2971 = vrot.lane.b32.xlu0 %v2868, 28
      %v2972 = vpop.permute.xlu0 %2971
      %2973 = vrot.lane.b32.xlu0 %v2878, 28
      %v2974 = vpop.permute.xlu0 %2973
      %2975 = vrot.lane.b32.xlu0 %v2892, 28
      %v2976 = vpop.permute.xlu0 %2975
      %2977 = vrot.lane.b32.xlu0 %v2902, 28
      %v2978 = vpop.permute.xlu0 %2977
      %2979 = vrot.lane.b32.xlu0 %v2916, 28
      %v2980 = vpop.permute.xlu0 %2979
      %2981 = vrot.lane.b32.xlu0 %v2926, 28
      %v2982 = vpop.permute.xlu0 %2981
      %vm3011 = vcmask 257248
      %3012 = vst.msk [vmem:[#allocation2] sm:$0xf] %vm3011, %v2928
      %3013 = vst.msk [vmem:[#allocation2 + $0x4] sm:$0xf] %vm3011, %v2930
      %3014 = vst.msk [vmem:[#allocation2 + $0x8] sm:$0xf] %vm3011, %v2932
      %3015 = vst.msk [vmem:[#allocation2 + $0xc] sm:$0xf] %vm3011, %v2934
      %3016 = vst.msk [vmem:[#allocation2 + $0x10] sm:$0xf] %vm3011, %v2936
      %3017 = vst.msk [vmem:[#allocation2 + $0x14] sm:$0xf] %vm3011, %v2938
      %3018 = vst.msk [vmem:[#allocation2 + $0x18] sm:$0xf] %vm3011, %v2940
      %3019 = vst.msk [vmem:[#allocation2 + $0x1c] sm:$0xf] %vm3011, %v2942
      %3020 = vst.msk [vmem:[#allocation2 + $0x20] sm:$0xf] %vm3011, %v2944
      %3021 = vst.msk [vmem:[#allocation2 + $0x24] sm:$0xf] %vm3011, %v2946
      %3022 = vst.msk [vmem:[#allocation2 + $0x28] sm:$0xf] %vm3011, %v2948
      %3023 = vst.msk [vmem:[#allocation2 + $0x2c] sm:$0xf] %vm3011, %v2950
      %3024 = vst.msk [vmem:[#allocation2 + $0x30] sm:$0xf] %vm3011, %v2952
      %3025 = vst.msk [vmem:[#allocation2 + $0x34] sm:$0xf] %vm3011, %v2954
      %3026 = vst.msk [vmem:[#allocation2 + $0x38] sm:$0xf] %vm3011, %v2956
      %3027 = vst.msk [vmem:[#allocation2 + $0x3c] sm:$0xf] %vm3011, %v2958
      %3028 = vst.msk [vmem:[#allocation2 + $0x40] sm:$0xf] %vm3011, %v2960
      %3029 = vst.msk [vmem:[#allocation2 + $0x44] sm:$0xf] %vm3011, %v2962
      %3030 = vst.msk [vmem:[#allocation2 + $0x48] sm:$0xf] %vm3011, %v2964
      %3031 = vst.msk [vmem:[#allocation2 + $0x4c] sm:$0xf] %vm3011, %v2966
      %3032 = vst.msk [vmem:[#allocation2 + $0x50] sm:$0xf] %vm3011, %v2968
      %3033 = vst.msk [vmem:[#allocation2 + $0x54] sm:$0xf] %vm3011, %v2970
      %3034 = vst.msk [vmem:[#allocation2 + $0x58] sm:$0xf] %vm3011, %v2972
      %3035 = vst.msk [vmem:[#allocation2 + $0x5c] sm:$0xf] %vm3011, %v2974
      %3036 = vst.msk [vmem:[#allocation2 + $0x60] sm:$0xf] %vm3011, %v2976
      %3037 = vst.msk [vmem:[#allocation2 + $0x64] sm:$0xf] %vm3011, %v2978
      %3038 = vst.msk [vmem:[#allocation2 + $0x68] sm:$0xf] %vm3011, %v2980
      %3039 = vst.msk [vmem:[#allocation2 + $0x6c] sm:$0xf] %vm3011, %v2982
      %v3040 = vld [vmem:[%s278] sm:$0xf]
      %v3041 = vld [vmem:[%s278 + $0x4] sm:$0xf]
      %v3042 = vld [vmem:[%s278 + $0x8] sm:$0x1]
      %v3043 = vld [vmem:[%s278 + $0xc] sm:$0xf]
      %v3044 = vld [vmem:[%s278 + $0x10] sm:$0xf]
      %v3045 = vld [vmem:[%s278 + $0x14] sm:$0x1]
      %v3047 = vshrl.u32 %v3040, 16
      %v3049 = vrot.slane %v3047, 4
      %v3050 = vshll.u32 %v3040, 16
      %v3052 = vrot.slane %v3050, 5
      %v3053 = vor.u32 %v3049, %v3052
      %v3054 = vrot.slane %v3053, 4
      %v3056 = vshll.u32 %v3041, 16
      %v3058 = vrot.slane %v3056, 5
      %v3059 = vsel %vm409, %v3054, %v3058
      %v3060 = vshrl.u32 %v3041, 16
      %v3062 = vrot.slane %v3060, 4
      %v3063 = vor.u32 %v3062, %v3058
      %v3064 = vrot.slane %v3063, 4
      %v3066 = vshll.u32 %v3042, 16
      %v3068 = vrot.slane %v3066, 5
      %v3069 = vsel %vm409, %v3064, %v3068
      %v3071 = vshrl.u32 %v3043, 16
      %v3073 = vrot.slane %v3071, 4
      %v3074 = vshll.u32 %v3043, 16
      %v3076 = vrot.slane %v3074, 5
      %v3077 = vor.u32 %v3073, %v3076
      %v3078 = vrot.slane %v3077, 4
      %v3080 = vshll.u32 %v3044, 16
      %v3082 = vrot.slane %v3080, 5
      %v3083 = vsel %vm409, %v3078, %v3082
      %v3084 = vshrl.u32 %v3044, 16
      %v3086 = vrot.slane %v3084, 4
      %v3087 = vor.u32 %v3086, %v3082
      %v3088 = vrot.slane %v3087, 4
      %v3090 = vshll.u32 %v3045, 16
      %v3092 = vrot.slane %v3090, 5
      %v3093 = vsel %vm409, %v3088, %v3092
      %3094 = vrot.lane.b32.xlu0 %v3059, 28
      %v3095 = vpop.permute.xlu0 %3094
      %3096 = vrot.lane.b32.xlu0 %v3069, 28
      %v3097 = vpop.permute.xlu0 %3096
      %3098 = vrot.lane.b32.xlu0 %v3083, 28
      %v3099 = vpop.permute.xlu0 %3098
      %3100 = vrot.lane.b32.xlu0 %v3093, 28
      %v3101 = vpop.permute.xlu0 %3100
      %3106 = vst.msk [vmem:[#allocation2 + $0x70] sm:$0xf] %vm3011, %v3095
      %3107 = vst.msk [vmem:[#allocation2 + $0x74] sm:$0xf] %vm3011, %v3097
      %3108 = vst.msk [vmem:[#allocation2 + $0x78] sm:$0xf] %vm3011, %v3099
      %3109 = vst.msk [vmem:[#allocation2 + $0x7c] sm:$0xf] %vm3011, %v3101
      %v3110 = vld [vmem:[%s2355] sm:$0xe]
      %v3111 = vld [vmem:[%s2355 + $0x4] sm:$0xf]
      %v3112 = vld [vmem:[%s2355 + $0x8] sm:$0x1]
      %v3113 = vld [vmem:[%s2355 + $0xc] sm:$0xe]
      %v3114 = vld [vmem:[%s2355 + $0x10] sm:$0xf]
      %v3115 = vld [vmem:[%s2355 + $0x14] sm:$0x1]
      %v3116 = vld [vmem:[%s2355 + $0x18] sm:$0xe]
      %v3117 = vld [vmem:[%s2355 + $0x1c] sm:$0xf]
      %v3118 = vld [vmem:[%s2355 + $0x20] sm:$0x1]
      %v3119 = vld [vmem:[%s2355 + $0x24] sm:$0xe]
      %v3120 = vld [vmem:[%s2355 + $0x28] sm:$0xf]
      %v3121 = vld [vmem:[%s2355 + $0x2c] sm:$0x1]
      %v3122 = vld [vmem:[%s2355 + $0x30] sm:$0xe]
      %v3123 = vld [vmem:[%s2355 + $0x34] sm:$0xf]
      %v3124 = vld [vmem:[%s2355 + $0x38] sm:$0x1]
      %v3125 = vld [vmem:[%s2355 + $0x3c] sm:$0xe]
      %v3126 = vld [vmem:[%s2355 + $0x40] sm:$0xf]
      %v3127 = vld [vmem:[%s2355 + $0x44] sm:$0x1]
      %v3128 = vld [vmem:[%s2355 + $0x48] sm:$0xe]
      %v3129 = vld [vmem:[%s2355 + $0x4c] sm:$0xf]
      %v3130 = vld [vmem:[%s2355 + $0x50] sm:$0x1]
      %v3131 = vld [vmem:[%s2355 + $0x54] sm:$0xe]
      %v3132 = vld [vmem:[%s2355 + $0x58] sm:$0xf]
      %v3133 = vld [vmem:[%s2355 + $0x5c] sm:$0x1]
      %v3134 = vld [vmem:[%s2355 + $0x60] sm:$0xe]
      %v3135 = vld [vmem:[%s2355 + $0x64] sm:$0xf]
      %v3136 = vld [vmem:[%s2355 + $0x68] sm:$0x1]
      %v3137 = vld [vmem:[%s2355 + $0x6c] sm:$0xe]
      %v3138 = vld [vmem:[%s2355 + $0x70] sm:$0xf]
      %v3139 = vld [vmem:[%s2355 + $0x74] sm:$0x1]
      %v3140 = vld [vmem:[%s2355 + $0x78] sm:$0xe]
      %v3141 = vld [vmem:[%s2355 + $0x7c] sm:$0xf]
      %v3142 = vld [vmem:[%s2355 + $0x80] sm:$0x1]
      %v3143 = vld [vmem:[%s2355 + $0x84] sm:$0xe]
      %v3144 = vld [vmem:[%s2355 + $0x88] sm:$0xf]
      %v3145 = vld [vmem:[%s2355 + $0x8c] sm:$0x1]
      %v3146 = vld [vmem:[%s2355 + $0x90] sm:$0xe]
      %v3147 = vld [vmem:[%s2355 + $0x94] sm:$0xf]
      %v3148 = vld [vmem:[%s2355 + $0x98] sm:$0x1]
      %v3149 = vld [vmem:[%s2355 + $0x9c] sm:$0xe]
      %v3150 = vld [vmem:[%s2355 + $0xa0] sm:$0xf]
      %v3151 = vld [vmem:[%s2355 + $0xa4] sm:$0x1]
      %v3194 = vrot.slane %v3110, 5
      %v3195 = vrot.slane %v3194, 4
      %v3196 = vrot.slane %v3111, 5
      %v3197 = vsel %vm1021, %v3195, %v3196
      %v3198 = vrot.slane %v3196, 4
      %v3199 = vrot.slane %v3112, 5
      %v3200 = vsel %vm1021, %v3198, %v3199
      %v3201 = vrot.slane %v3113, 5
      %v3202 = vrot.slane %v3201, 4
      %v3203 = vrot.slane %v3114, 5
      %v3204 = vsel %vm1021, %v3202, %v3203
      %v3205 = vrot.slane %v3203, 4
      %v3206 = vrot.slane %v3115, 5
      %v3207 = vsel %vm1021, %v3205, %v3206
      %v3208 = vrot.slane %v3116, 5
      %v3209 = vrot.slane %v3208, 4
      %v3210 = vrot.slane %v3117, 5
      %v3211 = vsel %vm1021, %v3209, %v3210
      %v3212 = vrot.slane %v3210, 4
      %v3213 = vrot.slane %v3118, 5
      %v3214 = vsel %vm1021, %v3212, %v3213
      %v3215 = vrot.slane %v3119, 5
      %v3216 = vrot.slane %v3215, 4
      %v3217 = vrot.slane %v3120, 5
      %v3218 = vsel %vm1021, %v3216, %v3217
      %v3219 = vrot.slane %v3217, 4
      %v3220 = vrot.slane %v3121, 5
      %v3221 = vsel %vm1021, %v3219, %v3220
      %v3222 = vrot.slane %v3122, 5
      %v3223 = vrot.slane %v3222, 4
      %v3224 = vrot.slane %v3123, 5
      %v3225 = vsel %vm1021, %v3223, %v3224
      %v3226 = vrot.slane %v3224, 4
      %v3227 = vrot.slane %v3124, 5
      %v3228 = vsel %vm1021, %v3226, %v3227
      %v3229 = vrot.slane %v3125, 5
      %v3230 = vrot.slane %v3229, 4
      %v3231 = vrot.slane %v3126, 5
      %v3232 = vsel %vm1021, %v3230, %v3231
      %v3233 = vrot.slane %v3231, 4
      %v3234 = vrot.slane %v3127, 5
      %v3235 = vsel %vm1021, %v3233, %v3234
      %v3236 = vrot.slane %v3128, 5
      %v3237 = vrot.slane %v3236, 4
      %v3238 = vrot.slane %v3129, 5
      %v3239 = vsel %vm1021, %v3237, %v3238
      %v3240 = vrot.slane %v3238, 4
      %v3241 = vrot.slane %v3130, 5
      %v3242 = vsel %vm1021, %v3240, %v3241
      %v3243 = vrot.slane %v3131, 5
      %v3244 = vrot.slane %v3243, 4
      %v3245 = vrot.slane %v3132, 5
      %v3246 = vsel %vm1021, %v3244, %v3245
      %v3247 = vrot.slane %v3245, 4
      %v3248 = vrot.slane %v3133, 5
      %v3249 = vsel %vm1021, %v3247, %v3248
      %v3250 = vrot.slane %v3134, 5
      %v3251 = vrot.slane %v3250, 4
      %v3252 = vrot.slane %v3135, 5
      %v3253 = vsel %vm1021, %v3251, %v3252
      %v3254 = vrot.slane %v3252, 4
      %v3255 = vrot.slane %v3136, 5
      %v3256 = vsel %vm1021, %v3254, %v3255
      %v3257 = vrot.slane %v3137, 5
      %v3258 = vrot.slane %v3257, 4
      %v3259 = vrot.slane %v3138, 5
      %v3260 = vsel %vm1021, %v3258, %v3259
      %v3261 = vrot.slane %v3259, 4
      %v3262 = vrot.slane %v3139, 5
      %v3263 = vsel %vm1021, %v3261, %v3262
      %v3264 = vrot.slane %v3140, 5
      %v3265 = vrot.slane %v3264, 4
      %v3266 = vrot.slane %v3141, 5
      %v3267 = vsel %vm1021, %v3265, %v3266
      %v3268 = vrot.slane %v3266, 4
      %v3269 = vrot.slane %v3142, 5
      %v3270 = vsel %vm1021, %v3268, %v3269
      %v3271 = vrot.slane %v3143, 5
      %v3272 = vrot.slane %v3271, 4
      %v3273 = vrot.slane %v3144, 5
      %v3274 = vsel %vm1021, %v3272, %v3273
      %v3275 = vrot.slane %v3273, 4
      %v3276 = vrot.slane %v3145, 5
      %v3277 = vsel %vm1021, %v3275, %v3276
      %v3278 = vrot.slane %v3146, 5
      %v3279 = vrot.slane %v3278, 4
      %v3280 = vrot.slane %v3147, 5
      %v3281 = vsel %vm1021, %v3279, %v3280
      %v3282 = vrot.slane %v3280, 4
      %v3283 = vrot.slane %v3148, 5
      %v3284 = vsel %vm1021, %v3282, %v3283
      %v3285 = vrot.slane %v3149, 5
      %v3286 = vrot.slane %v3285, 4
      %v3287 = vrot.slane %v3150, 5
      %v3288 = vsel %vm1021, %v3286, %v3287
      %v3289 = vrot.slane %v3287, 4
      %v3290 = vrot.slane %v3151, 5
      %v3291 = vsel %vm1021, %v3289, %v3290
      %3292 = vrot.lane.b32.xlu0 %v3197, 32
      %v3293 = vpop.permute.xlu0 %3292
      %3294 = vrot.lane.b32.xlu0 %v3200, 32
      %v3295 = vpop.permute.xlu0 %3294
      %3296 = vrot.lane.b32.xlu0 %v3204, 32
      %v3297 = vpop.permute.xlu0 %3296
      %3298 = vrot.lane.b32.xlu0 %v3207, 32
      %v3299 = vpop.permute.xlu0 %3298
      %3300 = vrot.lane.b32.xlu0 %v3211, 32
      %v3301 = vpop.permute.xlu0 %3300
      %3302 = vrot.lane.b32.xlu0 %v3214, 32
      %v3303 = vpop.permute.xlu0 %3302
      %3304 = vrot.lane.b32.xlu0 %v3218, 32
      %v3305 = vpop.permute.xlu0 %3304
      %3306 = vrot.lane.b32.xlu0 %v3221, 32
      %v3307 = vpop.permute.xlu0 %3306
      %3308 = vrot.lane.b32.xlu0 %v3225, 32
      %v3309 = vpop.permute.xlu0 %3308
      %3310 = vrot.lane.b32.xlu0 %v3228, 32
      %v3311 = vpop.permute.xlu0 %3310
      %3312 = vrot.lane.b32.xlu0 %v3232, 32
      %v3313 = vpop.permute.xlu0 %3312
      %3314 = vrot.lane.b32.xlu0 %v3235, 32
      %v3315 = vpop.permute.xlu0 %3314
      %3316 = vrot.lane.b32.xlu0 %v3239, 32
      %v3317 = vpop.permute.xlu0 %3316
      %3318 = vrot.lane.b32.xlu0 %v3242, 32
      %v3319 = vpop.permute.xlu0 %3318
      %3320 = vrot.lane.b32.xlu0 %v3246, 32
      %v3321 = vpop.permute.xlu0 %3320
      %3322 = vrot.lane.b32.xlu0 %v3249, 32
      %v3323 = vpop.permute.xlu0 %3322
      %3324 = vrot.lane.b32.xlu0 %v3253, 32
      %v3325 = vpop.permute.xlu0 %3324
      %3326 = vrot.lane.b32.xlu0 %v3256, 32
      %v3327 = vpop.permute.xlu0 %3326
      %3328 = vrot.lane.b32.xlu0 %v3260, 32
      %v3329 = vpop.permute.xlu0 %3328
      %3330 = vrot.lane.b32.xlu0 %v3263, 32
      %v3331 = vpop.permute.xlu0 %3330
      %3332 = vrot.lane.b32.xlu0 %v3267, 32
      %v3333 = vpop.permute.xlu0 %3332
      %3334 = vrot.lane.b32.xlu0 %v3270, 32
      %v3335 = vpop.permute.xlu0 %3334
      %3336 = vrot.lane.b32.xlu0 %v3274, 32
      %v3337 = vpop.permute.xlu0 %3336
      %3338 = vrot.lane.b32.xlu0 %v3277, 32
      %v3339 = vpop.permute.xlu0 %3338
      %3340 = vrot.lane.b32.xlu0 %v3281, 32
      %v3341 = vpop.permute.xlu0 %3340
      %3342 = vrot.lane.b32.xlu0 %v3284, 32
      %v3343 = vpop.permute.xlu0 %3342
      %3344 = vrot.lane.b32.xlu0 %v3288, 32
      %v3345 = vpop.permute.xlu0 %3344
      %3346 = vrot.lane.b32.xlu0 %v3291, 32
      %v3347 = vpop.permute.xlu0 %3346
      %vm3376 = vcmask 290048
      %3377 = vst.msk [vmem:[#allocation2] sm:$0xf] %vm3376, %v3293
      %3378 = vst.msk [vmem:[#allocation2 + $0x4] sm:$0xf] %vm3376, %v3295
      %3379 = vst.msk [vmem:[#allocation2 + $0x8] sm:$0xf] %vm3376, %v3297
      %3380 = vst.msk [vmem:[#allocation2 + $0xc] sm:$0xf] %vm3376, %v3299
      %3381 = vst.msk [vmem:[#allocation2 + $0x10] sm:$0xf] %vm3376, %v3301
      %3382 = vst.msk [vmem:[#allocation2 + $0x14] sm:$0xf] %vm3376, %v3303
      %3383 = vst.msk [vmem:[#allocation2 + $0x18] sm:$0xf] %vm3376, %v3305
      %3384 = vst.msk [vmem:[#allocation2 + $0x1c] sm:$0xf] %vm3376, %v3307
      %3385 = vst.msk [vmem:[#allocation2 + $0x20] sm:$0xf] %vm3376, %v3309
      %3386 = vst.msk [vmem:[#allocation2 + $0x24] sm:$0xf] %vm3376, %v3311
      %3387 = vst.msk [vmem:[#allocation2 + $0x28] sm:$0xf] %vm3376, %v3313
      %3388 = vst.msk [vmem:[#allocation2 + $0x2c] sm:$0xf] %vm3376, %v3315
      %3389 = vst.msk [vmem:[#allocation2 + $0x30] sm:$0xf] %vm3376, %v3317
      %3390 = vst.msk [vmem:[#allocation2 + $0x34] sm:$0xf] %vm3376, %v3319
      %3391 = vst.msk [vmem:[#allocation2 + $0x38] sm:$0xf] %vm3376, %v3321
      %3392 = vst.msk [vmem:[#allocation2 + $0x3c] sm:$0xf] %vm3376, %v3323
      %3393 = vst.msk [vmem:[#allocation2 + $0x40] sm:$0xf] %vm3376, %v3325
      %3394 = vst.msk [vmem:[#allocation2 + $0x44] sm:$0xf] %vm3376, %v3327
      %3395 = vst.msk [vmem:[#allocation2 + $0x48] sm:$0xf] %vm3376, %v3329
      %3396 = vst.msk [vmem:[#allocation2 + $0x4c] sm:$0xf] %vm3376, %v3331
      %3397 = vst.msk [vmem:[#allocation2 + $0x50] sm:$0xf] %vm3376, %v3333
      %3398 = vst.msk [vmem:[#allocation2 + $0x54] sm:$0xf] %vm3376, %v3335
      %3399 = vst.msk [vmem:[#allocation2 + $0x58] sm:$0xf] %vm3376, %v3337
      %3400 = vst.msk [vmem:[#allocation2 + $0x5c] sm:$0xf] %vm3376, %v3339
      %3401 = vst.msk [vmem:[#allocation2 + $0x60] sm:$0xf] %vm3376, %v3341
      %3402 = vst.msk [vmem:[#allocation2 + $0x64] sm:$0xf] %vm3376, %v3343
      %3403 = vst.msk [vmem:[#allocation2 + $0x68] sm:$0xf] %vm3376, %v3345
      %3404 = vst.msk [vmem:[#allocation2 + $0x6c] sm:$0xf] %vm3376, %v3347
      %v3405 = vld [vmem:[%s278] sm:$0xe]
      %v3406 = vld [vmem:[%s278 + $0x4] sm:$0xf]
      %v3407 = vld [vmem:[%s278 + $0x8] sm:$0x1]
      %v3408 = vld [vmem:[%s278 + $0xc] sm:$0xe]
      %v3409 = vld [vmem:[%s278 + $0x10] sm:$0xf]
      %v3410 = vld [vmem:[%s278 + $0x14] sm:$0x1]
      %v3417 = vrot.slane %v3405, 5
      %v3418 = vrot.slane %v3417, 4
      %v3419 = vrot.slane %v3406, 5
      %v3420 = vsel %vm1021, %v3418, %v3419
      %v3421 = vrot.slane %v3419, 4
      %v3422 = vrot.slane %v3407, 5
      %v3423 = vsel %vm1021, %v3421, %v3422
      %v3424 = vrot.slane %v3408, 5
      %v3425 = vrot.slane %v3424, 4
      %v3426 = vrot.slane %v3409, 5
      %v3427 = vsel %vm1021, %v3425, %v3426
      %v3428 = vrot.slane %v3426, 4
      %v3429 = vrot.slane %v3410, 5
      %v3430 = vsel %vm1021, %v3428, %v3429
      %3431 = vrot.lane.b32.xlu0 %v3420, 32
      %v3432 = vpop.permute.xlu0 %3431
      %3433 = vrot.lane.b32.xlu0 %v3423, 32
      %v3434 = vpop.permute.xlu0 %3433
      %3435 = vrot.lane.b32.xlu0 %v3427, 32
      %v3436 = vpop.permute.xlu0 %3435
      %3437 = vrot.lane.b32.xlu0 %v3430, 32
      %v3438 = vpop.permute.xlu0 %3437
      %3443 = vst.msk [vmem:[#allocation2 + $0x70] sm:$0xf] %vm3376, %v3432
      %3444 = vst.msk [vmem:[#allocation2 + $0x74] sm:$0xf] %vm3376, %v3434
      %3445 = vst.msk [vmem:[#allocation2 + $0x78] sm:$0xf] %vm3376, %v3436
      %3446 = vst.msk [vmem:[#allocation2 + $0x7c] sm:$0xf] %vm3376, %v3438
      %v3447 = vld [vmem:[#allocation2] sm:$0xf]
      %v3448 = vld [vmem:[#allocation2 + $0x4] sm:$0xf]
      %v3449 = vld [vmem:[#allocation2 + $0x8] sm:$0xf]
      %v3450 = vld [vmem:[#allocation2 + $0xc] sm:$0xf]
      %v3451 = vld [vmem:[#allocation2 + $0x10] sm:$0xf]
      %v3452 = vld [vmem:[#allocation2 + $0x14] sm:$0xf]
      %v3453 = vld [vmem:[#allocation2 + $0x18] sm:$0xf]
      %v3454 = vld [vmem:[#allocation2 + $0x1c] sm:$0xf]
      %v3455 = vld [vmem:[#allocation2 + $0x20] sm:$0xf]
      %v3456 = vld [vmem:[#allocation2 + $0x24] sm:$0xf]
      %v3457 = vld [vmem:[#allocation2 + $0x28] sm:$0xf]
      %v3458 = vld [vmem:[#allocation2 + $0x2c] sm:$0xf]
      %v3459 = vld [vmem:[#allocation2 + $0x30] sm:$0xf]
      %v3460 = vld [vmem:[#allocation2 + $0x34] sm:$0xf]
      %v3461 = vld [vmem:[#allocation2 + $0x38] sm:$0xf]
      %v3462 = vld [vmem:[#allocation2 + $0x3c] sm:$0xf]
      %v3463 = vld [vmem:[#allocation2 + $0x40] sm:$0xf]
      %v3464 = vld [vmem:[#allocation2 + $0x44] sm:$0xf]
      %v3465 = vld [vmem:[#allocation2 + $0x48] sm:$0xf]
      %v3466 = vld [vmem:[#allocation2 + $0x4c] sm:$0xf]
      %v3467 = vld [vmem:[#allocation2 + $0x50] sm:$0xf]
      %v3468 = vld [vmem:[#allocation2 + $0x54] sm:$0xf]
      %v3469 = vld [vmem:[#allocation2 + $0x58] sm:$0xf]
      %v3470 = vld [vmem:[#allocation2 + $0x5c] sm:$0xf]
      %v3471 = vld [vmem:[#allocation2 + $0x60] sm:$0xf]
      %v3472 = vld [vmem:[#allocation2 + $0x64] sm:$0xf]
      %v3473 = vld [vmem:[#allocation2 + $0x68] sm:$0xf]
      %v3474 = vld [vmem:[#allocation2 + $0x6c] sm:$0xf]
      %v3475 = vld [vmem:[#allocation2 + $0x70] sm:$0xf]
      %v3476 = vld [vmem:[#allocation2 + $0x74] sm:$0xf]
      %v3477 = vld [vmem:[#allocation2 + $0x78] sm:$0xf]
      %v3478 = vld [vmem:[#allocation2 + $0x7c] sm:$0xf]
      %v3479 = vld [vmem:[%s2] sm:$0xf]
      %v3480 = vld [vmem:[%s2 + $0x4] sm:$0xf]
      %v3481 = vld [vmem:[%s2 + $0x8] sm:$0xf]
      %v3482 = vld [vmem:[%s2 + $0xc] sm:$0xf]
      %v3483 = vld [vmem:[%s2 + $0x10] sm:$0x3]
      %v3516 = vunpack.c.l.b16 %v3447
      %v3517 = vunpack.c.l.b16 %v3448
      %v3518 = vunpack.c.l.b16 %v3449
      %v3519 = vunpack.c.l.b16 %v3450
      %v3520 = vunpack.c.l.b16 %v3451
      %v3521 = vunpack.c.l.b16 %v3452
      %v3522 = vunpack.c.l.b16 %v3453
      %v3523 = vunpack.c.l.b16 %v3454
      %v3524 = vunpack.c.l.b16 %v3455
      %v3525 = vunpack.c.l.b16 %v3456
      %v3526 = vunpack.c.l.b16 %v3457
      %v3527 = vunpack.c.l.b16 %v3458
      %v3528 = vunpack.c.l.b16 %v3459
      %v3529 = vunpack.c.l.b16 %v3460
      %v3530 = vunpack.c.l.b16 %v3461
      %v3531 = vunpack.c.l.b16 %v3462
      %v3532 = vunpack.c.l.b16 %v3463
      %v3533 = vunpack.c.l.b16 %v3464
      %v3534 = vunpack.c.l.b16 %v3465
      %v3535 = vunpack.c.l.b16 %v3466
      %v3536 = vunpack.c.l.b16 %v3467
      %v3537 = vunpack.c.l.b16 %v3468
      %v3538 = vunpack.c.l.b16 %v3469
      %v3539 = vunpack.c.l.b16 %v3470
      %v3540 = vunpack.c.l.b16 %v3471
      %v3541 = vunpack.c.l.b16 %v3472
      %v3542 = vunpack.c.l.b16 %v3473
      %v3543 = vunpack.c.l.b16 %v3474
      %v3544 = vunpack.c.l.b16 %v3475
      %v3545 = vunpack.c.l.b16 %v3476
      %v3546 = vunpack.c.l.b16 %v3477
      %v3547 = vunpack.c.l.b16 %v3478
      %v3548 = vpack.c.b16 %v3517, %v3516
      %v3549 = vpack.c.b16 %v3519, %v3518
      %v3550 = vpack.c.b16 %v3521, %v3520
      %v3551 = vpack.c.b16 %v3523, %v3522
      %v3552 = vpack.c.b16 %v3525, %v3524
      %v3553 = vpack.c.b16 %v3527, %v3526
      %v3554 = vpack.c.b16 %v3529, %v3528
      %v3555 = vpack.c.b16 %v3531, %v3530
      %v3556 = vpack.c.b16 %v3533, %v3532
      %v3557 = vpack.c.b16 %v3535, %v3534
      %v3558 = vpack.c.b16 %v3537, %v3536
      %v3559 = vpack.c.b16 %v3539, %v3538
      %v3560 = vpack.c.b16 %v3541, %v3540
      %v3561 = vpack.c.b16 %v3543, %v3542
      %v3562 = vpack.c.b16 %v3545, %v3544
      %v3563 = vpack.c.b16 %v3547, %v3546
      %v3569 = vunpack.c.l.b16 %v3479
      %v3570 = vunpack.c.l.b16 %v3480
      %v3571 = vunpack.c.l.b16 %v3481
      %v3572 = vunpack.c.l.b16 %v3482
      %v3573 = vunpack.c.l.b16 %v3483
      %v3574 = vpack.c.b16 %v3570, %v3569
      %v3575 = vpack.c.b16 %v3572, %v3571
      %v3576 = vpack.c.b16 %v3573, %v3573
      %vm3579 = vcmask 293888
      %v3581 = vsel %vm3579, %v3548, 0
      %v3584 = vsel %vm3579, %v3549, 0
      %v3587 = vsel %vm3579, %v3550, 0
      %v3590 = vsel %vm3579, %v3551, 0
      %v3593 = vsel %vm3579, %v3552, 0
      %v3596 = vsel %vm3579, %v3553, 0
      %v3599 = vsel %vm3579, %v3554, 0
      %v3602 = vsel %vm3579, %v3555, 0
      %v3605 = vsel %vm3579, %v3556, 0
      %v3608 = vsel %vm3579, %v3557, 0
      %v3611 = vsel %vm3579, %v3558, 0
      %v3614 = vsel %vm3579, %v3559, 0
      %v3617 = vsel %vm3579, %v3560, 0
      %v3620 = vsel %vm3579, %v3561, 0
      %v3623 = vsel %vm3579, %v3562, 0
      %v3626 = vsel %vm3579, %v3563, 0
      %vm3628 = vcmask 1041408
      %v3630 = vsel %vm3628, %v3576, 0
      %3632 = vmatprep.subr.bf16.mxu0 0
      %3633 = vmatpush1.bf16.msra.mxu0 0
      %3634 = vmatprep.subr.bf16.mxu0 0
      %3635 = vmatpush1.bf16.msra.mxu0 0
      %3636 = vmatprep.subr.bf16.mxu0 0
      %3637 = vmatpush1.bf16.msra.mxu0 0
      %3638 = vmatprep.subr.bf16.mxu0 0
      %3639 = vmatpush1.bf16.msra.mxu0 0
      %3640 = vmatprep.subr.bf16.mxu0 0
      %3641 = vmatpush1.bf16.msra.mxu0 0
      %3642 = vmatprep.subr.bf16.mxu0 0
      %3643 = vmatpush1.bf16.msra.mxu0 %v3630
      %3644 = vmatprep.subr.bf16.mxu0 0
      %3645 = vmatpush1.bf16.msra.mxu0 %v3575
      %3646 = vmatprep.subr.bf16.mxu0 0
      %3647 = vmatpush1.bf16.msra.mxu0 %v3574
      %3648 = vmatprep.subr.bf16.mxu0 0
      %3649 = vmatpush2.bf16.msra.mxu0 0
      %3650 = vmatprep.subr.bf16.mxu0 0
      %3651 = vmatpush2.bf16.msra.mxu0 0
      %3652 = vmatprep.subr.bf16.mxu0 0
      %3653 = vmatpush2.bf16.msra.mxu0 0
      %3654 = vmatprep.subr.bf16.mxu0 0
      %3655 = vmatpush2.bf16.msra.mxu0 0
      %3656 = vmatprep.subr.bf16.mxu0 0
      %3657 = vmatpush2.bf16.msra.mxu0 0
      %3658 = vmatprep.subr.bf16.mxu0 0
      %3659 = vmatpush2.bf16.msra.mxu0 0
      %3660 = vmatprep.subr.bf16.mxu0 0
      %3661 = vmatpush2.bf16.msra.mxu0 0
      %3662 = vmatprep.subr.bf16.mxu0 0
      %3663 = vmatpush2.bf16.msra.mxu0 0
      %3664 = vmatprep.mubr.bf16.mxu0 0
      %3665 = vmatmul.mubr.bf16.gmra.mxu0 %v3581
      %v3666 = vpop.f32.mrf.mxu0
      %v3667 = vadd.f32 0.0, %v3666
      %v3668 = vpop.f32.mrf.mxu0
      %v3669 = vpop.f32.mrf.mxu0
      %v3670 = vadd.f32 0.0, %v3669
      %v3671 = vpop.f32.mrf.mxu0
      %3672 = vmatprep.mubr.bf16.mxu0 0
      %3673 = vmatmul.mubr.bf16.gmra.mxu0 %v3584
      %v3674 = vpop.f32.mrf.mxu0
      %v3675 = vadd.f32 0.0, %v3674
      %v3676 = vpop.f32.mrf.mxu0
      %v3677 = vpop.f32.mrf.mxu0
      %v3678 = vadd.f32 0.0, %v3677
      %v3679 = vpop.f32.mrf.mxu0
      %3680 = vmatprep.mubr.bf16.mxu0 0
      %3681 = vmatmul.mubr.bf16.gmra.mxu0 %v3587
      %v3682 = vpop.f32.mrf.mxu0
      %v3683 = vadd.f32 0.0, %v3682
      %v3684 = vpop.f32.mrf.mxu0
      %v3685 = vpop.f32.mrf.mxu0
      %v3686 = vadd.f32 0.0, %v3685
      %v3687 = vpop.f32.mrf.mxu0
      %3688 = vmatprep.mubr.bf16.mxu0 0
      %3689 = vmatmul.mubr.bf16.gmra.mxu0 %v3590
      %v3690 = vpop.f32.mrf.mxu0
      %v3691 = vadd.f32 0.0, %v3690
      %v3692 = vpop.f32.mrf.mxu0
      %v3693 = vpop.f32.mrf.mxu0
      %v3694 = vadd.f32 0.0, %v3693
      %v3695 = vpop.f32.mrf.mxu0
      %3696 = vmatprep.mubr.bf16.mxu0 0
      %3697 = vmatmul.mubr.bf16.gmra.mxu0 %v3593
      %v3698 = vpop.f32.mrf.mxu0
      %v3699 = vadd.f32 0.0, %v3698
      %v3700 = vpop.f32.mrf.mxu0
      %v3701 = vpop.f32.mrf.mxu0
      %v3702 = vadd.f32 0.0, %v3701
      %v3703 = vpop.f32.mrf.mxu0
      %3704 = vmatprep.mubr.bf16.mxu0 0
      %3705 = vmatmul.mubr.bf16.gmra.mxu0 %v3596
      %v3706 = vpop.f32.mrf.mxu0
      %v3707 = vadd.f32 0.0, %v3706
      %v3708 = vpop.f32.mrf.mxu0
      %v3709 = vpop.f32.mrf.mxu0
      %v3710 = vadd.f32 0.0, %v3709
      %v3711 = vpop.f32.mrf.mxu0
      %3712 = vmatprep.mubr.bf16.mxu0 0
      %3713 = vmatmul.mubr.bf16.gmra.mxu0 %v3599
      %v3714 = vpop.f32.mrf.mxu0
      %v3715 = vadd.f32 0.0, %v3714
      %v3716 = vpop.f32.mrf.mxu0
      %v3717 = vpop.f32.mrf.mxu0
      %v3718 = vadd.f32 0.0, %v3717
      %v3719 = vpop.f32.mrf.mxu0
      %3720 = vmatprep.mubr.bf16.mxu0 0
      %3721 = vmatmul.mubr.bf16.gmra.mxu0 %v3602
      %v3722 = vpop.f32.mrf.mxu0
      %v3723 = vadd.f32 0.0, %v3722
      %v3724 = vpop.f32.mrf.mxu0
      %v3725 = vpop.f32.mrf.mxu0
      %v3726 = vadd.f32 0.0, %v3725
      %v3727 = vpop.f32.mrf.mxu0
      %3728 = vmatprep.mubr.bf16.mxu0 0
      %3729 = vmatmul.mubr.bf16.gmra.mxu0 %v3605
      %v3730 = vpop.f32.mrf.mxu0
      %v3731 = vadd.f32 0.0, %v3730
      %v3732 = vpop.f32.mrf.mxu0
      %v3733 = vpop.f32.mrf.mxu0
      %v3734 = vadd.f32 0.0, %v3733
      %v3735 = vpop.f32.mrf.mxu0
      %3736 = vmatprep.mubr.bf16.mxu0 0
      %3737 = vmatmul.mubr.bf16.gmra.mxu0 %v3608
      %v3738 = vpop.f32.mrf.mxu0
      %v3739 = vadd.f32 0.0, %v3738
      %v3740 = vpop.f32.mrf.mxu0
      %v3741 = vpop.f32.mrf.mxu0
      %v3742 = vadd.f32 0.0, %v3741
      %v3743 = vpop.f32.mrf.mxu0
      %3744 = vmatprep.mubr.bf16.mxu0 0
      %3745 = vmatmul.mubr.bf16.gmra.mxu0 %v3611
      %v3746 = vpop.f32.mrf.mxu0
      %v3747 = vadd.f32 0.0, %v3746
      %v3748 = vpop.f32.mrf.mxu0
      %v3749 = vpop.f32.mrf.mxu0
      %v3750 = vadd.f32 0.0, %v3749
      %v3751 = vpop.f32.mrf.mxu0
      %3752 = vmatprep.mubr.bf16.mxu0 0
      %3753 = vmatmul.mubr.bf16.gmra.mxu0 %v3614
      %v3754 = vpop.f32.mrf.mxu0
      %v3755 = vadd.f32 0.0, %v3754
      %v3756 = vpop.f32.mrf.mxu0
      %v3757 = vpop.f32.mrf.mxu0
      %v3758 = vadd.f32 0.0, %v3757
      %v3759 = vpop.f32.mrf.mxu0
      %3760 = vmatprep.mubr.bf16.mxu0 0
      %3761 = vmatmul.mubr.bf16.gmra.mxu0 %v3617
      %v3762 = vpop.f32.mrf.mxu0
      %v3763 = vadd.f32 0.0, %v3762
      %v3764 = vpop.f32.mrf.mxu0
      %v3765 = vpop.f32.mrf.mxu0
      %v3766 = vadd.f32 0.0, %v3765
      %v3767 = vpop.f32.mrf.mxu0
      %3768 = vmatprep.mubr.bf16.mxu0 0
      %3769 = vmatmul.mubr.bf16.gmra.mxu0 %v3620
      %v3770 = vpop.f32.mrf.mxu0
      %v3771 = vadd.f32 0.0, %v3770
      %v3772 = vpop.f32.mrf.mxu0
      %v3773 = vpop.f32.mrf.mxu0
      %v3774 = vadd.f32 0.0, %v3773
      %v3775 = vpop.f32.mrf.mxu0
      %3776 = vmatprep.mubr.bf16.mxu0 0
      %3777 = vmatmul.mubr.bf16.gmra.mxu0 %v3623
      %v3778 = vpop.f32.mrf.mxu0
      %v3779 = vadd.f32 0.0, %v3778
      %v3780 = vpop.f32.mrf.mxu0
      %v3781 = vpop.f32.mrf.mxu0
      %v3782 = vadd.f32 0.0, %v3781
      %v3783 = vpop.f32.mrf.mxu0
      %3784 = vmatprep.mubr.bf16.mxu0 0
      %3785 = vmatmul.mubr.bf16.gmra.mxu0 %v3626
      %v3786 = vpop.f32.mrf.mxu0
      %v3787 = vadd.f32 0.0, %v3786
      %v3788 = vpop.f32.mrf.mxu0
      %v3789 = vpop.f32.mrf.mxu0
      %v3790 = vadd.f32 0.0, %v3789
      %v3791 = vpop.f32.mrf.mxu0
      %3792 = vdwg.mxu0
      %v3793 = vmax.f32 %v3667, 0.0
      %v3794 = vmax.f32 %v3670, 0.0
      %v3795 = vmax.f32 %v3675, 0.0
      %v3796 = vmax.f32 %v3678, 0.0
      %v3797 = vmax.f32 %v3683, 0.0
      %v3798 = vmax.f32 %v3686, 0.0
      %v3799 = vmax.f32 %v3691, 0.0
      %v3800 = vmax.f32 %v3694, 0.0
      %v3801 = vmax.f32 %v3699, 0.0
      %v3802 = vmax.f32 %v3702, 0.0
      %v3803 = vmax.f32 %v3707, 0.0
      %v3804 = vmax.f32 %v3710, 0.0
      %v3805 = vmax.f32 %v3715, 0.0
      %v3806 = vmax.f32 %v3718, 0.0
      %v3807 = vmax.f32 %v3723, 0.0
      %v3808 = vmax.f32 %v3726, 0.0
      %v3809 = vmax.f32 %v3731, 0.0
      %v3810 = vmax.f32 %v3734, 0.0
      %v3811 = vmax.f32 %v3739, 0.0
      %v3812 = vmax.f32 %v3742, 0.0
      %v3813 = vmax.f32 %v3747, 0.0
      %v3814 = vmax.f32 %v3750, 0.0
      %v3815 = vmax.f32 %v3755, 0.0
      %v3816 = vmax.f32 %v3758, 0.0
      %v3817 = vmax.f32 %v3763, 0.0
      %v3818 = vmax.f32 %v3766, 0.0
      %v3819 = vmax.f32 %v3771, 0.0
      %v3820 = vmax.f32 %v3774, 0.0
      %v3821 = vmax.f32 %v3779, 0.0
      %v3822 = vmax.f32 %v3782, 0.0
      %v3823 = vmax.f32 %v3787, 0.0
      %v3824 = vmax.f32 %v3790, 0.0
      %v3825 = vpack.c.bf16 %v3794, %v3793
      %v3826 = vpack.c.bf16 %v3796, %v3795
      %v3827 = vpack.c.bf16 %v3798, %v3797
      %v3828 = vpack.c.bf16 %v3800, %v3799
      %v3829 = vpack.c.bf16 %v3802, %v3801
      %v3830 = vpack.c.bf16 %v3804, %v3803
      %v3831 = vpack.c.bf16 %v3806, %v3805
      %v3832 = vpack.c.bf16 %v3808, %v3807
      %v3833 = vpack.c.bf16 %v3810, %v3809
      %v3834 = vpack.c.bf16 %v3812, %v3811
      %v3835 = vpack.c.bf16 %v3814, %v3813
      %v3836 = vpack.c.bf16 %v3816, %v3815
      %v3837 = vpack.c.bf16 %v3818, %v3817
      %v3838 = vpack.c.bf16 %v3820, %v3819
      %v3839 = vpack.c.bf16 %v3822, %v3821
      %v3840 = vpack.c.bf16 %v3824, %v3823
      %v3857 = vunpack.c.l.b16 %v3825
      %v3858 = vunpack.c.h.b16 %v3825
      %v3859 = vunpack.c.l.b16 %v3826
      %v3860 = vunpack.c.h.b16 %v3826
      %v3861 = vunpack.c.l.b16 %v3827
      %v3862 = vunpack.c.h.b16 %v3827
      %v3863 = vunpack.c.l.b16 %v3828
      %v3864 = vunpack.c.h.b16 %v3828
      %v3865 = vunpack.c.l.b16 %v3829
      %v3866 = vunpack.c.h.b16 %v3829
      %v3867 = vunpack.c.l.b16 %v3830
      %v3868 = vunpack.c.h.b16 %v3830
      %v3869 = vunpack.c.l.b16 %v3831
      %v3870 = vunpack.c.h.b16 %v3831
      %v3871 = vunpack.c.l.b16 %v3832
      %v3872 = vunpack.c.h.b16 %v3832
      %v3873 = vunpack.c.l.b16 %v3833
      %v3874 = vunpack.c.h.b16 %v3833
      %v3875 = vunpack.c.l.b16 %v3834
      %v3876 = vunpack.c.h.b16 %v3834
      %v3877 = vunpack.c.l.b16 %v3835
      %v3878 = vunpack.c.h.b16 %v3835
      %v3879 = vunpack.c.l.b16 %v3836
      %v3880 = vunpack.c.h.b16 %v3836
      %v3881 = vunpack.c.l.b16 %v3837
      %v3882 = vunpack.c.h.b16 %v3837
      %v3883 = vunpack.c.l.b16 %v3838
      %v3884 = vunpack.c.h.b16 %v3838
      %v3885 = vunpack.c.l.b16 %v3839
      %v3886 = vunpack.c.h.b16 %v3839
      %v3887 = vunpack.c.l.b16 %v3840
      %v3888 = vunpack.c.h.b16 %v3840
      %v3889 = vpack.c.b16 %v3857, %v3857
      %v3890 = vpack.c.b16 %v3858, %v3858
      %v3891 = vpack.c.b16 %v3859, %v3859
      %v3892 = vpack.c.b16 %v3860, %v3860
      %v3893 = vpack.c.b16 %v3861, %v3861
      %v3894 = vpack.c.b16 %v3862, %v3862
      %v3895 = vpack.c.b16 %v3863, %v3863
      %v3896 = vpack.c.b16 %v3864, %v3864
      %v3897 = vpack.c.b16 %v3865, %v3865
      %v3898 = vpack.c.b16 %v3866, %v3866
      %v3899 = vpack.c.b16 %v3867, %v3867
      %v3900 = vpack.c.b16 %v3868, %v3868
      %v3901 = vpack.c.b16 %v3869, %v3869
      %v3902 = vpack.c.b16 %v3870, %v3870
      %v3903 = vpack.c.b16 %v3871, %v3871
      %v3904 = vpack.c.b16 %v3872, %v3872
      %v3905 = vpack.c.b16 %v3873, %v3873
      %v3906 = vpack.c.b16 %v3874, %v3874
      %v3907 = vpack.c.b16 %v3875, %v3875
      %v3908 = vpack.c.b16 %v3876, %v3876
      %v3909 = vpack.c.b16 %v3877, %v3877
      %v3910 = vpack.c.b16 %v3878, %v3878
      %v3911 = vpack.c.b16 %v3879, %v3879
      %v3912 = vpack.c.b16 %v3880, %v3880
      %v3913 = vpack.c.b16 %v3881, %v3881
      %v3914 = vpack.c.b16 %v3882, %v3882
      %v3915 = vpack.c.b16 %v3883, %v3883
      %v3916 = vpack.c.b16 %v3884, %v3884
      %v3917 = vpack.c.b16 %v3885, %v3885
      %v3918 = vpack.c.b16 %v3886, %v3886
      %v3919 = vpack.c.b16 %v3887, %v3887
      %v3920 = vpack.c.b16 %v3888, %v3888
      %vm3953 = vcmask 60416
      %3954 = vst.msk [vmem:[%s291] sm:$0xf] %vm3953, %v3889
      %3955 = vst.msk [vmem:[%s291 + $0x4] sm:$0xf] %vm3953, %v3890
      %3956 = vst.msk [vmem:[%s291 + $0x8] sm:$0xf] %vm3953, %v3891
      %3957 = vst.msk [vmem:[%s291 + $0xc] sm:$0xf] %vm3953, %v3892
      %3958 = vst.msk [vmem:[%s291 + $0x10] sm:$0xf] %vm3953, %v3893
      %3959 = vst.msk [vmem:[%s291 + $0x14] sm:$0xf] %vm3953, %v3894
      %3960 = vst.msk [vmem:[%s291 + $0x18] sm:$0xf] %vm3953, %v3895
      %3961 = vst.msk [vmem:[%s291 + $0x1c] sm:$0xf] %vm3953, %v3896
      %3962 = vst.msk [vmem:[%s291 + $0x20] sm:$0xf] %vm3953, %v3897
      %3963 = vst.msk [vmem:[%s291 + $0x24] sm:$0xf] %vm3953, %v3898
      %3964 = vst.msk [vmem:[%s291 + $0x28] sm:$0xf] %vm3953, %v3899
      %3965 = vst.msk [vmem:[%s291 + $0x2c] sm:$0xf] %vm3953, %v3900
      %3966 = vst.msk [vmem:[%s291 + $0x30] sm:$0xf] %vm3953, %v3901
      %3967 = vst.msk [vmem:[%s291 + $0x34] sm:$0xf] %vm3953, %v3902
      %3968 = vst.msk [vmem:[%s291 + $0x38] sm:$0xf] %vm3953, %v3903
      %3969 = vst.msk [vmem:[%s291 + $0x3c] sm:$0xf] %vm3953, %v3904
      %3970 = vst.msk [vmem:[%s291 + $0x40] sm:$0xf] %vm3953, %v3905
      %3971 = vst.msk [vmem:[%s291 + $0x44] sm:$0xf] %vm3953, %v3906
      %3972 = vst.msk [vmem:[%s291 + $0x48] sm:$0xf] %vm3953, %v3907
      %3973 = vst.msk [vmem:[%s291 + $0x4c] sm:$0xf] %vm3953, %v3908
      %3974 = vst.msk [vmem:[%s291 + $0x50] sm:$0xf] %vm3953, %v3909
      %3975 = vst.msk [vmem:[%s291 + $0x54] sm:$0xf] %vm3953, %v3910
      %3976 = vst.msk [vmem:[%s291 + $0x58] sm:$0xf] %vm3953, %v3911
      %3977 = vst.msk [vmem:[%s291 + $0x5c] sm:$0xf] %vm3953, %v3912
      %3978 = vst.msk [vmem:[%s291 + $0x60] sm:$0xf] %vm3953, %v3913
      %3979 = vst.msk [vmem:[%s291 + $0x64] sm:$0xf] %vm3953, %v3914
      %3980 = vst.msk [vmem:[%s291 + $0x68] sm:$0xf] %vm3953, %v3915
      %3981 = vst.msk [vmem:[%s291 + $0x6c] sm:$0xf] %vm3953, %v3916
      %3982 = vst.msk [vmem:[%s291 + $0x70] sm:$0xf] %vm3953, %v3917
      %3983 = vst.msk [vmem:[%s291 + $0x74] sm:$0xf] %vm3953, %v3918
      %3984 = vst.msk [vmem:[%s291 + $0x78] sm:$0xf] %vm3953, %v3919
      %3985 = vst.msk [vmem:[%s291 + $0x7c] sm:$0xf] %vm3953, %v3920
      %s3986 = smul.u32 16, %s19
      %p3987 = scmp.lt.s32.totalorder %s18, 1
      %s3988 = scalar_select %p3987, %s18, 1
      %p3989 = scmp.lt.s32.totalorder %s3986, 15
      %s3990 = scalar_select %p3989, %s3986, 15
      %s3991 = smul.addr %s3990, 2
      %s3992 = smul.addr %s3988, 32
      %s3993 = sadd.s32 %s3991, %s3992
      %s3994 = smul.addr %s3993, 4
      %s3995 = scalar_lea.vmem %s3, %s3994
      // Predicated region
      $region33: #{conv_block_forward.1} parent=31 // pred_check
        %p3996 = pneg %p127
      $region34: #{conv_block_forward.1} parent=31 // pred_check_branch
        %3998 = sbr.rel (%p3996) target = $region36
      $region35: #{conv_block_forward.1} parent=31 // pred_region
        %s3999 = smul.u32 16, %s19
      $region36: #{conv_block_forward.1} parent=31 // pred_fallthru
        _
    $region32: #{conv_block_forward.1} parent=5 // pred_fallthru
      _
    %p4000 = scmp.le.s32.totalorder 2, %s9
    // Predicated region
    $region37: #{conv_block_forward.1} parent=5 // pred_check
      %p4001 = pneg %p4000
    $region38: #{conv_block_forward.1} parent=5 // pred_check_branch
      %4003 = sbr.rel (%p4001) target = $region40
    $region39: #{conv_block_forward.1} parent=5 // pred_region
      %s4004 = ssub.s32 %s9, 2
      // Predicated region
      $region41: #{conv_block_forward.1} parent=39 // pred_check
        %p4005 = pneg %p133
      $region42: #{conv_block_forward.1} parent=39 // pred_check_branch
        %4007 = sbr.rel (%p4005) target = $region44
      $region43: #{conv_block_forward.1} parent=39 // pred_region
        %s4008 = smul.u32 16, %s21
        %p4009 = scmp.lt.s32.totalorder %s20, 1
        %s4010 = scalar_select %p4009, %s20, 1
        %p4011 = scmp.lt.s32.totalorder %s4008, 15
        %s4012 = scalar_select %p4011, %s4008, 15
        %s4013 = smul.addr %s4012, 2
        %s4014 = smul.addr %s4010, 32
        %s4015 = sadd.s32 %s4013, %s4014
        %s4016 = smul.addr %s4015, 4
        %s4017 = scalar_lea.vmem %s3, %s4016
      $region44: #{conv_block_forward.1} parent=39 // pred_fallthru
        _
    $region40: #{conv_block_forward.1} parent=5 // pred_fallthru
      _
  $region6: #{conv_block_forward.1} parent=0 // loop_footer
    %s13 = sadd.s32 1, %s9
  $region7: #{conv_block_forward.1} parent=0 // loop_footer_branch
    %8 = sbr.rel target = $region3
  $region8: #{conv_block_forward.1} parent=0 // loop_exit
    _

</llo_original>
